<compile_context>
chip_gen: v7x
topology: tpu7x:2x2x1
jax: 0.10.0
libtpu: 0.0.40
codegen_flags: <defaults>
</compile_context>

<pallas_src>
import jax
import jax.numpy as jnp
from jax.experimental import pallas as pl
from jax.experimental.pallas import tpu as pltpu


def _round_up(x, m):
    return ((x + m - 1) // m) * m


def vnet_kernel(x_ref, w1_ref, b1_ref, w2_ref, b2_ref, w3_ref, b3_ref, o_ref):
    # Layer 1: (TB, D)bf16 @ (D, 1024)bf16 -> f32 acc, +bias, ReLU.
    h1 = jnp.dot(x_ref[...], w1_ref[...], preferred_element_type=jnp.float32)
    h1 = jnp.maximum(h1 + b1_ref[...], 0.0)
    # Layer 2: (TB, 1024)bf16 @ (1024, 512)bf16 -> f32 acc, +bias, ReLU.
    h2 = jnp.dot(h1.astype(jnp.bfloat16), w2_ref[...],
                 preferred_element_type=jnp.float32)
    h2 = jnp.maximum(h2 + b2_ref[...], 0.0)
    # Layer 3: N=1 output column -> VPU multiply + XLU lane-reduce (MXU stays free),
    # scalar bias read from SMEM.
    v = jnp.sum(h2 * w3_ref[...], axis=-1, keepdims=True) + b3_ref[0, 0]
    o_ref[...] = v.astype(o_ref.dtype)


def vnet_forward(x, params, *, tile_b=256):
    """x: (B, dim_state) f32.  Returns (B, 1) f32 value estimates."""
    w1, b1, w2, b2, w3, b3 = params
    B, D = x.shape

    # Batch tile: multiple of 8 (sublane), capped at tile_b; pad B up to a tile multiple.
    tb = min(tile_b, _round_up(B, 8))
    b_pad = _round_up(B, tb)

    xb = x.astype(jnp.bfloat16)
    if b_pad != B:
        xb = jnp.pad(xb, ((0, b_pad - B), (0, 0)))

    grid = (b_pad // tb,)

    # Weights/biases: full-array blocks with a constant index map -> loaded once,
    # resident in VMEM for every batch tile.
    def const_spec(a):
        return pl.BlockSpec(a.shape, lambda i: (0,) * a.ndim)

    out = pl.pallas_call(
        vnet_kernel,
        out_shape=jax.ShapeDtypeStruct((b_pad, 1), jnp.float32),
        grid=grid,
        in_specs=[
            pl.BlockSpec((tb, D), lambda i: (i, 0)),          # x tile (pipelined)
            const_spec(w1),                                    # (D, 1024) bf16
            const_spec(b1),                                    # (1, 1024) f32
            const_spec(w2),                                    # (1024, 512) bf16
            const_spec(b2),                                    # (1, 512) f32
            const_spec(w3),                                    # (1, 512) f32 row
            pl.BlockSpec(memory_space=pltpu.MemorySpace.SMEM), # b3 scalar (1,1) f32
        ],
        out_specs=pl.BlockSpec((tb, 1), lambda i: (i, 0)),
        compiler_params=pltpu.CompilerParams(
            dimension_semantics=("parallel",),
            vmem_limit_bytes=32 << 20,
        ),
    )(xb, w1, b1, w2, b2, w3, b3)

    return out[:B]


def init_vnet_params(key, dim_state):
    # Mirrors init_weights: uniform(-0.1, 0.1) for every Linear weight and bias.
    # Weights stored (in_features, out_features) so the kernel computes x @ W + b,
    # matching PyTorch's nn.Linear semantics (x @ W.T + b).
    ks = jax.random.split(key, 6)
    u = lambda k, shape: jax.random.uniform(k, shape, jnp.float32, -0.1, 0.1)
    w1 = u(ks[0], (dim_state, 1024)).astype(jnp.bfloat16)
    b1 = u(ks[1], (1, 1024))
    w2 = u(ks[2], (1024, 512)).astype(jnp.bfloat16)
    b2 = u(ks[3], (1, 512))
    w3 = u(ks[4], (1, 512))          # row layout; layer 3 is a lane reduce
    b3 = u(ks[5], (1, 1))
    return (w1, b1, w2, b2, w3, b3)


def vnet_ref(x, params):
    # Pure-JAX reference with identical numerics (bf16 inputs, f32 accumulation).
    w1, b1, w2, b2, w3, b3 = params
    xb = x.astype(jnp.bfloat16)
    h1 = jnp.maximum(
        jnp.dot(xb, w1, preferred_element_type=jnp.float32) + b1, 0.0)
    h2 = jnp.maximum(
        jnp.dot(h1.astype(jnp.bfloat16), w2, preferred_element_type=jnp.float32) + b2, 0.0)
    return jnp.sum(h2 * w3, axis=-1, keepdims=True) + b3[0, 0]


if __name__ == "__main__":
    key = jax.random.PRNGKey(0)
    k_param, k_x = jax.random.split(key)

    dim_state = 32
    batch = 200  # non-multiple of the tile, exercises padding + a 2-step grid

    params = init_vnet_params(k_param, dim_state)
    x = jax.random.normal(k_x, (batch, dim_state), jnp.float32)

    out = vnet_forward(x, params, tile_b=128)  # 128 for the small demo / v5e; 256 on v6e/v7x
    out = jax.block_until_ready(out)

    ref = vnet_ref(x, params)
    assert out.shape == (batch, 1)
    assert jnp.allclose(out, ref, atol=1e-2, rtol=1e-2), float(jnp.max(jnp.abs(out - ref)))

    print("KERNEL_OK")
</pallas_src>

<mosaic_0001>
module attributes {stable_mosaic.version = 11 : i64} {
  func.func @vnet_kernel(%arg0: i32, %arg1: memref<128x32xbf16, #tpu.memory_space<vmem>>, %arg2: memref<32x1024xbf16, #tpu.memory_space<vmem>>, %arg3: memref<1x1024xf32, #tpu.memory_space<vmem>>, %arg4: memref<1024x512xbf16, #tpu.memory_space<vmem>>, %arg5: memref<1x512xf32, #tpu.memory_space<vmem>>, %arg6: memref<1x512xf32, #tpu.memory_space<vmem>>, %arg7: memref<1x1xf32, #tpu.memory_space<smem>>, %arg8: memref<128x1xf32, #tpu.memory_space<vmem>>) attributes {dimension_semantics = [#tpu.dimension_semantics<parallel>], iteration_bounds = array<i64: 2>, scalar_prefetch = 0 : i64, scratch_operands = 0 : i64, tpu.core_type = #tpu.core_type<tc>, window_params = [{transform_indices = @transform_0, window_bounds = array<i64: 128, 32>}, {pipeline_mode = #tpu.pipeline_mode<synchronous>, transform_indices = @transform_1, window_bounds = array<i64: 32, 1024>}, {pipeline_mode = #tpu.pipeline_mode<synchronous>, transform_indices = @transform_2, window_bounds = array<i64: 1, 1024>}, {pipeline_mode = #tpu.pipeline_mode<synchronous>, transform_indices = @transform_3, window_bounds = array<i64: 1024, 512>}, {pipeline_mode = #tpu.pipeline_mode<synchronous>, transform_indices = @transform_4, window_bounds = array<i64: 1, 512>}, {pipeline_mode = #tpu.pipeline_mode<synchronous>, transform_indices = @transform_5, window_bounds = array<i64: 1, 512>}, {transform_indices = @transform_6, window_bounds = array<i64: 1, 1>}, {transform_indices = @transform_7, window_bounds = array<i64: 128, 1>}]} {
    %c0 = arith.constant 0 : index
    %c0_0 = arith.constant 0 : index
    %0 = vector.load %arg1[%c0, %c0_0] : memref<128x32xbf16, #tpu.memory_space<vmem>>, vector<128x32xbf16>
    %c0_1 = arith.constant 0 : index
    %c0_2 = arith.constant 0 : index
    %1 = vector.load %arg2[%c0_1, %c0_2] : memref<32x1024xbf16, #tpu.memory_space<vmem>>, vector<32x1024xbf16>
    %cst = arith.constant dense<0.000000e+00> : vector<128x1024xf32>
    %2 = tpu.matmul %0, %1, %cst {dimension_numbers = #tpu.dot_dimension_numbers<[1], [0], [0], [1], [0, 0, 1, 1], [], []>} : vector<128x32xbf16>, vector<32x1024xbf16>, vector<128x1024xf32> -> vector<128x1024xf32>
    %c0_3 = arith.constant 0 : index
    %c0_4 = arith.constant 0 : index
    %3 = vector.load %arg3[%c0_3, %c0_4] : memref<1x1024xf32, #tpu.memory_space<vmem>>, vector<1x1024xf32>
    %4 = vector.broadcast %3 : vector<1x1024xf32> to vector<128x1024xf32>
    %5 = arith.addf %2, %4 : vector<128x1024xf32>
    %cst_5 = arith.constant 0.000000e+00 : f32
    %6 = vector.broadcast %cst_5 : f32 to vector<128x1024xf32>
    %7 = arith.maximumf %5, %6 : vector<128x1024xf32>
    %8 = arith.truncf %7 : vector<128x1024xf32> to vector<128x1024xbf16>
    %c0_6 = arith.constant 0 : index
    %c0_7 = arith.constant 0 : index
    %9 = vector.load %arg4[%c0_6, %c0_7] : memref<1024x512xbf16, #tpu.memory_space<vmem>>, vector<1024x512xbf16>
    %cst_8 = arith.constant dense<0.000000e+00> : vector<128x512xf32>
    %10 = tpu.matmul %8, %9, %cst_8 {dimension_numbers = #tpu.dot_dimension_numbers<[1], [0], [0], [1], [0, 0, 1, 1], [], []>} : vector<128x1024xbf16>, vector<1024x512xbf16>, vector<128x512xf32> -> vector<128x512xf32>
    %c0_9 = arith.constant 0 : index
    %c0_10 = arith.constant 0 : index
    %11 = vector.load %arg5[%c0_9, %c0_10] : memref<1x512xf32, #tpu.memory_space<vmem>>, vector<1x512xf32>
    %12 = vector.broadcast %11 : vector<1x512xf32> to vector<128x512xf32>
    %13 = arith.addf %10, %12 : vector<128x512xf32>
    %cst_11 = arith.constant 0.000000e+00 : f32
    %14 = vector.broadcast %cst_11 : f32 to vector<128x512xf32>
    %15 = arith.maximumf %13, %14 : vector<128x512xf32>
    %c0_12 = arith.constant 0 : index
    %c0_13 = arith.constant 0 : index
    %16 = vector.load %arg6[%c0_12, %c0_13] : memref<1x512xf32, #tpu.memory_space<vmem>>, vector<1x512xf32>
    %17 = vector.broadcast %16 : vector<1x512xf32> to vector<128x512xf32>
    %18 = arith.mulf %15, %17 : vector<128x512xf32>
    %cst_14 = arith.constant dense<0.000000e+00> : vector<128xf32>
    %19 = vector.multi_reduction <add>, %18, %cst_14 [1] : vector<128x512xf32> to vector<128xf32>
    %20 = vector.shape_cast %19 : vector<128xf32> to vector<128x1xf32>
    %c0_15 = arith.constant 0 : index
    %c0_16 = arith.constant 0 : index
    %21 = memref.load %arg7[%c0_15, %c0_16] : memref<1x1xf32, #tpu.memory_space<smem>>
    %22 = vector.broadcast %21 : f32 to vector<128x1xf32>
    %23 = arith.addf %20, %22 : vector<128x1xf32>
    %c0_17 = arith.constant 0 : index
    %c0_18 = arith.constant 0 : index
    %24 = vector.load %arg8[%c0_17, %c0_18] : memref<128x1xf32, #tpu.memory_space<vmem>>, vector<128x1xf32>
    tpu.vector_store %arg8[%c0_17, %c0_18], %23 {strides = array<i32>} : memref<128x1xf32, #tpu.memory_space<vmem>>, vector<128x1xf32>,
    return
  }
  func.func @transform_0(%arg0: i32) -> (i32, i32) {
    %c0_i32 = arith.constant 0 : i32
    %c0_i32_0 = arith.constant 0 : i32
    return %arg0, %c0_i32 : i32, i32
  }
  func.func @transform_1(%arg0: i32) -> (i32, i32) {
    %c0_i32 = arith.constant 0 : i32
    %c0_i32_0 = arith.constant 0 : i32
    %c0_i32_1 = arith.constant 0 : i32
    return %c0_i32, %c0_i32_0 : i32, i32
  }
  func.func @transform_2(%arg0: i32) -> (i32, i32) {
    %c0_i32 = arith.constant 0 : i32
    %c0_i32_0 = arith.constant 0 : i32
    %c0_i32_1 = arith.constant 0 : i32
    return %c0_i32, %c0_i32_0 : i32, i32
  }
  func.func @transform_3(%arg0: i32) -> (i32, i32) {
    %c0_i32 = arith.constant 0 : i32
    %c0_i32_0 = arith.constant 0 : i32
    %c0_i32_1 = arith.constant 0 : i32
    return %c0_i32, %c0_i32_0 : i32, i32
  }
  func.func @transform_4(%arg0: i32) -> (i32, i32) {
    %c0_i32 = arith.constant 0 : i32
    %c0_i32_0 = arith.constant 0 : i32
    %c0_i32_1 = arith.constant 0 : i32
    return %c0_i32, %c0_i32_0 : i32, i32
  }
  func.func @transform_5(%arg0: i32) -> (i32, i32) {
    %c0_i32 = arith.constant 0 : i32
    %c0_i32_0 = arith.constant 0 : i32
    %c0_i32_1 = arith.constant 0 : i32
    return %c0_i32, %c0_i32_0 : i32, i32
  }
  func.func @transform_6(%arg0: i32) -> (i32, i32) {
    %c0_i32 = arith.constant 0 : i32
    %c0_i32_0 = arith.constant 0 : i32
    %c0_i32_1 = arith.constant 0 : i32
    return %c0_i32, %c0_i32_0 : i32, i32
  }
  func.func @transform_7(%arg0: i32) -> (i32, i32) {
    %c0_i32 = arith.constant 0 : i32
    %c0_i32_0 = arith.constant 0 : i32
    return %arg0, %c0_i32 : i32, i32
  }
}

</mosaic_0001>

<llo_original>
// kernel: tpu_custom_call.1
$region0: #{tpu_custom_call.1}
  #allocation0 [shape = 'u32[]', space=smem, size = 0x4, offset = 0x4, fixed_abs, tag = 'smem constant byte address 0x4 - core index']
  #allocation1 [shape = 'u32[144,128]{1,0:T(1,128)}', space=vmem, size = 0x12000, scoped, tag = 'internal scratch']
  #allocation2 [shape = 'f32[1,1]{1,0:T(1,128)S(6)}', space=smem, size = 0x200, scoped, tag = 'scoped memory for tpu_custom_call.1']
  %s0 = inlined_call_operand.vmem [shape: bf16[256,32], index: 0, kind: input, shape index: {}]
  %s1 = inlined_call_operand.vmem [shape: bf16[32,1024], index: 1, kind: input, shape index: {}]
  %s2 = inlined_call_operand.vmem [shape: f32[1,1024], index: 2, kind: input, shape index: {}]
  %s3 = inlined_call_operand.hbm [shape: bf16[1024,512], index: 3, kind: input, shape index: {}]
  %s4 = inlined_call_operand.vmem [shape: f32[1,512], index: 4, kind: input, shape index: {}]
  %s5 = inlined_call_operand.vmem [shape: f32[1,512], index: 5, kind: input, shape index: {}]
  %s6 = inlined_call_operand.<no memory space> [shape: f32[1,1], index: 6, kind: input, shape index: {}]
  %s7 = inlined_call_operand.vmem [shape: f32[256,1], index: 7, kind: output, shape index: {}]
  %s8 = sld [smem:[#allocation0]]
  $region65: #{tpu_custom_call.1} parent=0
    _
  %s10 = ssub.s32 1, %s8
  %s11 = scalar_select 0, %s10, %s8
  %12 = sst [smem:[#allocation2]] %s6
  $region1: #{tpu_custom_call.1} parent=0
    #allocation3 [shape = 'u8[1048576]{0}', space=vmem, size = 0x100000, scoped, tag = 'input window, operand 3, single buffered']
    #allocation4 [shape = 's32[2]{0}', space=sflag, size = 0x8, scoped, tag = 'scoped memory for tpu_custom_call.1']
    %13 = vsyncpa [#allocation4], 0
    loop: start=0, step=1, limit=4
    $region2: #{tpu_custom_call.1} parent=1 // loop_pre_header
      _
    $region3: #{tpu_custom_call.1} parent=1 // loop_header
      %s15 = sphi 0, %s19
      %p16 = scmp.ge.s32.totalorder %s15, 4
      %s25 = sphi 0, %s27
      %s28 = sphi 0, %s25
      %s29 = sphi 0, %s28
      %s45 = sphi 0, %s29
      %s49 = sphi 0, %s49
      %s51 = sphi 0, %s49
      %s52 = sphi 0, %s51
      %s66 = sphi 0, %s52
      %s70 = sphi 0, %s70
      %s72 = sphi 0, %s70
      %s73 = sphi 0, %s72
      %s87 = sphi 0, %s73
      %s91 = sphi 0, %s91
      %s93 = sphi 0, %s91
      %s94 = sphi 0, %s93
      %s108 = sphi 0, %s94
      %s112 = sphi 0, %s112
      %s114 = sphi 0, %s112
      %s115 = sphi 0, %s114
      %s129 = sphi 0, %s115
      %s133 = sphi 0, %s133
      %s135 = sphi 0, %s133
      %s136 = sphi 0, %s135
      %s150 = sphi 0, %s136
      %s154 = sphi 0, %s154
      %s156 = sphi 0, %s154
      %s157 = sphi 0, %s156
      %s171 = sphi 0, %s157
      %s177 = sphi 0, %s179
      %s180 = sphi 0, %s177
      %s181 = sphi 0, %s180
      %s197 = sphi 0, %s181
    $region4: #{tpu_custom_call.1} parent=1 // loop_header_branch
      %18 = sbr.rel (%p16) target = $region8
    $region5: #{tpu_custom_call.1} parent=1 // loop_body
      %s20 = ssub.s32 %s15, 1
      %s21 = ssub.s32 %s15, 2
      %s22 = sadd.s32 %s15, 1
      %s23 = ssub.s32 %s15, %s22
      %p24 = scmp.eq.s32.totalorder %s23, 0
      %s26 = sadd.s32 %s25, 1
      %s27 = scalar_select %p24, %s25, %s26
      %p30 = pneg %p24
      %p31 = scmp.eq.s32.totalorder %s15, 1
      %p32 = por %p30, %p31
      %p33 = scmp.ne.s32.totalorder %s25, %s28
      %p34 = scmp.eq.s32.totalorder %s15, 0
      %p35 = por %p33, %p34
      %p36 = scmp.ne.s32.totalorder %s25, %s28
      %p37 = scmp.eq.s32.totalorder %s20, 1
      %p38 = por %p36, %p37
      %p39 = scmp.ne.s32.totalorder %s28, %s29
      %p40 = scmp.eq.s32.totalorder %s20, 0
      %p41 = por %p39, %p40
      %p42 = scmp.ne.s32.totalorder %s28, %s29
      %p43 = scmp.eq.s32.totalorder %s21, 1
      %p44 = por %p42, %p43
      %p46 = scmp.ne.s32.totalorder %s29, %s45
      %p47 = scmp.eq.s32.totalorder %s21, 0
      %p48 = por %p46, %p47
      %s50 = sadd.s32 %s49, 1
      %p53 = scmp.eq.s32.totalorder %s15, 1
      %p54 = scmp.ne.s32.totalorder %s49, %s51
      %p55 = scmp.eq.s32.totalorder %s15, 0
      %p56 = por %p54, %p55
      %p57 = scmp.ne.s32.totalorder %s49, %s51
      %p58 = scmp.eq.s32.totalorder %s20, 1
      %p59 = por %p57, %p58
      %p60 = scmp.ne.s32.totalorder %s51, %s52
      %p61 = scmp.eq.s32.totalorder %s20, 0
      %p62 = por %p60, %p61
      %p63 = scmp.ne.s32.totalorder %s51, %s52
      %p64 = scmp.eq.s32.totalorder %s21, 1
      %p65 = por %p63, %p64
      %p67 = scmp.ne.s32.totalorder %s52, %s66
      %p68 = scmp.eq.s32.totalorder %s21, 0
      %p69 = por %p67, %p68
      %s71 = sadd.s32 %s70, 1
      %p74 = scmp.eq.s32.totalorder %s15, 1
      %p75 = scmp.ne.s32.totalorder %s70, %s72
      %p76 = scmp.eq.s32.totalorder %s15, 0
      %p77 = por %p75, %p76
      %p78 = scmp.ne.s32.totalorder %s70, %s72
      %p79 = scmp.eq.s32.totalorder %s20, 1
      %p80 = por %p78, %p79
      %p81 = scmp.ne.s32.totalorder %s72, %s73
      %p82 = scmp.eq.s32.totalorder %s20, 0
      %p83 = por %p81, %p82
      %p84 = scmp.ne.s32.totalorder %s72, %s73
      %p85 = scmp.eq.s32.totalorder %s21, 1
      %p86 = por %p84, %p85
      %p88 = scmp.ne.s32.totalorder %s73, %s87
      %p89 = scmp.eq.s32.totalorder %s21, 0
      %p90 = por %p88, %p89
      %s92 = sadd.s32 %s91, 1
      %p95 = scmp.eq.s32.totalorder %s15, 1
      %p96 = scmp.ne.s32.totalorder %s91, %s93
      %p97 = scmp.eq.s32.totalorder %s15, 0
      %p98 = por %p96, %p97
      %p99 = scmp.ne.s32.totalorder %s91, %s93
      %p100 = scmp.eq.s32.totalorder %s20, 1
      %p101 = por %p99, %p100
      %p102 = scmp.ne.s32.totalorder %s93, %s94
      %p103 = scmp.eq.s32.totalorder %s20, 0
      %p104 = por %p102, %p103
      %p105 = scmp.ne.s32.totalorder %s93, %s94
      %p106 = scmp.eq.s32.totalorder %s21, 1
      %p107 = por %p105, %p106
      %p109 = scmp.ne.s32.totalorder %s94, %s108
      %p110 = scmp.eq.s32.totalorder %s21, 0
      %p111 = por %p109, %p110
      %s113 = sadd.s32 %s112, 1
      %p116 = scmp.eq.s32.totalorder %s15, 1
      %p117 = scmp.ne.s32.totalorder %s112, %s114
      %p118 = scmp.eq.s32.totalorder %s15, 0
      %p119 = por %p117, %p118
      %p120 = scmp.ne.s32.totalorder %s112, %s114
      %p121 = scmp.eq.s32.totalorder %s20, 1
      %p122 = por %p120, %p121
      %p123 = scmp.ne.s32.totalorder %s114, %s115
      %p124 = scmp.eq.s32.totalorder %s20, 0
      %p125 = por %p123, %p124
      %p126 = scmp.ne.s32.totalorder %s114, %s115
      %p127 = scmp.eq.s32.totalorder %s21, 1
      %p128 = por %p126, %p127
      %p130 = scmp.ne.s32.totalorder %s115, %s129
      %p131 = scmp.eq.s32.totalorder %s21, 0
      %p132 = por %p130, %p131
      %s134 = sadd.s32 %s133, 1
      %p137 = scmp.eq.s32.totalorder %s15, 1
      %p138 = scmp.ne.s32.totalorder %s133, %s135
      %p139 = scmp.eq.s32.totalorder %s15, 0
      %p140 = por %p138, %p139
      %p141 = scmp.ne.s32.totalorder %s133, %s135
      %p142 = scmp.eq.s32.totalorder %s20, 1
      %p143 = por %p141, %p142
      %p144 = scmp.ne.s32.totalorder %s135, %s136
      %p145 = scmp.eq.s32.totalorder %s20, 0
      %p146 = por %p144, %p145
      %p147 = scmp.ne.s32.totalorder %s135, %s136
      %p148 = scmp.eq.s32.totalorder %s21, 1
      %p149 = por %p147, %p148
      %p151 = scmp.ne.s32.totalorder %s136, %s150
      %p152 = scmp.eq.s32.totalorder %s21, 0
      %p153 = por %p151, %p152
      %s155 = sadd.s32 %s154, 1
      %p158 = scmp.eq.s32.totalorder %s15, 1
      %p159 = scmp.ne.s32.totalorder %s154, %s156
      %p160 = scmp.eq.s32.totalorder %s15, 0
      %p161 = por %p159, %p160
      %p162 = scmp.ne.s32.totalorder %s154, %s156
      %p163 = scmp.eq.s32.totalorder %s20, 1
      %p164 = por %p162, %p163
      %p165 = scmp.ne.s32.totalorder %s156, %s157
      %p166 = scmp.eq.s32.totalorder %s20, 0
      %p167 = por %p165, %p166
      %p168 = scmp.ne.s32.totalorder %s156, %s157
      %p169 = scmp.eq.s32.totalorder %s21, 1
      %p170 = por %p168, %p169
      %p172 = scmp.ne.s32.totalorder %s157, %s171
      %p173 = scmp.eq.s32.totalorder %s21, 0
      %p174 = por %p172, %p173
      %s175 = ssub.s32 %s15, %s22
      %p176 = scmp.eq.s32.totalorder %s175, 0
      %s178 = sadd.s32 %s177, 1
      %s179 = scalar_select %p176, %s177, %s178
      %p182 = pneg %p176
      %p183 = scmp.eq.s32.totalorder %s15, 1
      %p184 = por %p182, %p183
      %p185 = scmp.ne.s32.totalorder %s177, %s180
      %p186 = scmp.eq.s32.totalorder %s15, 0
      %p187 = por %p185, %p186
      %p188 = scmp.ne.s32.totalorder %s177, %s180
      %p189 = scmp.eq.s32.totalorder %s20, 1
      %p190 = por %p188, %p189
      %p191 = scmp.ne.s32.totalorder %s180, %s181
      %p192 = scmp.eq.s32.totalorder %s20, 0
      %p193 = por %p191, %p192
      %p194 = scmp.ne.s32.totalorder %s180, %s181
      %p195 = scmp.eq.s32.totalorder %s21, 1
      %p196 = por %p194, %p195
      %p198 = scmp.ne.s32.totalorder %s181, %s197
      %p199 = scmp.eq.s32.totalorder %s21, 0
      %p200 = por %p198, %p199
      %p201 = scmp.le.s32.totalorder 1, %s15
      %p202 = scmp.lt.s32.totalorder %s15, 3
      %p203 = pnand %p201, %p202
      %p204 = pneg %p203
      // Predicated region
      $region9: #{tpu_custom_call.1} parent=5 // pred_check
        _
      $region10: #{tpu_custom_call.1} parent=5 // pred_check_branch
        %206 = sbr.rel (%p203) target = $region12
      $region11: #{tpu_custom_call.1} parent=5 // pred_region
        %s207 = ssub.s32 %s15, 1
        // Predicated region
        $region13: #{tpu_custom_call.1} parent=11 // pred_check
          %p208 = pneg %p62
        $region14: #{tpu_custom_call.1} parent=11 // pred_check_branch
          %210 = sbr.rel (%p208) target = $region16
        $region15: #{tpu_custom_call.1} parent=11 // pred_region
          _
        $region16: #{tpu_custom_call.1} parent=11 // pred_fallthru
          _
        // Predicated region
        $region17: #{tpu_custom_call.1} parent=11 // pred_check
          %p211 = pneg %p83
        $region18: #{tpu_custom_call.1} parent=11 // pred_check_branch
          %213 = sbr.rel (%p211) target = $region20
        $region19: #{tpu_custom_call.1} parent=11 // pred_region
          _
        $region20: #{tpu_custom_call.1} parent=11 // pred_fallthru
          _
        // Predicated region
        $region21: #{tpu_custom_call.1} parent=11 // pred_check
          %p214 = pneg %p104
        $region22: #{tpu_custom_call.1} parent=11 // pred_check_branch
          %216 = sbr.rel (%p214) target = $region24
        $region23: #{tpu_custom_call.1} parent=11 // pred_region
          %s218 = ssub.s32 32768, 32768
          %219 = vsyncadd [#allocation4], %s218
          %s220 = sshll.u32 [#allocation3], 4
          %s221 = int_to_ptr.vmem [resolvable:$true] %s220
          %226 = dma.hbm_to_vmem [thread:$0]  %s3, 32768, %s221, [#allocation4], 256, 256, 16
        $region24: #{tpu_custom_call.1} parent=11 // pred_fallthru
          _
        // Predicated region
        $region25: #{tpu_custom_call.1} parent=11 // pred_check
          %p227 = pneg %p125
        $region26: #{tpu_custom_call.1} parent=11 // pred_check_branch
          %229 = sbr.rel (%p227) target = $region28
        $region27: #{tpu_custom_call.1} parent=11 // pred_region
          _
        $region28: #{tpu_custom_call.1} parent=11 // pred_fallthru
          _
        // Predicated region
        $region29: #{tpu_custom_call.1} parent=11 // pred_check
          %p230 = pneg %p146
        $region30: #{tpu_custom_call.1} parent=11 // pred_check_branch
          %232 = sbr.rel (%p230) target = $region32
        $region31: #{tpu_custom_call.1} parent=11 // pred_region
          _
        $region32: #{tpu_custom_call.1} parent=11 // pred_fallthru
          _
        // Predicated region
        $region33: #{tpu_custom_call.1} parent=11 // pred_check
          %p233 = pneg %p167
        $region34: #{tpu_custom_call.1} parent=11 // pred_check_branch
          %235 = sbr.rel (%p233) target = $region36
        $region35: #{tpu_custom_call.1} parent=11 // pred_region
          _
        $region36: #{tpu_custom_call.1} parent=11 // pred_fallthru
          _
      $region12: #{tpu_custom_call.1} parent=5 // pred_fallthru
        _
      %p236 = scmp.lt.s32.totalorder %s15, 2
      // Predicated region
      $region37: #{tpu_custom_call.1} parent=5 // pred_check
        %p237 = pneg %p236
      $region38: #{tpu_custom_call.1} parent=5 // pred_check_branch
        %239 = sbr.rel (%p237) target = $region40
      $region39: #{tpu_custom_call.1} parent=5 // pred_region
        // Predicated region
        $region41: #{tpu_custom_call.1} parent=39 // pred_check
          %p240 = pneg %p35
        $region42: #{tpu_custom_call.1} parent=39 // pred_check_branch
          %242 = sbr.rel (%p240) target = $region44
        $region43: #{tpu_custom_call.1} parent=39 // pred_region
          %s243 = smul.u32 16, %s15
          %p244 = scmp.lt.s32.totalorder %s243, 31
          %s245 = scalar_select %p244, %s243, 31
          %s246 = smul.addr %s245, 4
          %s247 = scalar_lea.vmem %s0, %s246
          %s248 = smul.u32 16, %s15
        $region44: #{tpu_custom_call.1} parent=39 // pred_fallthru
          _
      $region40: #{tpu_custom_call.1} parent=5 // pred_fallthru
        _
      %p249 = scmp.le.s32.totalorder 1, %s15
      %p250 = scmp.lt.s32.totalorder %s15, 3
      %p251 = pnand %p249, %p250
      %p252 = pneg %p251
      // Predicated region
      $region45: #{tpu_custom_call.1} parent=5 // pred_check
        _
      $region46: #{tpu_custom_call.1} parent=5 // pred_check_branch
        %254 = sbr.rel (%p251) target = $region48
      $region47: #{tpu_custom_call.1} parent=5 // pred_region
        %s255 = ssub.s32 %s15, 1
        // Predicated region
        $region49: #{tpu_custom_call.1} parent=47 // pred_check
          %p256 = pneg %p104
        $region50: #{tpu_custom_call.1} parent=47 // pred_check_branch
          %258 = sbr.rel (%p256) target = $region52
        $region51: #{tpu_custom_call.1} parent=47 // pred_region
          %259 = dma.done [#allocation4], 32768
        $region52: #{tpu_custom_call.1} parent=47 // pred_fallthru
          _
        %s260 = smul.u32 16, %s20
        %p261 = scmp.lt.s32.totalorder %s260, 31
        %s262 = scalar_select %p261, %s260, 31
        %s263 = smul.addr %s262, 4
        %s264 = scalar_lea.vmem %s0, %s263
        %p265 = pneg %p41
        %p266 = pneg %p38
        %p267 = pneg %p62
        %p268 = pneg %p59
        %p269 = pneg %p83
        %p270 = pneg %p80
        %p271 = pneg %p104
        %p272 = pneg %p101
        %p273 = pneg %p125
        %p274 = pneg %p122
        %p275 = pneg %p146
        %p276 = pneg %p143
        %p277 = pneg %p167
        %p278 = pneg %p164
        %p279 = pneg %p193
        %p280 = pneg %p190
        %s281 = smul.u32 16, %s20
        %p282 = scmp.lt.s32.totalorder %s281, 31
        %s283 = scalar_select %p282, %s281, 31
        %s284 = smul.addr %s283, 8
        %s285 = scalar_lea.vmem %s7, %s284
        %s286 = smul.u32 16, %s20
        %p287 = scmp.lt.s32.totalorder %s286, 31
        %s288 = scalar_select %p287, %s286, 31
        %s289 = smul.addr %s288, 4
        %s290 = scalar_lea.vmem %s0, %s289
        %s291 = smul.u32 16, %s20
        %s292 = smul.u32 16, %s20
        %p293 = scmp.lt.s32.totalorder %s292, 31
        %s294 = scalar_select %p293, %s292, 31
        %s295 = smul.addr %s294, 8
        %s296 = scalar_lea.vmem %s7, %s295
        %s297 = smul.u32 16, %s20
        %v299 = vld [vmem:[%s290] sm:$0xf]
        %v300 = vld [vmem:[%s290 + $0x4] sm:$0xf]
        %v301 = vld [vmem:[%s290 + $0x8] sm:$0xf]
        %v302 = vld [vmem:[%s290 + $0xc] sm:$0xf]
        %v303 = vld [vmem:[%s290 + $0x10] sm:$0xf]
        %v304 = vld [vmem:[%s290 + $0x14] sm:$0xf]
        %v305 = vld [vmem:[%s290 + $0x18] sm:$0xf]
        %v306 = vld [vmem:[%s290 + $0x1c] sm:$0xf]
        %v307 = vld [vmem:[%s290 + $0x20] sm:$0xf]
        %v308 = vld [vmem:[%s290 + $0x24] sm:$0xf]
        %v309 = vld [vmem:[%s290 + $0x28] sm:$0xf]
        %v310 = vld [vmem:[%s290 + $0x2c] sm:$0xf]
        %v311 = vld [vmem:[%s290 + $0x30] sm:$0xf]
        %v312 = vld [vmem:[%s290 + $0x34] sm:$0xf]
        %v313 = vld [vmem:[%s290 + $0x38] sm:$0xf]
        %v314 = vld [vmem:[%s290 + $0x3c] sm:$0xf]
        %v315 = vld [vmem:[%s1] sm:$0xff]
        %v316 = vld [vmem:[%s1 + $0x8] sm:$0xff]
        %v317 = vld [vmem:[%s1 + $0x10] sm:$0xff]
        %v318 = vld [vmem:[%s1 + $0x18] sm:$0xff]
        %v319 = vld [vmem:[%s1 + $0x20] sm:$0xff]
        %v320 = vld [vmem:[%s1 + $0x28] sm:$0xff]
        %v321 = vld [vmem:[%s1 + $0x30] sm:$0xff]
        %v322 = vld [vmem:[%s1 + $0x38] sm:$0xff]
        %v323 = vld [vmem:[%s1 + $0x40] sm:$0xff]
        %v324 = vld [vmem:[%s1 + $0x48] sm:$0xff]
        %v325 = vld [vmem:[%s1 + $0x50] sm:$0xff]
        %v326 = vld [vmem:[%s1 + $0x58] sm:$0xff]
        %v327 = vld [vmem:[%s1 + $0x60] sm:$0xff]
        %v328 = vld [vmem:[%s1 + $0x68] sm:$0xff]
        %v329 = vld [vmem:[%s1 + $0x70] sm:$0xff]
        %v330 = vld [vmem:[%s1 + $0x78] sm:$0xff]
        %v331 = vld [vmem:[%s2] sm:$0xff]
        %v333 = vlaneseq
        %v334 = vshrl.u32 %v333, 7
        %v335 = vsub.s32 0, %v334
        %v336 = vrot.slane %v331, %v335
        %v337 = vlaneseq
        %v338 = vshrl.u32 %v337, 7
        %v339 = vsub.s32 1, %v338
        %v340 = vrot.slane %v331, %v339
        %v341 = vlaneseq
        %v342 = vshrl.u32 %v341, 7
        %v343 = vsub.s32 2, %v342
        %v344 = vrot.slane %v331, %v343
        %v345 = vlaneseq
        %v346 = vshrl.u32 %v345, 7
        %v347 = vsub.s32 3, %v346
        %v348 = vrot.slane %v331, %v347
        %v349 = vlaneseq
        %v350 = vshrl.u32 %v349, 7
        %v351 = vsub.s32 4, %v350
        %v352 = vrot.slane %v331, %v351
        %v353 = vlaneseq
        %v354 = vshrl.u32 %v353, 7
        %v355 = vsub.s32 5, %v354
        %v356 = vrot.slane %v331, %v355
        %v357 = vlaneseq
        %v358 = vshrl.u32 %v357, 7
        %v359 = vsub.s32 6, %v358
        %v360 = vrot.slane %v331, %v359
        %v361 = vlaneseq
        %v362 = vshrl.u32 %v361, 7
        %v363 = vsub.s32 7, %v362
        %v364 = vrot.slane %v331, %v363
        %v389 = vunpack.c.l.b16 %v299
        %v390 = vunpack.c.l.b16 %v300
        %v391 = vunpack.c.l.b16 %v301
        %v392 = vunpack.c.l.b16 %v302
        %v393 = vunpack.c.l.b16 %v303
        %v394 = vunpack.c.l.b16 %v304
        %v395 = vunpack.c.l.b16 %v305
        %v396 = vunpack.c.l.b16 %v306
        %v397 = vunpack.c.l.b16 %v307
        %v398 = vunpack.c.l.b16 %v308
        %v399 = vunpack.c.l.b16 %v309
        %v400 = vunpack.c.l.b16 %v310
        %v401 = vunpack.c.l.b16 %v311
        %v402 = vunpack.c.l.b16 %v312
        %v403 = vunpack.c.l.b16 %v313
        %v404 = vunpack.c.l.b16 %v314
        %v405 = vpack.c.b16 %v390, %v389
        %v406 = vpack.c.b16 %v392, %v391
        %v407 = vpack.c.b16 %v394, %v393
        %v408 = vpack.c.b16 %v396, %v395
        %v409 = vpack.c.b16 %v398, %v397
        %v410 = vpack.c.b16 %v400, %v399
        %v411 = vpack.c.b16 %v402, %v401
        %v412 = vpack.c.b16 %v404, %v403
        %v429 = vunpack.c.l.b16 %v315
        %v430 = vunpack.c.h.b16 %v315
        %v431 = vunpack.c.l.b16 %v316
        %v432 = vunpack.c.h.b16 %v316
        %v433 = vunpack.c.l.b16 %v317
        %v434 = vunpack.c.h.b16 %v317
        %v435 = vunpack.c.l.b16 %v318
        %v436 = vunpack.c.h.b16 %v318
        %v437 = vunpack.c.l.b16 %v319
        %v438 = vunpack.c.h.b16 %v319
        %v439 = vunpack.c.l.b16 %v320
        %v440 = vunpack.c.h.b16 %v320
        %v441 = vunpack.c.l.b16 %v321
        %v442 = vunpack.c.h.b16 %v321
        %v443 = vunpack.c.l.b16 %v322
        %v444 = vunpack.c.h.b16 %v322
        %v445 = vunpack.c.l.b16 %v323
        %v446 = vunpack.c.h.b16 %v323
        %v447 = vunpack.c.l.b16 %v324
        %v448 = vunpack.c.h.b16 %v324
        %v449 = vunpack.c.l.b16 %v325
        %v450 = vunpack.c.h.b16 %v325
        %v451 = vunpack.c.l.b16 %v326
        %v452 = vunpack.c.h.b16 %v326
        %v453 = vunpack.c.l.b16 %v327
        %v454 = vunpack.c.h.b16 %v327
        %v455 = vunpack.c.l.b16 %v328
        %v456 = vunpack.c.h.b16 %v328
        %v457 = vunpack.c.l.b16 %v329
        %v458 = vunpack.c.h.b16 %v329
        %v459 = vunpack.c.l.b16 %v330
        %v460 = vunpack.c.h.b16 %v330
        %v461 = vpack.c.b16 %v437, %v429
        %v462 = vpack.c.b16 %v438, %v430
        %v463 = vpack.c.b16 %v439, %v431
        %v464 = vpack.c.b16 %v440, %v432
        %v465 = vpack.c.b16 %v441, %v433
        %v466 = vpack.c.b16 %v442, %v434
        %v467 = vpack.c.b16 %v443, %v435
        %v468 = vpack.c.b16 %v444, %v436
        %v469 = vpack.c.b16 %v453, %v445
        %v470 = vpack.c.b16 %v454, %v446
        %v471 = vpack.c.b16 %v455, %v447
        %v472 = vpack.c.b16 %v456, %v448
        %v473 = vpack.c.b16 %v457, %v449
        %v474 = vpack.c.b16 %v458, %v450
        %v475 = vpack.c.b16 %v459, %v451
        %v476 = vpack.c.b16 %v460, %v452
        %vm493 = vcmask 261120
        %v495 = vsel %vm493, %v405, 0
        %v498 = vsel %vm493, %v406, 0
        %v501 = vsel %vm493, %v407, 0
        %v504 = vsel %vm493, %v408, 0
        %v507 = vsel %vm493, %v409, 0
        %v510 = vsel %vm493, %v410, 0
        %v513 = vsel %vm493, %v411, 0
        %v516 = vsel %vm493, %v412, 0
        %518 = vmatprep.subr.bf16.mxu0 %v462
        %519 = vmatpush1.bf16.msra.mxu0 %v461
        %520 = vmatprep.subr.bf16.mxu0 %v470
        %521 = vmatpush1.bf16.msra.mxu0 %v469
        %522 = vmatprep.subr.bf16.mxu0 0
        %523 = vmatpush1.bf16.msra.mxu0 0
        %524 = vmatprep.subr.bf16.mxu0 0
        %525 = vmatpush1.bf16.msra.mxu0 0
        %526 = vmatprep.subr.bf16.mxu0 0
        %527 = vmatpush1.bf16.msra.mxu0 0
        %528 = vmatprep.subr.bf16.mxu0 0
        %529 = vmatpush1.bf16.msra.mxu0 0
        %530 = vmatprep.subr.bf16.mxu0 0
        %531 = vmatpush1.bf16.msra.mxu0 0
        %532 = vmatprep.subr.bf16.mxu0 0
        %533 = vmatpush1.bf16.msra.mxu0 0
        %534 = vmatprep.subr.bf16.mxu0 0
        %535 = vmatpush1.bf16.msra.mxu0 0
        %536 = vmatprep.subr.bf16.mxu0 0
        %537 = vmatpush1.bf16.msra.mxu0 0
        %538 = vmatprep.subr.bf16.mxu0 0
        %539 = vmatpush1.bf16.msra.mxu0 0
        %540 = vmatprep.subr.bf16.mxu0 0
        %541 = vmatpush1.bf16.msra.mxu0 0
        %542 = vmatprep.subr.bf16.mxu0 0
        %543 = vmatpush1.bf16.msra.mxu0 0
        %544 = vmatprep.subr.bf16.mxu0 0
        %545 = vmatpush1.bf16.msra.mxu0 0
        %546 = vmatprep.subr.bf16.mxu0 0
        %547 = vmatpush1.bf16.msra.mxu0 0
        %548 = vmatprep.subr.bf16.mxu0 0
        %549 = vmatpush1.bf16.msra.mxu0 0
        %550 = vmatprep.mubr.bf16.mxu0 0
        %551 = vmatmul.mubr.bf16.gmra.mrb[0].mxu0 %v495
        %v552 = vpop.f32.mrb[0].mxu0
        %v553 = vadd.f32 %v336, %v552
        %v554 = vpop.f32.mrb[0].mxu0
        %v555 = vadd.f32 %v340, %v554
        %v556 = vpop.f32.mrb[0].mxu0
        %v557 = vadd.f32 %v336, %v556
        %v558 = vpop.f32.mrb[0].mxu0
        %v559 = vadd.f32 %v340, %v558
        %560 = vmatprep.mubr.bf16.mxu0 0
        %561 = vmatmul.mubr.bf16.gmra.mrb[0].mxu0 %v498
        %v562 = vpop.f32.mrb[0].mxu0
        %v563 = vadd.f32 %v336, %v562
        %v564 = vpop.f32.mrb[0].mxu0
        %v565 = vadd.f32 %v340, %v564
        %v566 = vpop.f32.mrb[0].mxu0
        %v567 = vadd.f32 %v336, %v566
        %v568 = vpop.f32.mrb[0].mxu0
        %v569 = vadd.f32 %v340, %v568
        %570 = vmatprep.mubr.bf16.mxu0 0
        %571 = vmatmul.mubr.bf16.gmra.mrb[0].mxu0 %v501
        %v572 = vpop.f32.mrb[0].mxu0
        %v573 = vadd.f32 %v336, %v572
        %v574 = vpop.f32.mrb[0].mxu0
        %v575 = vadd.f32 %v340, %v574
        %v576 = vpop.f32.mrb[0].mxu0
        %v577 = vadd.f32 %v336, %v576
        %v578 = vpop.f32.mrb[0].mxu0
        %v579 = vadd.f32 %v340, %v578
        %580 = vmatprep.mubr.bf16.mxu0 0
        %581 = vmatmul.mubr.bf16.gmra.mrb[0].mxu0 %v504
        %v582 = vpop.f32.mrb[0].mxu0
        %v583 = vadd.f32 %v336, %v582
        %v584 = vpop.f32.mrb[0].mxu0
        %v585 = vadd.f32 %v340, %v584
        %v586 = vpop.f32.mrb[0].mxu0
        %v587 = vadd.f32 %v336, %v586
        %v588 = vpop.f32.mrb[0].mxu0
        %v589 = vadd.f32 %v340, %v588
        %590 = vmatprep.mubr.bf16.mxu0 0
        %591 = vmatmul.mubr.bf16.gmra.mrb[0].mxu0 %v507
        %v592 = vpop.f32.mrb[0].mxu0
        %v593 = vadd.f32 %v336, %v592
        %v594 = vpop.f32.mrb[0].mxu0
        %v595 = vadd.f32 %v340, %v594
        %v596 = vpop.f32.mrb[0].mxu0
        %v597 = vadd.f32 %v336, %v596
        %v598 = vpop.f32.mrb[0].mxu0
        %v599 = vadd.f32 %v340, %v598
        %600 = vmatprep.mubr.bf16.mxu0 0
        %601 = vmatmul.mubr.bf16.gmra.mrb[0].mxu0 %v510
        %v602 = vpop.f32.mrb[0].mxu0
        %v603 = vadd.f32 %v336, %v602
        %v604 = vpop.f32.mrb[0].mxu0
        %v605 = vadd.f32 %v340, %v604
        %v606 = vpop.f32.mrb[0].mxu0
        %v607 = vadd.f32 %v336, %v606
        %v608 = vpop.f32.mrb[0].mxu0
        %v609 = vadd.f32 %v340, %v608
        %610 = vmatprep.mubr.bf16.mxu0 0
        %611 = vmatmul.mubr.bf16.gmra.mrb[0].mxu0 %v513
        %v612 = vpop.f32.mrb[0].mxu0
        %v613 = vadd.f32 %v336, %v612
        %v614 = vpop.f32.mrb[0].mxu0
        %v615 = vadd.f32 %v340, %v614
        %v616 = vpop.f32.mrb[0].mxu0
        %v617 = vadd.f32 %v336, %v616
        %v618 = vpop.f32.mrb[0].mxu0
        %v619 = vadd.f32 %v340, %v618
        %620 = vmatprep.mubr.bf16.mxu0 0
        %621 = vmatmul.mubr.bf16.gmra.mrb[0].mxu0 %v516
        %v622 = vpop.f32.mrb[0].mxu0
        %v623 = vadd.f32 %v336, %v622
        %v624 = vpop.f32.mrb[0].mxu0
        %v625 = vadd.f32 %v340, %v624
        %v626 = vpop.f32.mrb[0].mxu0
        %v627 = vadd.f32 %v336, %v626
        %v628 = vpop.f32.mrb[0].mxu0
        %v629 = vadd.f32 %v340, %v628
        %630 = vdwg.mxu0
        %631 = vmatprep.subr.bf16.mxu0 %v464
        %632 = vmatpush1.bf16.msra.mxu0 %v463
        %633 = vmatprep.subr.bf16.mxu0 %v472
        %634 = vmatpush1.bf16.msra.mxu0 %v471
        %635 = vmatprep.subr.bf16.mxu0 0
        %636 = vmatpush1.bf16.msra.mxu0 0
        %637 = vmatprep.subr.bf16.mxu0 0
        %638 = vmatpush1.bf16.msra.mxu0 0
        %639 = vmatprep.subr.bf16.mxu0 0
        %640 = vmatpush1.bf16.msra.mxu0 0
        %641 = vmatprep.subr.bf16.mxu0 0
        %642 = vmatpush1.bf16.msra.mxu0 0
        %643 = vmatprep.subr.bf16.mxu0 0
        %644 = vmatpush1.bf16.msra.mxu0 0
        %645 = vmatprep.subr.bf16.mxu0 0
        %646 = vmatpush1.bf16.msra.mxu0 0
        %647 = vmatprep.subr.bf16.mxu0 0
        %648 = vmatpush1.bf16.msra.mxu0 0
        %649 = vmatprep.subr.bf16.mxu0 0
        %650 = vmatpush1.bf16.msra.mxu0 0
        %651 = vmatprep.subr.bf16.mxu0 0
        %652 = vmatpush1.bf16.msra.mxu0 0
        %653 = vmatprep.subr.bf16.mxu0 0
        %654 = vmatpush1.bf16.msra.mxu0 0
        %655 = vmatprep.subr.bf16.mxu0 0
        %656 = vmatpush1.bf16.msra.mxu0 0
        %657 = vmatprep.subr.bf16.mxu0 0
        %658 = vmatpush1.bf16.msra.mxu0 0
        %659 = vmatprep.subr.bf16.mxu0 0
        %660 = vmatpush1.bf16.msra.mxu0 0
        %661 = vmatprep.subr.bf16.mxu0 0
        %662 = vmatpush1.bf16.msra.mxu0 0
        %663 = vmatprep.mubr.bf16.mxu0 0
        %664 = vmatmul.mubr.bf16.gmra.mrb[0].mxu0 %v495
        %v665 = vpop.f32.mrb[0].mxu0
        %v666 = vadd.f32 %v344, %v665
        %v667 = vpop.f32.mrb[0].mxu0
        %v668 = vadd.f32 %v348, %v667
        %v669 = vpop.f32.mrb[0].mxu0
        %v670 = vadd.f32 %v344, %v669
        %v671 = vpop.f32.mrb[0].mxu0
        %v672 = vadd.f32 %v348, %v671
        %673 = vmatprep.mubr.bf16.mxu0 0
        %674 = vmatmul.mubr.bf16.gmra.mrb[0].mxu0 %v498
        %v675 = vpop.f32.mrb[0].mxu0
        %v676 = vadd.f32 %v344, %v675
        %v677 = vpop.f32.mrb[0].mxu0
        %v678 = vadd.f32 %v348, %v677
        %v679 = vpop.f32.mrb[0].mxu0
        %v680 = vadd.f32 %v344, %v679
        %v681 = vpop.f32.mrb[0].mxu0
        %v682 = vadd.f32 %v348, %v681
        %683 = vmatprep.mubr.bf16.mxu0 0
        %684 = vmatmul.mubr.bf16.gmra.mrb[0].mxu0 %v501
        %v685 = vpop.f32.mrb[0].mxu0
        %v686 = vadd.f32 %v344, %v685
        %v687 = vpop.f32.mrb[0].mxu0
        %v688 = vadd.f32 %v348, %v687
        %v689 = vpop.f32.mrb[0].mxu0
        %v690 = vadd.f32 %v344, %v689
        %v691 = vpop.f32.mrb[0].mxu0
        %v692 = vadd.f32 %v348, %v691
        %693 = vmatprep.mubr.bf16.mxu0 0
        %694 = vmatmul.mubr.bf16.gmra.mrb[0].mxu0 %v504
        %v695 = vpop.f32.mrb[0].mxu0
        %v696 = vadd.f32 %v344, %v695
        %v697 = vpop.f32.mrb[0].mxu0
        %v698 = vadd.f32 %v348, %v697
        %v699 = vpop.f32.mrb[0].mxu0
        %v700 = vadd.f32 %v344, %v699
        %v701 = vpop.f32.mrb[0].mxu0
        %v702 = vadd.f32 %v348, %v701
        %703 = vmatprep.mubr.bf16.mxu0 0
        %704 = vmatmul.mubr.bf16.gmra.mrb[0].mxu0 %v507
        %v705 = vpop.f32.mrb[0].mxu0
        %v706 = vadd.f32 %v344, %v705
        %v707 = vpop.f32.mrb[0].mxu0
        %v708 = vadd.f32 %v348, %v707
        %v709 = vpop.f32.mrb[0].mxu0
        %v710 = vadd.f32 %v344, %v709
        %v711 = vpop.f32.mrb[0].mxu0
        %v712 = vadd.f32 %v348, %v711
        %713 = vmatprep.mubr.bf16.mxu0 0
        %714 = vmatmul.mubr.bf16.gmra.mrb[0].mxu0 %v510
        %v715 = vpop.f32.mrb[0].mxu0
        %v716 = vadd.f32 %v344, %v715
        %v717 = vpop.f32.mrb[0].mxu0
        %v718 = vadd.f32 %v348, %v717
        %v719 = vpop.f32.mrb[0].mxu0
        %v720 = vadd.f32 %v344, %v719
        %v721 = vpop.f32.mrb[0].mxu0
        %v722 = vadd.f32 %v348, %v721
        %723 = vmatprep.mubr.bf16.mxu0 0
        %724 = vmatmul.mubr.bf16.gmra.mrb[0].mxu0 %v513
        %v725 = vpop.f32.mrb[0].mxu0
        %v726 = vadd.f32 %v344, %v725
        %v727 = vpop.f32.mrb[0].mxu0
        %v728 = vadd.f32 %v348, %v727
        %v729 = vpop.f32.mrb[0].mxu0
        %v730 = vadd.f32 %v344, %v729
        %v731 = vpop.f32.mrb[0].mxu0
        %v732 = vadd.f32 %v348, %v731
        %733 = vmatprep.mubr.bf16.mxu0 0
        %734 = vmatmul.mubr.bf16.gmra.mrb[0].mxu0 %v516
        %v735 = vpop.f32.mrb[0].mxu0
        %v736 = vadd.f32 %v344, %v735
        %v737 = vpop.f32.mrb[0].mxu0
        %v738 = vadd.f32 %v348, %v737
        %v739 = vpop.f32.mrb[0].mxu0
        %v740 = vadd.f32 %v344, %v739
        %v741 = vpop.f32.mrb[0].mxu0
        %v742 = vadd.f32 %v348, %v741
        %743 = vdwg.mxu0
        %744 = vmatprep.subr.bf16.mxu0 %v466
        %745 = vmatpush1.bf16.msra.mxu0 %v465
        %746 = vmatprep.subr.bf16.mxu0 %v474
        %747 = vmatpush1.bf16.msra.mxu0 %v473
        %748 = vmatprep.subr.bf16.mxu0 0
        %749 = vmatpush1.bf16.msra.mxu0 0
        %750 = vmatprep.subr.bf16.mxu0 0
        %751 = vmatpush1.bf16.msra.mxu0 0
        %752 = vmatprep.subr.bf16.mxu0 0
        %753 = vmatpush1.bf16.msra.mxu0 0
        %754 = vmatprep.subr.bf16.mxu0 0
        %755 = vmatpush1.bf16.msra.mxu0 0
        %756 = vmatprep.subr.bf16.mxu0 0
        %757 = vmatpush1.bf16.msra.mxu0 0
        %758 = vmatprep.subr.bf16.mxu0 0
        %759 = vmatpush1.bf16.msra.mxu0 0
        %760 = vmatprep.subr.bf16.mxu0 0
        %761 = vmatpush1.bf16.msra.mxu0 0
        %762 = vmatprep.subr.bf16.mxu0 0
        %763 = vmatpush1.bf16.msra.mxu0 0
        %764 = vmatprep.subr.bf16.mxu0 0
        %765 = vmatpush1.bf16.msra.mxu0 0
        %766 = vmatprep.subr.bf16.mxu0 0
        %767 = vmatpush1.bf16.msra.mxu0 0
        %768 = vmatprep.subr.bf16.mxu0 0
        %769 = vmatpush1.bf16.msra.mxu0 0
        %770 = vmatprep.subr.bf16.mxu0 0
        %771 = vmatpush1.bf16.msra.mxu0 0
        %772 = vmatprep.subr.bf16.mxu0 0
        %773 = vmatpush1.bf16.msra.mxu0 0
        %774 = vmatprep.subr.bf16.mxu0 0
        %775 = vmatpush1.bf16.msra.mxu0 0
        %776 = vmatprep.mubr.bf16.mxu0 0
        %777 = vmatmul.mubr.bf16.gmra.mrb[0].mxu0 %v495
        %v778 = vpop.f32.mrb[0].mxu0
        %v779 = vadd.f32 %v352, %v778
        %v780 = vpop.f32.mrb[0].mxu0
        %v781 = vadd.f32 %v356, %v780
        %v782 = vpop.f32.mrb[0].mxu0
        %v783 = vadd.f32 %v352, %v782
        %v784 = vpop.f32.mrb[0].mxu0
        %v785 = vadd.f32 %v356, %v784
        %786 = vmatprep.mubr.bf16.mxu0 0
        %787 = vmatmul.mubr.bf16.gmra.mrb[0].mxu0 %v498
        %v788 = vpop.f32.mrb[0].mxu0
        %v789 = vadd.f32 %v352, %v788
        %v790 = vpop.f32.mrb[0].mxu0
        %v791 = vadd.f32 %v356, %v790
        %v792 = vpop.f32.mrb[0].mxu0
        %v793 = vadd.f32 %v352, %v792
        %v794 = vpop.f32.mrb[0].mxu0
        %v795 = vadd.f32 %v356, %v794
        %796 = vmatprep.mubr.bf16.mxu0 0
        %797 = vmatmul.mubr.bf16.gmra.mrb[0].mxu0 %v501
        %v798 = vpop.f32.mrb[0].mxu0
        %v799 = vadd.f32 %v352, %v798
        %v800 = vpop.f32.mrb[0].mxu0
        %v801 = vadd.f32 %v356, %v800
        %v802 = vpop.f32.mrb[0].mxu0
        %v803 = vadd.f32 %v352, %v802
        %v804 = vpop.f32.mrb[0].mxu0
        %v805 = vadd.f32 %v356, %v804
        %806 = vmatprep.mubr.bf16.mxu0 0
        %807 = vmatmul.mubr.bf16.gmra.mrb[0].mxu0 %v504
        %v808 = vpop.f32.mrb[0].mxu0
        %v809 = vadd.f32 %v352, %v808
        %v810 = vpop.f32.mrb[0].mxu0
        %v811 = vadd.f32 %v356, %v810
        %v812 = vpop.f32.mrb[0].mxu0
        %v813 = vadd.f32 %v352, %v812
        %v814 = vpop.f32.mrb[0].mxu0
        %v815 = vadd.f32 %v356, %v814
        %816 = vmatprep.mubr.bf16.mxu0 0
        %817 = vmatmul.mubr.bf16.gmra.mrb[0].mxu0 %v507
        %v818 = vpop.f32.mrb[0].mxu0
        %v819 = vadd.f32 %v352, %v818
        %v820 = vpop.f32.mrb[0].mxu0
        %v821 = vadd.f32 %v356, %v820
        %v822 = vpop.f32.mrb[0].mxu0
        %v823 = vadd.f32 %v352, %v822
        %v824 = vpop.f32.mrb[0].mxu0
        %v825 = vadd.f32 %v356, %v824
        %826 = vmatprep.mubr.bf16.mxu0 0
        %827 = vmatmul.mubr.bf16.gmra.mrb[0].mxu0 %v510
        %v828 = vpop.f32.mrb[0].mxu0
        %v829 = vadd.f32 %v352, %v828
        %v830 = vpop.f32.mrb[0].mxu0
        %v831 = vadd.f32 %v356, %v830
        %v832 = vpop.f32.mrb[0].mxu0
        %v833 = vadd.f32 %v352, %v832
        %v834 = vpop.f32.mrb[0].mxu0
        %v835 = vadd.f32 %v356, %v834
        %836 = vmatprep.mubr.bf16.mxu0 0
        %837 = vmatmul.mubr.bf16.gmra.mrb[0].mxu0 %v513
        %v838 = vpop.f32.mrb[0].mxu0
        %v839 = vadd.f32 %v352, %v838
        %v840 = vpop.f32.mrb[0].mxu0
        %v841 = vadd.f32 %v356, %v840
        %v842 = vpop.f32.mrb[0].mxu0
        %v843 = vadd.f32 %v352, %v842
        %v844 = vpop.f32.mrb[0].mxu0
        %v845 = vadd.f32 %v356, %v844
        %846 = vmatprep.mubr.bf16.mxu0 0
        %847 = vmatmul.mubr.bf16.gmra.mrb[0].mxu0 %v516
        %v848 = vpop.f32.mrb[0].mxu0
        %v849 = vadd.f32 %v352, %v848
        %v850 = vpop.f32.mrb[0].mxu0
        %v851 = vadd.f32 %v356, %v850
        %v852 = vpop.f32.mrb[0].mxu0
        %v853 = vadd.f32 %v352, %v852
        %v854 = vpop.f32.mrb[0].mxu0
        %v855 = vadd.f32 %v356, %v854
        %856 = vdwg.mxu0
        %857 = vmatprep.subr.bf16.mxu0 %v468
        %858 = vmatpush1.bf16.msra.mxu0 %v467
        %859 = vmatprep.subr.bf16.mxu0 %v476
        %860 = vmatpush1.bf16.msra.mxu0 %v475
        %861 = vmatprep.subr.bf16.mxu0 0
        %862 = vmatpush1.bf16.msra.mxu0 0
        %863 = vmatprep.subr.bf16.mxu0 0
        %864 = vmatpush1.bf16.msra.mxu0 0
        %865 = vmatprep.subr.bf16.mxu0 0
        %866 = vmatpush1.bf16.msra.mxu0 0
        %867 = vmatprep.subr.bf16.mxu0 0
        %868 = vmatpush1.bf16.msra.mxu0 0
        %869 = vmatprep.subr.bf16.mxu0 0
        %870 = vmatpush1.bf16.msra.mxu0 0
        %871 = vmatprep.subr.bf16.mxu0 0
        %872 = vmatpush1.bf16.msra.mxu0 0
        %873 = vmatprep.subr.bf16.mxu0 0
        %874 = vmatpush1.bf16.msra.mxu0 0
        %875 = vmatprep.subr.bf16.mxu0 0
        %876 = vmatpush1.bf16.msra.mxu0 0
        %877 = vmatprep.subr.bf16.mxu0 0
        %878 = vmatpush1.bf16.msra.mxu0 0
        %879 = vmatprep.subr.bf16.mxu0 0
        %880 = vmatpush1.bf16.msra.mxu0 0
        %881 = vmatprep.subr.bf16.mxu0 0
        %882 = vmatpush1.bf16.msra.mxu0 0
        %883 = vmatprep.subr.bf16.mxu0 0
        %884 = vmatpush1.bf16.msra.mxu0 0
        %885 = vmatprep.subr.bf16.mxu0 0
        %886 = vmatpush1.bf16.msra.mxu0 0
        %887 = vmatprep.subr.bf16.mxu0 0
        %888 = vmatpush1.bf16.msra.mxu0 0
        %889 = vmatprep.mubr.bf16.mxu0 0
        %890 = vmatmul.mubr.bf16.gmra.mrb[0].mxu0 %v495
        %v891 = vpop.f32.mrb[0].mxu0
        %v892 = vadd.f32 %v360, %v891
        %v893 = vpop.f32.mrb[0].mxu0
        %v894 = vadd.f32 %v364, %v893
        %v895 = vpop.f32.mrb[0].mxu0
        %v896 = vadd.f32 %v360, %v895
        %v897 = vpop.f32.mrb[0].mxu0
        %v898 = vadd.f32 %v364, %v897
        %899 = vmatprep.mubr.bf16.mxu0 0
        %900 = vmatmul.mubr.bf16.gmra.mrb[0].mxu0 %v498
        %v901 = vpop.f32.mrb[0].mxu0
        %v902 = vadd.f32 %v360, %v901
        %v903 = vpop.f32.mrb[0].mxu0
        %v904 = vadd.f32 %v364, %v903
        %v905 = vpop.f32.mrb[0].mxu0
        %v906 = vadd.f32 %v360, %v905
        %v907 = vpop.f32.mrb[0].mxu0
        %v908 = vadd.f32 %v364, %v907
        %909 = vmatprep.mubr.bf16.mxu0 0
        %910 = vmatmul.mubr.bf16.gmra.mrb[0].mxu0 %v501
        %v911 = vpop.f32.mrb[0].mxu0
        %v912 = vadd.f32 %v360, %v911
        %v913 = vpop.f32.mrb[0].mxu0
        %v914 = vadd.f32 %v364, %v913
        %v915 = vpop.f32.mrb[0].mxu0
        %v916 = vadd.f32 %v360, %v915
        %v917 = vpop.f32.mrb[0].mxu0
        %v918 = vadd.f32 %v364, %v917
        %919 = vmatprep.mubr.bf16.mxu0 0
        %920 = vmatmul.mubr.bf16.gmra.mrb[0].mxu0 %v504
        %v921 = vpop.f32.mrb[0].mxu0
        %v922 = vadd.f32 %v360, %v921
        %v923 = vpop.f32.mrb[0].mxu0
        %v924 = vadd.f32 %v364, %v923
        %v925 = vpop.f32.mrb[0].mxu0
        %v926 = vadd.f32 %v360, %v925
        %v927 = vpop.f32.mrb[0].mxu0
        %v928 = vadd.f32 %v364, %v927
        %929 = vmatprep.mubr.bf16.mxu0 0
        %930 = vmatmul.mubr.bf16.gmra.mrb[0].mxu0 %v507
        %v931 = vpop.f32.mrb[0].mxu0
        %v932 = vadd.f32 %v360, %v931
        %v933 = vpop.f32.mrb[0].mxu0
        %v934 = vadd.f32 %v364, %v933
        %v935 = vpop.f32.mrb[0].mxu0
        %v936 = vadd.f32 %v360, %v935
        %v937 = vpop.f32.mrb[0].mxu0
        %v938 = vadd.f32 %v364, %v937
        %939 = vmatprep.mubr.bf16.mxu0 0
        %940 = vmatmul.mubr.bf16.gmra.mrb[0].mxu0 %v510
        %v941 = vpop.f32.mrb[0].mxu0
        %v942 = vadd.f32 %v360, %v941
        %v943 = vpop.f32.mrb[0].mxu0
        %v944 = vadd.f32 %v364, %v943
        %v945 = vpop.f32.mrb[0].mxu0
        %v946 = vadd.f32 %v360, %v945
        %v947 = vpop.f32.mrb[0].mxu0
        %v948 = vadd.f32 %v364, %v947
        %949 = vmatprep.mubr.bf16.mxu0 0
        %950 = vmatmul.mubr.bf16.gmra.mrb[0].mxu0 %v513
        %v951 = vpop.f32.mrb[0].mxu0
        %v952 = vadd.f32 %v360, %v951
        %v953 = vpop.f32.mrb[0].mxu0
        %v954 = vadd.f32 %v364, %v953
        %v955 = vpop.f32.mrb[0].mxu0
        %v956 = vadd.f32 %v360, %v955
        %v957 = vpop.f32.mrb[0].mxu0
        %v958 = vadd.f32 %v364, %v957
        %959 = vmatprep.mubr.bf16.mxu0 0
        %960 = vmatmul.mubr.bf16.gmra.mrb[0].mxu0 %v516
        %v961 = vpop.f32.mrb[0].mxu0
        %v962 = vadd.f32 %v360, %v961
        %v963 = vpop.f32.mrb[0].mxu0
        %v964 = vadd.f32 %v364, %v963
        %v965 = vpop.f32.mrb[0].mxu0
        %v966 = vadd.f32 %v360, %v965
        %v967 = vpop.f32.mrb[0].mxu0
        %v968 = vadd.f32 %v364, %v967
        %969 = vdwg.mxu0
        %v970 = vmax.f32 %v553, 0.0
        %v971 = vmax.f32 %v555, 0.0
        %v972 = vmax.f32 %v666, 0.0
        %v973 = vmax.f32 %v668, 0.0
        %v974 = vmax.f32 %v779, 0.0
        %v975 = vmax.f32 %v781, 0.0
        %v976 = vmax.f32 %v892, 0.0
        %v977 = vmax.f32 %v894, 0.0
        %v978 = vmax.f32 %v557, 0.0
        %v979 = vmax.f32 %v559, 0.0
        %v980 = vmax.f32 %v670, 0.0
        %v981 = vmax.f32 %v672, 0.0
        %v982 = vmax.f32 %v783, 0.0
        %v983 = vmax.f32 %v785, 0.0
        %v984 = vmax.f32 %v896, 0.0
        %v985 = vmax.f32 %v898, 0.0
        %v986 = vmax.f32 %v563, 0.0
        %v987 = vmax.f32 %v565, 0.0
        %v988 = vmax.f32 %v676, 0.0
        %v989 = vmax.f32 %v678, 0.0
        %v990 = vmax.f32 %v789, 0.0
        %v991 = vmax.f32 %v791, 0.0
        %v992 = vmax.f32 %v902, 0.0
        %v993 = vmax.f32 %v904, 0.0
        %v994 = vmax.f32 %v567, 0.0
        %v995 = vmax.f32 %v569, 0.0
        %v996 = vmax.f32 %v680, 0.0
        %v997 = vmax.f32 %v682, 0.0
        %v998 = vmax.f32 %v793, 0.0
        %v999 = vmax.f32 %v795, 0.0
        %v1000 = vmax.f32 %v906, 0.0
        %v1001 = vmax.f32 %v908, 0.0
        %v1002 = vmax.f32 %v573, 0.0
        %v1003 = vmax.f32 %v575, 0.0
        %v1004 = vmax.f32 %v686, 0.0
        %v1005 = vmax.f32 %v688, 0.0
        %v1006 = vmax.f32 %v799, 0.0
        %v1007 = vmax.f32 %v801, 0.0
        %v1008 = vmax.f32 %v912, 0.0
        %v1009 = vmax.f32 %v914, 0.0
        %v1010 = vmax.f32 %v577, 0.0
        %v1011 = vmax.f32 %v579, 0.0
        %v1012 = vmax.f32 %v690, 0.0
        %v1013 = vmax.f32 %v692, 0.0
        %v1014 = vmax.f32 %v803, 0.0
        %v1015 = vmax.f32 %v805, 0.0
        %v1016 = vmax.f32 %v916, 0.0
        %v1017 = vmax.f32 %v918, 0.0
        %v1018 = vmax.f32 %v583, 0.0
        %v1019 = vmax.f32 %v585, 0.0
        %v1020 = vmax.f32 %v696, 0.0
        %v1021 = vmax.f32 %v698, 0.0
        %v1022 = vmax.f32 %v809, 0.0
        %v1023 = vmax.f32 %v811, 0.0
        %v1024 = vmax.f32 %v922, 0.0
        %v1025 = vmax.f32 %v924, 0.0
        %v1026 = vmax.f32 %v587, 0.0
        %v1027 = vmax.f32 %v589, 0.0
        %v1028 = vmax.f32 %v700, 0.0
        %v1029 = vmax.f32 %v702, 0.0
        %v1030 = vmax.f32 %v813, 0.0
        %v1031 = vmax.f32 %v815, 0.0
        %v1032 = vmax.f32 %v926, 0.0
        %v1033 = vmax.f32 %v928, 0.0
        %v1034 = vmax.f32 %v593, 0.0
        %v1035 = vmax.f32 %v595, 0.0
        %v1036 = vmax.f32 %v706, 0.0
        %v1037 = vmax.f32 %v708, 0.0
        %v1038 = vmax.f32 %v819, 0.0
        %v1039 = vmax.f32 %v821, 0.0
        %v1040 = vmax.f32 %v932, 0.0
        %v1041 = vmax.f32 %v934, 0.0
        %v1042 = vmax.f32 %v597, 0.0
        %v1043 = vmax.f32 %v599, 0.0
        %v1044 = vmax.f32 %v710, 0.0
        %v1045 = vmax.f32 %v712, 0.0
        %v1046 = vmax.f32 %v823, 0.0
        %v1047 = vmax.f32 %v825, 0.0
        %v1048 = vmax.f32 %v936, 0.0
        %v1049 = vmax.f32 %v938, 0.0
        %v1050 = vmax.f32 %v603, 0.0
        %v1051 = vmax.f32 %v605, 0.0
        %v1052 = vmax.f32 %v716, 0.0
        %v1053 = vmax.f32 %v718, 0.0
        %v1054 = vmax.f32 %v829, 0.0
        %v1055 = vmax.f32 %v831, 0.0
        %v1056 = vmax.f32 %v942, 0.0
        %v1057 = vmax.f32 %v944, 0.0
        %v1058 = vmax.f32 %v607, 0.0
        %v1059 = vmax.f32 %v609, 0.0
        %v1060 = vmax.f32 %v720, 0.0
        %v1061 = vmax.f32 %v722, 0.0
        %v1062 = vmax.f32 %v833, 0.0
        %v1063 = vmax.f32 %v835, 0.0
        %v1064 = vmax.f32 %v946, 0.0
        %v1065 = vmax.f32 %v948, 0.0
        %v1066 = vmax.f32 %v613, 0.0
        %v1067 = vmax.f32 %v615, 0.0
        %v1068 = vmax.f32 %v726, 0.0
        %v1069 = vmax.f32 %v728, 0.0
        %v1070 = vmax.f32 %v839, 0.0
        %v1071 = vmax.f32 %v841, 0.0
        %v1072 = vmax.f32 %v952, 0.0
        %v1073 = vmax.f32 %v954, 0.0
        %v1074 = vmax.f32 %v617, 0.0
        %v1075 = vmax.f32 %v619, 0.0
        %v1076 = vmax.f32 %v730, 0.0
        %v1077 = vmax.f32 %v732, 0.0
        %v1078 = vmax.f32 %v843, 0.0
        %v1079 = vmax.f32 %v845, 0.0
        %v1080 = vmax.f32 %v956, 0.0
        %v1081 = vmax.f32 %v958, 0.0
        %v1082 = vmax.f32 %v623, 0.0
        %v1083 = vmax.f32 %v625, 0.0
        %v1084 = vmax.f32 %v736, 0.0
        %v1085 = vmax.f32 %v738, 0.0
        %v1086 = vmax.f32 %v849, 0.0
        %v1087 = vmax.f32 %v851, 0.0
        %v1088 = vmax.f32 %v962, 0.0
        %v1089 = vmax.f32 %v964, 0.0
        %v1090 = vmax.f32 %v627, 0.0
        %v1091 = vmax.f32 %v629, 0.0
        %v1092 = vmax.f32 %v740, 0.0
        %v1093 = vmax.f32 %v742, 0.0
        %v1094 = vmax.f32 %v853, 0.0
        %v1095 = vmax.f32 %v855, 0.0
        %v1096 = vmax.f32 %v966, 0.0
        %v1097 = vmax.f32 %v968, 0.0
        %v1098 = vpack.c.bf16 %v978, %v970
        %v1099 = vpack.c.bf16 %v979, %v971
        %v1100 = vpack.c.bf16 %v980, %v972
        %v1101 = vpack.c.bf16 %v981, %v973
        %v1102 = vpack.c.bf16 %v982, %v974
        %v1103 = vpack.c.bf16 %v983, %v975
        %v1104 = vpack.c.bf16 %v984, %v976
        %v1105 = vpack.c.bf16 %v985, %v977
        %v1106 = vpack.c.bf16 %v994, %v986
        %v1107 = vpack.c.bf16 %v995, %v987
        %v1108 = vpack.c.bf16 %v996, %v988
        %v1109 = vpack.c.bf16 %v997, %v989
        %v1110 = vpack.c.bf16 %v998, %v990
        %v1111 = vpack.c.bf16 %v999, %v991
        %v1112 = vpack.c.bf16 %v1000, %v992
        %v1113 = vpack.c.bf16 %v1001, %v993
        %v1114 = vpack.c.bf16 %v1010, %v1002
        %v1115 = vpack.c.bf16 %v1011, %v1003
        %v1116 = vpack.c.bf16 %v1012, %v1004
        %v1117 = vpack.c.bf16 %v1013, %v1005
        %v1118 = vpack.c.bf16 %v1014, %v1006
        %v1119 = vpack.c.bf16 %v1015, %v1007
        %v1120 = vpack.c.bf16 %v1016, %v1008
        %v1121 = vpack.c.bf16 %v1017, %v1009
        %v1122 = vpack.c.bf16 %v1026, %v1018
        %v1123 = vpack.c.bf16 %v1027, %v1019
        %v1124 = vpack.c.bf16 %v1028, %v1020
        %v1125 = vpack.c.bf16 %v1029, %v1021
        %v1126 = vpack.c.bf16 %v1030, %v1022
        %v1127 = vpack.c.bf16 %v1031, %v1023
        %v1128 = vpack.c.bf16 %v1032, %v1024
        %v1129 = vpack.c.bf16 %v1033, %v1025
        %v1130 = vpack.c.bf16 %v1042, %v1034
        %v1131 = vpack.c.bf16 %v1043, %v1035
        %v1132 = vpack.c.bf16 %v1044, %v1036
        %v1133 = vpack.c.bf16 %v1045, %v1037
        %v1134 = vpack.c.bf16 %v1046, %v1038
        %v1135 = vpack.c.bf16 %v1047, %v1039
        %v1136 = vpack.c.bf16 %v1048, %v1040
        %v1137 = vpack.c.bf16 %v1049, %v1041
        %v1138 = vpack.c.bf16 %v1058, %v1050
        %v1139 = vpack.c.bf16 %v1059, %v1051
        %v1140 = vpack.c.bf16 %v1060, %v1052
        %v1141 = vpack.c.bf16 %v1061, %v1053
        %v1142 = vpack.c.bf16 %v1062, %v1054
        %v1143 = vpack.c.bf16 %v1063, %v1055
        %v1144 = vpack.c.bf16 %v1064, %v1056
        %v1145 = vpack.c.bf16 %v1065, %v1057
        %v1146 = vpack.c.bf16 %v1074, %v1066
        %v1147 = vpack.c.bf16 %v1075, %v1067
        %v1148 = vpack.c.bf16 %v1076, %v1068
        %v1149 = vpack.c.bf16 %v1077, %v1069
        %v1150 = vpack.c.bf16 %v1078, %v1070
        %v1151 = vpack.c.bf16 %v1079, %v1071
        %v1152 = vpack.c.bf16 %v1080, %v1072
        %v1153 = vpack.c.bf16 %v1081, %v1073
        %v1154 = vpack.c.bf16 %v1090, %v1082
        %v1155 = vpack.c.bf16 %v1091, %v1083
        %v1156 = vpack.c.bf16 %v1092, %v1084
        %v1157 = vpack.c.bf16 %v1093, %v1085
        %v1158 = vpack.c.bf16 %v1094, %v1086
        %v1159 = vpack.c.bf16 %v1095, %v1087
        %v1160 = vpack.c.bf16 %v1096, %v1088
        %v1161 = vpack.c.bf16 %v1097, %v1089
        %v1162 = vld [vmem:[#allocation3] sm:$0xff]
        %v1163 = vld [vmem:[#allocation3 + $0x8] sm:$0xff]
        %v1164 = vld [vmem:[#allocation3 + $0x10] sm:$0xff]
        %v1165 = vld [vmem:[#allocation3 + $0x18] sm:$0xff]
        %v1166 = vld [vmem:[#allocation3 + $0x20] sm:$0xff]
        %v1167 = vld [vmem:[#allocation3 + $0x28] sm:$0xff]
        %v1168 = vld [vmem:[#allocation3 + $0x30] sm:$0xff]
        %v1169 = vld [vmem:[#allocation3 + $0x38] sm:$0xff]
        %v1170 = vld [vmem:[#allocation3 + $0x40] sm:$0xff]
        %v1171 = vld [vmem:[#allocation3 + $0x48] sm:$0xff]
        %v1172 = vld [vmem:[#allocation3 + $0x50] sm:$0xff]
        %v1173 = vld [vmem:[#allocation3 + $0x58] sm:$0xff]
        %v1174 = vld [vmem:[#allocation3 + $0x60] sm:$0xff]
        %v1175 = vld [vmem:[#allocation3 + $0x68] sm:$0xff]
        %v1176 = vld [vmem:[#allocation3 + $0x70] sm:$0xff]
        %v1177 = vld [vmem:[#allocation3 + $0x78] sm:$0xff]
        %v1178 = vld [vmem:[#allocation3 + $0x80] sm:$0xff]
        %v1179 = vld [vmem:[#allocation3 + $0x88] sm:$0xff]
        %v1180 = vld [vmem:[#allocation3 + $0x90] sm:$0xff]
        %v1181 = vld [vmem:[#allocation3 + $0x98] sm:$0xff]
        %v1182 = vld [vmem:[#allocation3 + $0xa0] sm:$0xff]
        %v1183 = vld [vmem:[#allocation3 + $0xa8] sm:$0xff]
        %v1184 = vld [vmem:[#allocation3 + $0xb0] sm:$0xff]
        %v1185 = vld [vmem:[#allocation3 + $0xb8] sm:$0xff]
        %v1186 = vld [vmem:[#allocation3 + $0xc0] sm:$0xff]
        %v1187 = vld [vmem:[#allocation3 + $0xc8] sm:$0xff]
        %v1188 = vld [vmem:[#allocation3 + $0xd0] sm:$0xff]
        %v1189 = vld [vmem:[#allocation3 + $0xd8] sm:$0xff]
        %v1190 = vld [vmem:[#allocation3 + $0xe0] sm:$0xff]
        %v1191 = vld [vmem:[#allocation3 + $0xe8] sm:$0xff]
        %v1192 = vld [vmem:[#allocation3 + $0xf0] sm:$0xff]
        %v1193 = vld [vmem:[#allocation3 + $0xf8] sm:$0xff]
        %v1194 = vld [vmem:[#allocation3 + $0x100] sm:$0xff]
        %v1195 = vld [vmem:[#allocation3 + $0x108] sm:$0xff]
        %v1196 = vld [vmem:[#allocation3 + $0x110] sm:$0xff]
        %v1197 = vld [vmem:[#allocation3 + $0x118] sm:$0xff]
        %v1198 = vld [vmem:[#allocation3 + $0x120] sm:$0xff]
        %v1199 = vld [vmem:[#allocation3 + $0x128] sm:$0xff]
        %v1200 = vld [vmem:[#allocation3 + $0x130] sm:$0xff]
        %v1201 = vld [vmem:[#allocation3 + $0x138] sm:$0xff]
        %v1202 = vld [vmem:[#allocation3 + $0x140] sm:$0xff]
        %v1203 = vld [vmem:[#allocation3 + $0x148] sm:$0xff]
        %v1204 = vld [vmem:[#allocation3 + $0x150] sm:$0xff]
        %v1205 = vld [vmem:[#allocation3 + $0x158] sm:$0xff]
        %v1206 = vld [vmem:[#allocation3 + $0x160] sm:$0xff]
        %v1207 = vld [vmem:[#allocation3 + $0x168] sm:$0xff]
        %v1208 = vld [vmem:[#allocation3 + $0x170] sm:$0xff]
        %v1209 = vld [vmem:[#allocation3 + $0x178] sm:$0xff]
        %v1210 = vld [vmem:[#allocation3 + $0x180] sm:$0xff]
        %v1211 = vld [vmem:[#allocation3 + $0x188] sm:$0xff]
        %v1212 = vld [vmem:[#allocation3 + $0x190] sm:$0xff]
        %v1213 = vld [vmem:[#allocation3 + $0x198] sm:$0xff]
        %v1214 = vld [vmem:[#allocation3 + $0x1a0] sm:$0xff]
        %v1215 = vld [vmem:[#allocation3 + $0x1a8] sm:$0xff]
        %v1216 = vld [vmem:[#allocation3 + $0x1b0] sm:$0xff]
        %v1217 = vld [vmem:[#allocation3 + $0x1b8] sm:$0xff]
        %v1218 = vld [vmem:[#allocation3 + $0x1c0] sm:$0xff]
        %v1219 = vld [vmem:[#allocation3 + $0x1c8] sm:$0xff]
        %v1220 = vld [vmem:[#allocation3 + $0x1d0] sm:$0xff]
        %v1221 = vld [vmem:[#allocation3 + $0x1d8] sm:$0xff]
        %v1222 = vld [vmem:[#allocation3 + $0x1e0] sm:$0xff]
        %v1223 = vld [vmem:[#allocation3 + $0x1e8] sm:$0xff]
        %v1224 = vld [vmem:[#allocation3 + $0x1f0] sm:$0xff]
        %v1225 = vld [vmem:[#allocation3 + $0x1f8] sm:$0xff]
        %v1226 = vld [vmem:[#allocation3 + $0x200] sm:$0xff]
        %v1227 = vld [vmem:[#allocation3 + $0x208] sm:$0xff]
        %v1228 = vld [vmem:[#allocation3 + $0x210] sm:$0xff]
        %v1229 = vld [vmem:[#allocation3 + $0x218] sm:$0xff]
        %v1230 = vld [vmem:[#allocation3 + $0x220] sm:$0xff]
        %v1231 = vld [vmem:[#allocation3 + $0x228] sm:$0xff]
        %v1232 = vld [vmem:[#allocation3 + $0x230] sm:$0xff]
        %v1233 = vld [vmem:[#allocation3 + $0x238] sm:$0xff]
        %v1234 = vld [vmem:[#allocation3 + $0x240] sm:$0xff]
        %v1235 = vld [vmem:[#allocation3 + $0x248] sm:$0xff]
        %v1236 = vld [vmem:[#allocation3 + $0x250] sm:$0xff]
        %v1237 = vld [vmem:[#allocation3 + $0x258] sm:$0xff]
        %v1238 = vld [vmem:[#allocation3 + $0x260] sm:$0xff]
        %v1239 = vld [vmem:[#allocation3 + $0x268] sm:$0xff]
        %v1240 = vld [vmem:[#allocation3 + $0x270] sm:$0xff]
        %v1241 = vld [vmem:[#allocation3 + $0x278] sm:$0xff]
        %v1242 = vld [vmem:[#allocation3 + $0x280] sm:$0xff]
        %v1243 = vld [vmem:[#allocation3 + $0x288] sm:$0xff]
        %v1244 = vld [vmem:[#allocation3 + $0x290] sm:$0xff]
        %v1245 = vld [vmem:[#allocation3 + $0x298] sm:$0xff]
        %v1246 = vld [vmem:[#allocation3 + $0x2a0] sm:$0xff]
        %v1247 = vld [vmem:[#allocation3 + $0x2a8] sm:$0xff]
        %v1248 = vld [vmem:[#allocation3 + $0x2b0] sm:$0xff]
        %v1249 = vld [vmem:[#allocation3 + $0x2b8] sm:$0xff]
        %v1250 = vld [vmem:[#allocation3 + $0x2c0] sm:$0xff]
        %v1251 = vld [vmem:[#allocation3 + $0x2c8] sm:$0xff]
        %v1252 = vld [vmem:[#allocation3 + $0x2d0] sm:$0xff]
        %v1253 = vld [vmem:[#allocation3 + $0x2d8] sm:$0xff]
        %v1254 = vld [vmem:[#allocation3 + $0x2e0] sm:$0xff]
        %v1255 = vld [vmem:[#allocation3 + $0x2e8] sm:$0xff]
        %v1256 = vld [vmem:[#allocation3 + $0x2f0] sm:$0xff]
        %v1257 = vld [vmem:[#allocation3 + $0x2f8] sm:$0xff]
        %v1258 = vld [vmem:[#allocation3 + $0x300] sm:$0xff]
        %v1259 = vld [vmem:[#allocation3 + $0x308] sm:$0xff]
        %v1260 = vld [vmem:[#allocation3 + $0x310] sm:$0xff]
        %v1261 = vld [vmem:[#allocation3 + $0x318] sm:$0xff]
        %v1262 = vld [vmem:[#allocation3 + $0x320] sm:$0xff]
        %v1263 = vld [vmem:[#allocation3 + $0x328] sm:$0xff]
        %v1264 = vld [vmem:[#allocation3 + $0x330] sm:$0xff]
        %v1265 = vld [vmem:[#allocation3 + $0x338] sm:$0xff]
        %v1266 = vld [vmem:[#allocation3 + $0x340] sm:$0xff]
        %v1267 = vld [vmem:[#allocation3 + $0x348] sm:$0xff]
        %v1268 = vld [vmem:[#allocation3 + $0x350] sm:$0xff]
        %v1269 = vld [vmem:[#allocation3 + $0x358] sm:$0xff]
        %v1270 = vld [vmem:[#allocation3 + $0x360] sm:$0xff]
        %v1271 = vld [vmem:[#allocation3 + $0x368] sm:$0xff]
        %v1272 = vld [vmem:[#allocation3 + $0x370] sm:$0xff]
        %v1273 = vld [vmem:[#allocation3 + $0x378] sm:$0xff]
        %v1274 = vld [vmem:[#allocation3 + $0x380] sm:$0xff]
        %v1275 = vld [vmem:[#allocation3 + $0x388] sm:$0xff]
        %v1276 = vld [vmem:[#allocation3 + $0x390] sm:$0xff]
        %v1277 = vld [vmem:[#allocation3 + $0x398] sm:$0xff]
        %v1278 = vld [vmem:[#allocation3 + $0x3a0] sm:$0xff]
        %v1279 = vld [vmem:[#allocation3 + $0x3a8] sm:$0xff]
        %v1280 = vld [vmem:[#allocation3 + $0x3b0] sm:$0xff]
        %v1281 = vld [vmem:[#allocation3 + $0x3b8] sm:$0xff]
        %v1282 = vld [vmem:[#allocation3 + $0x3c0] sm:$0xff]
        %v1283 = vld [vmem:[#allocation3 + $0x3c8] sm:$0xff]
        %v1284 = vld [vmem:[#allocation3 + $0x3d0] sm:$0xff]
        %v1285 = vld [vmem:[#allocation3 + $0x3d8] sm:$0xff]
        %v1286 = vld [vmem:[#allocation3 + $0x3e0] sm:$0xff]
        %v1287 = vld [vmem:[#allocation3 + $0x3e8] sm:$0xff]
        %v1288 = vld [vmem:[#allocation3 + $0x3f0] sm:$0xff]
        %v1289 = vld [vmem:[#allocation3 + $0x3f8] sm:$0xff]
        %v1290 = vld [vmem:[#allocation3 + $0x400] sm:$0xff]
        %v1291 = vld [vmem:[#allocation3 + $0x408] sm:$0xff]
        %v1292 = vld [vmem:[#allocation3 + $0x410] sm:$0xff]
        %v1293 = vld [vmem:[#allocation3 + $0x418] sm:$0xff]
        %v1294 = vld [vmem:[#allocation3 + $0x420] sm:$0xff]
        %v1295 = vld [vmem:[#allocation3 + $0x428] sm:$0xff]
        %v1296 = vld [vmem:[#allocation3 + $0x430] sm:$0xff]
        %v1297 = vld [vmem:[#allocation3 + $0x438] sm:$0xff]
        %v1298 = vld [vmem:[#allocation3 + $0x440] sm:$0xff]
        %v1299 = vld [vmem:[#allocation3 + $0x448] sm:$0xff]
        %v1300 = vld [vmem:[#allocation3 + $0x450] sm:$0xff]
        %v1301 = vld [vmem:[#allocation3 + $0x458] sm:$0xff]
        %v1302 = vld [vmem:[#allocation3 + $0x460] sm:$0xff]
        %v1303 = vld [vmem:[#allocation3 + $0x468] sm:$0xff]
        %v1304 = vld [vmem:[#allocation3 + $0x470] sm:$0xff]
        %v1305 = vld [vmem:[#allocation3 + $0x478] sm:$0xff]
        %v1306 = vld [vmem:[#allocation3 + $0x480] sm:$0xff]
        %v1307 = vld [vmem:[#allocation3 + $0x488] sm:$0xff]
        %v1308 = vld [vmem:[#allocation3 + $0x490] sm:$0xff]
        %v1309 = vld [vmem:[#allocation3 + $0x498] sm:$0xff]
        %v1310 = vld [vmem:[#allocation3 + $0x4a0] sm:$0xff]
        %v1311 = vld [vmem:[#allocation3 + $0x4a8] sm:$0xff]
        %v1312 = vld [vmem:[#allocation3 + $0x4b0] sm:$0xff]
        %v1313 = vld [vmem:[#allocation3 + $0x4b8] sm:$0xff]
        %v1314 = vld [vmem:[#allocation3 + $0x4c0] sm:$0xff]
        %v1315 = vld [vmem:[#allocation3 + $0x4c8] sm:$0xff]
        %v1316 = vld [vmem:[#allocation3 + $0x4d0] sm:$0xff]
        %v1317 = vld [vmem:[#allocation3 + $0x4d8] sm:$0xff]
        %v1318 = vld [vmem:[#allocation3 + $0x4e0] sm:$0xff]
        %v1319 = vld [vmem:[#allocation3 + $0x4e8] sm:$0xff]
        %v1320 = vld [vmem:[#allocation3 + $0x4f0] sm:$0xff]
        %v1321 = vld [vmem:[#allocation3 + $0x4f8] sm:$0xff]
        %v1322 = vld [vmem:[#allocation3 + $0x500] sm:$0xff]
        %v1323 = vld [vmem:[#allocation3 + $0x508] sm:$0xff]
        %v1324 = vld [vmem:[#allocation3 + $0x510] sm:$0xff]
        %v1325 = vld [vmem:[#allocation3 + $0x518] sm:$0xff]
        %v1326 = vld [vmem:[#allocation3 + $0x520] sm:$0xff]
        %v1327 = vld [vmem:[#allocation3 + $0x528] sm:$0xff]
        %v1328 = vld [vmem:[#allocation3 + $0x530] sm:$0xff]
        %v1329 = vld [vmem:[#allocation3 + $0x538] sm:$0xff]
        %v1330 = vld [vmem:[#allocation3 + $0x540] sm:$0xff]
        %v1331 = vld [vmem:[#allocation3 + $0x548] sm:$0xff]
        %v1332 = vld [vmem:[#allocation3 + $0x550] sm:$0xff]
        %v1333 = vld [vmem:[#allocation3 + $0x558] sm:$0xff]
        %v1334 = vld [vmem:[#allocation3 + $0x560] sm:$0xff]
        %v1335 = vld [vmem:[#allocation3 + $0x568] sm:$0xff]
        %v1336 = vld [vmem:[#allocation3 + $0x570] sm:$0xff]
        %v1337 = vld [vmem:[#allocation3 + $0x578] sm:$0xff]
        %v1338 = vld [vmem:[#allocation3 + $0x580] sm:$0xff]
        %v1339 = vld [vmem:[#allocation3 + $0x588] sm:$0xff]
        %v1340 = vld [vmem:[#allocation3 + $0x590] sm:$0xff]
        %v1341 = vld [vmem:[#allocation3 + $0x598] sm:$0xff]
        %v1342 = vld [vmem:[#allocation3 + $0x5a0] sm:$0xff]
        %v1343 = vld [vmem:[#allocation3 + $0x5a8] sm:$0xff]
        %v1344 = vld [vmem:[#allocation3 + $0x5b0] sm:$0xff]
        %v1345 = vld [vmem:[#allocation3 + $0x5b8] sm:$0xff]
        %v1346 = vld [vmem:[#allocation3 + $0x5c0] sm:$0xff]
        %v1347 = vld [vmem:[#allocation3 + $0x5c8] sm:$0xff]
        %v1348 = vld [vmem:[#allocation3 + $0x5d0] sm:$0xff]
        %v1349 = vld [vmem:[#allocation3 + $0x5d8] sm:$0xff]
        %v1350 = vld [vmem:[#allocation3 + $0x5e0] sm:$0xff]
        %v1351 = vld [vmem:[#allocation3 + $0x5e8] sm:$0xff]
        %v1352 = vld [vmem:[#allocation3 + $0x5f0] sm:$0xff]
        %v1353 = vld [vmem:[#allocation3 + $0x5f8] sm:$0xff]
        %v1354 = vld [vmem:[#allocation3 + $0x600] sm:$0xff]
        %v1355 = vld [vmem:[#allocation3 + $0x608] sm:$0xff]
        %v1356 = vld [vmem:[#allocation3 + $0x610] sm:$0xff]
        %v1357 = vld [vmem:[#allocation3 + $0x618] sm:$0xff]
        %v1358 = vld [vmem:[#allocation3 + $0x620] sm:$0xff]
        %v1359 = vld [vmem:[#allocation3 + $0x628] sm:$0xff]
        %v1360 = vld [vmem:[#allocation3 + $0x630] sm:$0xff]
        %v1361 = vld [vmem:[#allocation3 + $0x638] sm:$0xff]
        %v1362 = vld [vmem:[#allocation3 + $0x640] sm:$0xff]
        %v1363 = vld [vmem:[#allocation3 + $0x648] sm:$0xff]
        %v1364 = vld [vmem:[#allocation3 + $0x650] sm:$0xff]
        %v1365 = vld [vmem:[#allocation3 + $0x658] sm:$0xff]
        %v1366 = vld [vmem:[#allocation3 + $0x660] sm:$0xff]
        %v1367 = vld [vmem:[#allocation3 + $0x668] sm:$0xff]
        %v1368 = vld [vmem:[#allocation3 + $0x670] sm:$0xff]
        %v1369 = vld [vmem:[#allocation3 + $0x678] sm:$0xff]
        %v1370 = vld [vmem:[#allocation3 + $0x680] sm:$0xff]
        %v1371 = vld [vmem:[#allocation3 + $0x688] sm:$0xff]
        %v1372 = vld [vmem:[#allocation3 + $0x690] sm:$0xff]
        %v1373 = vld [vmem:[#allocation3 + $0x698] sm:$0xff]
        %v1374 = vld [vmem:[#allocation3 + $0x6a0] sm:$0xff]
        %v1375 = vld [vmem:[#allocation3 + $0x6a8] sm:$0xff]
        %v1376 = vld [vmem:[#allocation3 + $0x6b0] sm:$0xff]
        %v1377 = vld [vmem:[#allocation3 + $0x6b8] sm:$0xff]
        %v1378 = vld [vmem:[#allocation3 + $0x6c0] sm:$0xff]
        %v1379 = vld [vmem:[#allocation3 + $0x6c8] sm:$0xff]
        %v1380 = vld [vmem:[#allocation3 + $0x6d0] sm:$0xff]
        %v1381 = vld [vmem:[#allocation3 + $0x6d8] sm:$0xff]
        %v1382 = vld [vmem:[#allocation3 + $0x6e0] sm:$0xff]
        %v1383 = vld [vmem:[#allocation3 + $0x6e8] sm:$0xff]
        %v1384 = vld [vmem:[#allocation3 + $0x6f0] sm:$0xff]
        %v1385 = vld [vmem:[#allocation3 + $0x6f8] sm:$0xff]
        %v1386 = vld [vmem:[#allocation3 + $0x700] sm:$0xff]
        %v1387 = vld [vmem:[#allocation3 + $0x708] sm:$0xff]
        %v1388 = vld [vmem:[#allocation3 + $0x710] sm:$0xff]
        %v1389 = vld [vmem:[#allocation3 + $0x718] sm:$0xff]
        %v1390 = vld [vmem:[#allocation3 + $0x720] sm:$0xff]
        %v1391 = vld [vmem:[#allocation3 + $0x728] sm:$0xff]
        %v1392 = vld [vmem:[#allocation3 + $0x730] sm:$0xff]
        %v1393 = vld [vmem:[#allocation3 + $0x738] sm:$0xff]
        %v1394 = vld [vmem:[#allocation3 + $0x740] sm:$0xff]
        %v1395 = vld [vmem:[#allocation3 + $0x748] sm:$0xff]
        %v1396 = vld [vmem:[#allocation3 + $0x750] sm:$0xff]
        %v1397 = vld [vmem:[#allocation3 + $0x758] sm:$0xff]
        %v1398 = vld [vmem:[#allocation3 + $0x760] sm:$0xff]
        %v1399 = vld [vmem:[#allocation3 + $0x768] sm:$0xff]
        %v1400 = vld [vmem:[#allocation3 + $0x770] sm:$0xff]
        %v1401 = vld [vmem:[#allocation3 + $0x778] sm:$0xff]
        %v1402 = vld [vmem:[#allocation3 + $0x780] sm:$0xff]
        %v1403 = vld [vmem:[#allocation3 + $0x788] sm:$0xff]
        %v1404 = vld [vmem:[#allocation3 + $0x790] sm:$0xff]
        %v1405 = vld [vmem:[#allocation3 + $0x798] sm:$0xff]
        %v1406 = vld [vmem:[#allocation3 + $0x7a0] sm:$0xff]
        %v1407 = vld [vmem:[#allocation3 + $0x7a8] sm:$0xff]
        %v1408 = vld [vmem:[#allocation3 + $0x7b0] sm:$0xff]
        %v1409 = vld [vmem:[#allocation3 + $0x7b8] sm:$0xff]
        %v1410 = vld [vmem:[#allocation3 + $0x7c0] sm:$0xff]
        %v1411 = vld [vmem:[#allocation3 + $0x7c8] sm:$0xff]
        %v1412 = vld [vmem:[#allocation3 + $0x7d0] sm:$0xff]
        %v1413 = vld [vmem:[#allocation3 + $0x7d8] sm:$0xff]
        %v1414 = vld [vmem:[#allocation3 + $0x7e0] sm:$0xff]
        %v1415 = vld [vmem:[#allocation3 + $0x7e8] sm:$0xff]
        %v1416 = vld [vmem:[#allocation3 + $0x7f0] sm:$0xff]
        %v1417 = vld [vmem:[#allocation3 + $0x7f8] sm:$0xff]
        %v1418 = vld [vmem:[%s4] sm:$0xf]
        %v1420 = vlaneseq
        %v1421 = vshrl.u32 %v1420, 7
        %v1422 = vsub.s32 0, %v1421
        %v1423 = vrot.slane %v1418, %v1422
        %v1424 = vlaneseq
        %v1425 = vshrl.u32 %v1424, 7
        %v1426 = vsub.s32 1, %v1425
        %v1427 = vrot.slane %v1418, %v1426
        %v1428 = vlaneseq
        %v1429 = vshrl.u32 %v1428, 7
        %v1430 = vsub.s32 2, %v1429
        %v1431 = vrot.slane %v1418, %v1430
        %v1432 = vlaneseq
        %v1433 = vshrl.u32 %v1432, 7
        %v1434 = vsub.s32 3, %v1433
        %v1435 = vrot.slane %v1418, %v1434
        %v1696 = vunpack.c.l.b16 %v1162
        %v1697 = vunpack.c.h.b16 %v1162
        %v1698 = vunpack.c.l.b16 %v1163
        %v1699 = vunpack.c.h.b16 %v1163
        %v1700 = vunpack.c.l.b16 %v1164
        %v1701 = vunpack.c.h.b16 %v1164
        %v1702 = vunpack.c.l.b16 %v1165
        %v1703 = vunpack.c.h.b16 %v1165
        %v1704 = vunpack.c.l.b16 %v1166
        %v1705 = vunpack.c.h.b16 %v1166
        %v1706 = vunpack.c.l.b16 %v1167
        %v1707 = vunpack.c.h.b16 %v1167
        %v1708 = vunpack.c.l.b16 %v1168
        %v1709 = vunpack.c.h.b16 %v1168
        %v1710 = vunpack.c.l.b16 %v1169
        %v1711 = vunpack.c.h.b16 %v1169
        %v1712 = vunpack.c.l.b16 %v1170
        %v1713 = vunpack.c.h.b16 %v1170
        %v1714 = vunpack.c.l.b16 %v1171
        %v1715 = vunpack.c.h.b16 %v1171
        %v1716 = vunpack.c.l.b16 %v1172
        %v1717 = vunpack.c.h.b16 %v1172
        %v1718 = vunpack.c.l.b16 %v1173
        %v1719 = vunpack.c.h.b16 %v1173
        %v1720 = vunpack.c.l.b16 %v1174
        %v1721 = vunpack.c.h.b16 %v1174
        %v1722 = vunpack.c.l.b16 %v1175
        %v1723 = vunpack.c.h.b16 %v1175
        %v1724 = vunpack.c.l.b16 %v1176
        %v1725 = vunpack.c.h.b16 %v1176
        %v1726 = vunpack.c.l.b16 %v1177
        %v1727 = vunpack.c.h.b16 %v1177
        %v1728 = vunpack.c.l.b16 %v1178
        %v1729 = vunpack.c.h.b16 %v1178
        %v1730 = vunpack.c.l.b16 %v1179
        %v1731 = vunpack.c.h.b16 %v1179
        %v1732 = vunpack.c.l.b16 %v1180
        %v1733 = vunpack.c.h.b16 %v1180
        %v1734 = vunpack.c.l.b16 %v1181
        %v1735 = vunpack.c.h.b16 %v1181
        %v1736 = vunpack.c.l.b16 %v1182
        %v1737 = vunpack.c.h.b16 %v1182
        %v1738 = vunpack.c.l.b16 %v1183
        %v1739 = vunpack.c.h.b16 %v1183
        %v1740 = vunpack.c.l.b16 %v1184
        %v1741 = vunpack.c.h.b16 %v1184
        %v1742 = vunpack.c.l.b16 %v1185
        %v1743 = vunpack.c.h.b16 %v1185
        %v1744 = vunpack.c.l.b16 %v1186
        %v1745 = vunpack.c.h.b16 %v1186
        %v1746 = vunpack.c.l.b16 %v1187
        %v1747 = vunpack.c.h.b16 %v1187
        %v1748 = vunpack.c.l.b16 %v1188
        %v1749 = vunpack.c.h.b16 %v1188
        %v1750 = vunpack.c.l.b16 %v1189
        %v1751 = vunpack.c.h.b16 %v1189
        %v1752 = vunpack.c.l.b16 %v1190
        %v1753 = vunpack.c.h.b16 %v1190
        %v1754 = vunpack.c.l.b16 %v1191
        %v1755 = vunpack.c.h.b16 %v1191
        %v1756 = vunpack.c.l.b16 %v1192
        %v1757 = vunpack.c.h.b16 %v1192
        %v1758 = vunpack.c.l.b16 %v1193
        %v1759 = vunpack.c.h.b16 %v1193
        %v1760 = vunpack.c.l.b16 %v1194
        %v1761 = vunpack.c.h.b16 %v1194
        %v1762 = vunpack.c.l.b16 %v1195
        %v1763 = vunpack.c.h.b16 %v1195
        %v1764 = vunpack.c.l.b16 %v1196
        %v1765 = vunpack.c.h.b16 %v1196
        %v1766 = vunpack.c.l.b16 %v1197
        %v1767 = vunpack.c.h.b16 %v1197
        %v1768 = vunpack.c.l.b16 %v1198
        %v1769 = vunpack.c.h.b16 %v1198
        %v1770 = vunpack.c.l.b16 %v1199
        %v1771 = vunpack.c.h.b16 %v1199
        %v1772 = vunpack.c.l.b16 %v1200
        %v1773 = vunpack.c.h.b16 %v1200
        %v1774 = vunpack.c.l.b16 %v1201
        %v1775 = vunpack.c.h.b16 %v1201
        %v1776 = vunpack.c.l.b16 %v1202
        %v1777 = vunpack.c.h.b16 %v1202
        %v1778 = vunpack.c.l.b16 %v1203
        %v1779 = vunpack.c.h.b16 %v1203
        %v1780 = vunpack.c.l.b16 %v1204
        %v1781 = vunpack.c.h.b16 %v1204
        %v1782 = vunpack.c.l.b16 %v1205
        %v1783 = vunpack.c.h.b16 %v1205
        %v1784 = vunpack.c.l.b16 %v1206
        %v1785 = vunpack.c.h.b16 %v1206
        %v1786 = vunpack.c.l.b16 %v1207
        %v1787 = vunpack.c.h.b16 %v1207
        %v1788 = vunpack.c.l.b16 %v1208
        %v1789 = vunpack.c.h.b16 %v1208
        %v1790 = vunpack.c.l.b16 %v1209
        %v1791 = vunpack.c.h.b16 %v1209
        %v1792 = vunpack.c.l.b16 %v1210
        %v1793 = vunpack.c.h.b16 %v1210
        %v1794 = vunpack.c.l.b16 %v1211
        %v1795 = vunpack.c.h.b16 %v1211
        %v1796 = vunpack.c.l.b16 %v1212
        %v1797 = vunpack.c.h.b16 %v1212
        %v1798 = vunpack.c.l.b16 %v1213
        %v1799 = vunpack.c.h.b16 %v1213
        %v1800 = vunpack.c.l.b16 %v1214
        %v1801 = vunpack.c.h.b16 %v1214
        %v1802 = vunpack.c.l.b16 %v1215
        %v1803 = vunpack.c.h.b16 %v1215
        %v1804 = vunpack.c.l.b16 %v1216
        %v1805 = vunpack.c.h.b16 %v1216
        %v1806 = vunpack.c.l.b16 %v1217
        %v1807 = vunpack.c.h.b16 %v1217
        %v1808 = vunpack.c.l.b16 %v1218
        %v1809 = vunpack.c.h.b16 %v1218
        %v1810 = vunpack.c.l.b16 %v1219
        %v1811 = vunpack.c.h.b16 %v1219
        %v1812 = vunpack.c.l.b16 %v1220
        %v1813 = vunpack.c.h.b16 %v1220
        %v1814 = vunpack.c.l.b16 %v1221
        %v1815 = vunpack.c.h.b16 %v1221
        %v1816 = vunpack.c.l.b16 %v1222
        %v1817 = vunpack.c.h.b16 %v1222
        %v1818 = vunpack.c.l.b16 %v1223
        %v1819 = vunpack.c.h.b16 %v1223
        %v1820 = vunpack.c.l.b16 %v1224
        %v1821 = vunpack.c.h.b16 %v1224
        %v1822 = vunpack.c.l.b16 %v1225
        %v1823 = vunpack.c.h.b16 %v1225
        %v1824 = vunpack.c.l.b16 %v1226
        %v1825 = vunpack.c.h.b16 %v1226
        %v1826 = vunpack.c.l.b16 %v1227
        %v1827 = vunpack.c.h.b16 %v1227
        %v1828 = vunpack.c.l.b16 %v1228
        %v1829 = vunpack.c.h.b16 %v1228
        %v1830 = vunpack.c.l.b16 %v1229
        %v1831 = vunpack.c.h.b16 %v1229
        %v1832 = vunpack.c.l.b16 %v1230
        %v1833 = vunpack.c.h.b16 %v1230
        %v1834 = vunpack.c.l.b16 %v1231
        %v1835 = vunpack.c.h.b16 %v1231
        %v1836 = vunpack.c.l.b16 %v1232
        %v1837 = vunpack.c.h.b16 %v1232
        %v1838 = vunpack.c.l.b16 %v1233
        %v1839 = vunpack.c.h.b16 %v1233
        %v1840 = vunpack.c.l.b16 %v1234
        %v1841 = vunpack.c.h.b16 %v1234
        %v1842 = vunpack.c.l.b16 %v1235
        %v1843 = vunpack.c.h.b16 %v1235
        %v1844 = vunpack.c.l.b16 %v1236
        %v1845 = vunpack.c.h.b16 %v1236
        %v1846 = vunpack.c.l.b16 %v1237
        %v1847 = vunpack.c.h.b16 %v1237
        %v1848 = vunpack.c.l.b16 %v1238
        %v1849 = vunpack.c.h.b16 %v1238
        %v1850 = vunpack.c.l.b16 %v1239
        %v1851 = vunpack.c.h.b16 %v1239
        %v1852 = vunpack.c.l.b16 %v1240
        %v1853 = vunpack.c.h.b16 %v1240
        %v1854 = vunpack.c.l.b16 %v1241
        %v1855 = vunpack.c.h.b16 %v1241
        %v1856 = vunpack.c.l.b16 %v1242
        %v1857 = vunpack.c.h.b16 %v1242
        %v1858 = vunpack.c.l.b16 %v1243
        %v1859 = vunpack.c.h.b16 %v1243
        %v1860 = vunpack.c.l.b16 %v1244
        %v1861 = vunpack.c.h.b16 %v1244
        %v1862 = vunpack.c.l.b16 %v1245
        %v1863 = vunpack.c.h.b16 %v1245
        %v1864 = vunpack.c.l.b16 %v1246
        %v1865 = vunpack.c.h.b16 %v1246
        %v1866 = vunpack.c.l.b16 %v1247
        %v1867 = vunpack.c.h.b16 %v1247
        %v1868 = vunpack.c.l.b16 %v1248
        %v1869 = vunpack.c.h.b16 %v1248
        %v1870 = vunpack.c.l.b16 %v1249
        %v1871 = vunpack.c.h.b16 %v1249
        %v1872 = vunpack.c.l.b16 %v1250
        %v1873 = vunpack.c.h.b16 %v1250
        %v1874 = vunpack.c.l.b16 %v1251
        %v1875 = vunpack.c.h.b16 %v1251
        %v1876 = vunpack.c.l.b16 %v1252
        %v1877 = vunpack.c.h.b16 %v1252
        %v1878 = vunpack.c.l.b16 %v1253
        %v1879 = vunpack.c.h.b16 %v1253
        %v1880 = vunpack.c.l.b16 %v1254
        %v1881 = vunpack.c.h.b16 %v1254
        %v1882 = vunpack.c.l.b16 %v1255
        %v1883 = vunpack.c.h.b16 %v1255
        %v1884 = vunpack.c.l.b16 %v1256
        %v1885 = vunpack.c.h.b16 %v1256
        %v1886 = vunpack.c.l.b16 %v1257
        %v1887 = vunpack.c.h.b16 %v1257
        %v1888 = vunpack.c.l.b16 %v1258
        %v1889 = vunpack.c.h.b16 %v1258
        %v1890 = vunpack.c.l.b16 %v1259
        %v1891 = vunpack.c.h.b16 %v1259
        %v1892 = vunpack.c.l.b16 %v1260
        %v1893 = vunpack.c.h.b16 %v1260
        %v1894 = vunpack.c.l.b16 %v1261
        %v1895 = vunpack.c.h.b16 %v1261
        %v1896 = vunpack.c.l.b16 %v1262
        %v1897 = vunpack.c.h.b16 %v1262
        %v1898 = vunpack.c.l.b16 %v1263
        %v1899 = vunpack.c.h.b16 %v1263
        %v1900 = vunpack.c.l.b16 %v1264
        %v1901 = vunpack.c.h.b16 %v1264
        %v1902 = vunpack.c.l.b16 %v1265
        %v1903 = vunpack.c.h.b16 %v1265
        %v1904 = vunpack.c.l.b16 %v1266
        %v1905 = vunpack.c.h.b16 %v1266
        %v1906 = vunpack.c.l.b16 %v1267
        %v1907 = vunpack.c.h.b16 %v1267
        %v1908 = vunpack.c.l.b16 %v1268
        %v1909 = vunpack.c.h.b16 %v1268
        %v1910 = vunpack.c.l.b16 %v1269
        %v1911 = vunpack.c.h.b16 %v1269
        %v1912 = vunpack.c.l.b16 %v1270
        %v1913 = vunpack.c.h.b16 %v1270
        %v1914 = vunpack.c.l.b16 %v1271
        %v1915 = vunpack.c.h.b16 %v1271
        %v1916 = vunpack.c.l.b16 %v1272
        %v1917 = vunpack.c.h.b16 %v1272
        %v1918 = vunpack.c.l.b16 %v1273
        %v1919 = vunpack.c.h.b16 %v1273
        %v1920 = vunpack.c.l.b16 %v1274
        %v1921 = vunpack.c.h.b16 %v1274
        %v1922 = vunpack.c.l.b16 %v1275
        %v1923 = vunpack.c.h.b16 %v1275
        %v1924 = vunpack.c.l.b16 %v1276
        %v1925 = vunpack.c.h.b16 %v1276
        %v1926 = vunpack.c.l.b16 %v1277
        %v1927 = vunpack.c.h.b16 %v1277
        %v1928 = vunpack.c.l.b16 %v1278
        %v1929 = vunpack.c.h.b16 %v1278
        %v1930 = vunpack.c.l.b16 %v1279
        %v1931 = vunpack.c.h.b16 %v1279
        %v1932 = vunpack.c.l.b16 %v1280
        %v1933 = vunpack.c.h.b16 %v1280
        %v1934 = vunpack.c.l.b16 %v1281
        %v1935 = vunpack.c.h.b16 %v1281
        %v1936 = vunpack.c.l.b16 %v1282
        %v1937 = vunpack.c.h.b16 %v1282
        %v1938 = vunpack.c.l.b16 %v1283
        %v1939 = vunpack.c.h.b16 %v1283
        %v1940 = vunpack.c.l.b16 %v1284
        %v1941 = vunpack.c.h.b16 %v1284
        %v1942 = vunpack.c.l.b16 %v1285
        %v1943 = vunpack.c.h.b16 %v1285
        %v1944 = vunpack.c.l.b16 %v1286
        %v1945 = vunpack.c.h.b16 %v1286
        %v1946 = vunpack.c.l.b16 %v1287
        %v1947 = vunpack.c.h.b16 %v1287
        %v1948 = vunpack.c.l.b16 %v1288
        %v1949 = vunpack.c.h.b16 %v1288
        %v1950 = vunpack.c.l.b16 %v1289
        %v1951 = vunpack.c.h.b16 %v1289
        %v1952 = vunpack.c.l.b16 %v1290
        %v1953 = vunpack.c.h.b16 %v1290
        %v1954 = vunpack.c.l.b16 %v1291
        %v1955 = vunpack.c.h.b16 %v1291
        %v1956 = vunpack.c.l.b16 %v1292
        %v1957 = vunpack.c.h.b16 %v1292
        %v1958 = vunpack.c.l.b16 %v1293
        %v1959 = vunpack.c.h.b16 %v1293
        %v1960 = vunpack.c.l.b16 %v1294
        %v1961 = vunpack.c.h.b16 %v1294
        %v1962 = vunpack.c.l.b16 %v1295
        %v1963 = vunpack.c.h.b16 %v1295
        %v1964 = vunpack.c.l.b16 %v1296
        %v1965 = vunpack.c.h.b16 %v1296
        %v1966 = vunpack.c.l.b16 %v1297
        %v1967 = vunpack.c.h.b16 %v1297
        %v1968 = vunpack.c.l.b16 %v1298
        %v1969 = vunpack.c.h.b16 %v1298
        %v1970 = vunpack.c.l.b16 %v1299
        %v1971 = vunpack.c.h.b16 %v1299
        %v1972 = vunpack.c.l.b16 %v1300
        %v1973 = vunpack.c.h.b16 %v1300
        %v1974 = vunpack.c.l.b16 %v1301
        %v1975 = vunpack.c.h.b16 %v1301
        %v1976 = vunpack.c.l.b16 %v1302
        %v1977 = vunpack.c.h.b16 %v1302
        %v1978 = vunpack.c.l.b16 %v1303
        %v1979 = vunpack.c.h.b16 %v1303
        %v1980 = vunpack.c.l.b16 %v1304
        %v1981 = vunpack.c.h.b16 %v1304
        %v1982 = vunpack.c.l.b16 %v1305
        %v1983 = vunpack.c.h.b16 %v1305
        %v1984 = vunpack.c.l.b16 %v1306
        %v1985 = vunpack.c.h.b16 %v1306
        %v1986 = vunpack.c.l.b16 %v1307
        %v1987 = vunpack.c.h.b16 %v1307
        %v1988 = vunpack.c.l.b16 %v1308
        %v1989 = vunpack.c.h.b16 %v1308
        %v1990 = vunpack.c.l.b16 %v1309
        %v1991 = vunpack.c.h.b16 %v1309
        %v1992 = vunpack.c.l.b16 %v1310
        %v1993 = vunpack.c.h.b16 %v1310
        %v1994 = vunpack.c.l.b16 %v1311
        %v1995 = vunpack.c.h.b16 %v1311
        %v1996 = vunpack.c.l.b16 %v1312
        %v1997 = vunpack.c.h.b16 %v1312
        %v1998 = vunpack.c.l.b16 %v1313
        %v1999 = vunpack.c.h.b16 %v1313
        %v2000 = vunpack.c.l.b16 %v1314
        %v2001 = vunpack.c.h.b16 %v1314
        %v2002 = vunpack.c.l.b16 %v1315
        %v2003 = vunpack.c.h.b16 %v1315
        %v2004 = vunpack.c.l.b16 %v1316
        %v2005 = vunpack.c.h.b16 %v1316
        %v2006 = vunpack.c.l.b16 %v1317
        %v2007 = vunpack.c.h.b16 %v1317
        %v2008 = vunpack.c.l.b16 %v1318
        %v2009 = vunpack.c.h.b16 %v1318
        %v2010 = vunpack.c.l.b16 %v1319
        %v2011 = vunpack.c.h.b16 %v1319
        %v2012 = vunpack.c.l.b16 %v1320
        %v2013 = vunpack.c.h.b16 %v1320
        %v2014 = vunpack.c.l.b16 %v1321
        %v2015 = vunpack.c.h.b16 %v1321
        %v2016 = vunpack.c.l.b16 %v1322
        %v2017 = vunpack.c.h.b16 %v1322
        %v2018 = vunpack.c.l.b16 %v1323
        %v2019 = vunpack.c.h.b16 %v1323
        %v2020 = vunpack.c.l.b16 %v1324
        %v2021 = vunpack.c.h.b16 %v1324
        %v2022 = vunpack.c.l.b16 %v1325
        %v2023 = vunpack.c.h.b16 %v1325
        %v2024 = vunpack.c.l.b16 %v1326
        %v2025 = vunpack.c.h.b16 %v1326
        %v2026 = vunpack.c.l.b16 %v1327
        %v2027 = vunpack.c.h.b16 %v1327
        %v2028 = vunpack.c.l.b16 %v1328
        %v2029 = vunpack.c.h.b16 %v1328
        %v2030 = vunpack.c.l.b16 %v1329
        %v2031 = vunpack.c.h.b16 %v1329
        %v2032 = vunpack.c.l.b16 %v1330
        %v2033 = vunpack.c.h.b16 %v1330
        %v2034 = vunpack.c.l.b16 %v1331
        %v2035 = vunpack.c.h.b16 %v1331
        %v2036 = vunpack.c.l.b16 %v1332
        %v2037 = vunpack.c.h.b16 %v1332
        %v2038 = vunpack.c.l.b16 %v1333
        %v2039 = vunpack.c.h.b16 %v1333
        %v2040 = vunpack.c.l.b16 %v1334
        %v2041 = vunpack.c.h.b16 %v1334
        %v2042 = vunpack.c.l.b16 %v1335
        %v2043 = vunpack.c.h.b16 %v1335
        %v2044 = vunpack.c.l.b16 %v1336
        %v2045 = vunpack.c.h.b16 %v1336
        %v2046 = vunpack.c.l.b16 %v1337
        %v2047 = vunpack.c.h.b16 %v1337
        %v2048 = vunpack.c.l.b16 %v1338
        %v2049 = vunpack.c.h.b16 %v1338
        %v2050 = vunpack.c.l.b16 %v1339
        %v2051 = vunpack.c.h.b16 %v1339
        %v2052 = vunpack.c.l.b16 %v1340
        %v2053 = vunpack.c.h.b16 %v1340
        %v2054 = vunpack.c.l.b16 %v1341
        %v2055 = vunpack.c.h.b16 %v1341
        %v2056 = vunpack.c.l.b16 %v1342
        %v2057 = vunpack.c.h.b16 %v1342
        %v2058 = vunpack.c.l.b16 %v1343
        %v2059 = vunpack.c.h.b16 %v1343
        %v2060 = vunpack.c.l.b16 %v1344
        %v2061 = vunpack.c.h.b16 %v1344
        %v2062 = vunpack.c.l.b16 %v1345
        %v2063 = vunpack.c.h.b16 %v1345
        %v2064 = vunpack.c.l.b16 %v1346
        %v2065 = vunpack.c.h.b16 %v1346
        %v2066 = vunpack.c.l.b16 %v1347
        %v2067 = vunpack.c.h.b16 %v1347
        %v2068 = vunpack.c.l.b16 %v1348
        %v2069 = vunpack.c.h.b16 %v1348
        %v2070 = vunpack.c.l.b16 %v1349
        %v2071 = vunpack.c.h.b16 %v1349
        %v2072 = vunpack.c.l.b16 %v1350
        %v2073 = vunpack.c.h.b16 %v1350
        %v2074 = vunpack.c.l.b16 %v1351
        %v2075 = vunpack.c.h.b16 %v1351
        %v2076 = vunpack.c.l.b16 %v1352
        %v2077 = vunpack.c.h.b16 %v1352
        %v2078 = vunpack.c.l.b16 %v1353
        %v2079 = vunpack.c.h.b16 %v1353
        %v2080 = vunpack.c.l.b16 %v1354
        %v2081 = vunpack.c.h.b16 %v1354
        %v2082 = vunpack.c.l.b16 %v1355
        %v2083 = vunpack.c.h.b16 %v1355
        %v2084 = vunpack.c.l.b16 %v1356
        %v2085 = vunpack.c.h.b16 %v1356
        %v2086 = vunpack.c.l.b16 %v1357
        %v2087 = vunpack.c.h.b16 %v1357
        %v2088 = vunpack.c.l.b16 %v1358
        %v2089 = vunpack.c.h.b16 %v1358
        %v2090 = vunpack.c.l.b16 %v1359
        %v2091 = vunpack.c.h.b16 %v1359
        %v2092 = vunpack.c.l.b16 %v1360
        %v2093 = vunpack.c.h.b16 %v1360
        %v2094 = vunpack.c.l.b16 %v1361
        %v2095 = vunpack.c.h.b16 %v1361
        %v2096 = vunpack.c.l.b16 %v1362
        %v2097 = vunpack.c.h.b16 %v1362
        %v2098 = vunpack.c.l.b16 %v1363
        %v2099 = vunpack.c.h.b16 %v1363
        %v2100 = vunpack.c.l.b16 %v1364
        %v2101 = vunpack.c.h.b16 %v1364
        %v2102 = vunpack.c.l.b16 %v1365
        %v2103 = vunpack.c.h.b16 %v1365
        %v2104 = vunpack.c.l.b16 %v1366
        %v2105 = vunpack.c.h.b16 %v1366
        %v2106 = vunpack.c.l.b16 %v1367
        %v2107 = vunpack.c.h.b16 %v1367
        %v2108 = vunpack.c.l.b16 %v1368
        %v2109 = vunpack.c.h.b16 %v1368
        %v2110 = vunpack.c.l.b16 %v1369
        %v2111 = vunpack.c.h.b16 %v1369
        %v2112 = vunpack.c.l.b16 %v1370
        %v2113 = vunpack.c.h.b16 %v1370
        %v2114 = vunpack.c.l.b16 %v1371
        %v2115 = vunpack.c.h.b16 %v1371
        %v2116 = vunpack.c.l.b16 %v1372
        %v2117 = vunpack.c.h.b16 %v1372
        %v2118 = vunpack.c.l.b16 %v1373
        %v2119 = vunpack.c.h.b16 %v1373
        %v2120 = vunpack.c.l.b16 %v1374
        %v2121 = vunpack.c.h.b16 %v1374
        %v2122 = vunpack.c.l.b16 %v1375
        %v2123 = vunpack.c.h.b16 %v1375
        %v2124 = vunpack.c.l.b16 %v1376
        %v2125 = vunpack.c.h.b16 %v1376
        %v2126 = vunpack.c.l.b16 %v1377
        %v2127 = vunpack.c.h.b16 %v1377
        %v2128 = vunpack.c.l.b16 %v1378
        %v2129 = vunpack.c.h.b16 %v1378
        %v2130 = vunpack.c.l.b16 %v1379
        %v2131 = vunpack.c.h.b16 %v1379
        %v2132 = vunpack.c.l.b16 %v1380
        %v2133 = vunpack.c.h.b16 %v1380
        %v2134 = vunpack.c.l.b16 %v1381
        %v2135 = vunpack.c.h.b16 %v1381
        %v2136 = vunpack.c.l.b16 %v1382
        %v2137 = vunpack.c.h.b16 %v1382
        %v2138 = vunpack.c.l.b16 %v1383
        %v2139 = vunpack.c.h.b16 %v1383
        %v2140 = vunpack.c.l.b16 %v1384
        %v2141 = vunpack.c.h.b16 %v1384
        %v2142 = vunpack.c.l.b16 %v1385
        %v2143 = vunpack.c.h.b16 %v1385
        %v2144 = vunpack.c.l.b16 %v1386
        %v2145 = vunpack.c.h.b16 %v1386
        %v2146 = vunpack.c.l.b16 %v1387
        %v2147 = vunpack.c.h.b16 %v1387
        %v2148 = vunpack.c.l.b16 %v1388
        %v2149 = vunpack.c.h.b16 %v1388
        %v2150 = vunpack.c.l.b16 %v1389
        %v2151 = vunpack.c.h.b16 %v1389
        %v2152 = vunpack.c.l.b16 %v1390
        %v2153 = vunpack.c.h.b16 %v1390
        %v2154 = vunpack.c.l.b16 %v1391
        %v2155 = vunpack.c.h.b16 %v1391
        %v2156 = vunpack.c.l.b16 %v1392
        %v2157 = vunpack.c.h.b16 %v1392
        %v2158 = vunpack.c.l.b16 %v1393
        %v2159 = vunpack.c.h.b16 %v1393
        %v2160 = vunpack.c.l.b16 %v1394
        %v2161 = vunpack.c.h.b16 %v1394
        %v2162 = vunpack.c.l.b16 %v1395
        %v2163 = vunpack.c.h.b16 %v1395
        %v2164 = vunpack.c.l.b16 %v1396
        %v2165 = vunpack.c.h.b16 %v1396
        %v2166 = vunpack.c.l.b16 %v1397
        %v2167 = vunpack.c.h.b16 %v1397
        %v2168 = vunpack.c.l.b16 %v1398
        %v2169 = vunpack.c.h.b16 %v1398
        %v2170 = vunpack.c.l.b16 %v1399
        %v2171 = vunpack.c.h.b16 %v1399
        %v2172 = vunpack.c.l.b16 %v1400
        %v2173 = vunpack.c.h.b16 %v1400
        %v2174 = vunpack.c.l.b16 %v1401
        %v2175 = vunpack.c.h.b16 %v1401
        %v2176 = vunpack.c.l.b16 %v1402
        %v2177 = vunpack.c.h.b16 %v1402
        %v2178 = vunpack.c.l.b16 %v1403
        %v2179 = vunpack.c.h.b16 %v1403
        %v2180 = vunpack.c.l.b16 %v1404
        %v2181 = vunpack.c.h.b16 %v1404
        %v2182 = vunpack.c.l.b16 %v1405
        %v2183 = vunpack.c.h.b16 %v1405
        %v2184 = vunpack.c.l.b16 %v1406
        %v2185 = vunpack.c.h.b16 %v1406
        %v2186 = vunpack.c.l.b16 %v1407
        %v2187 = vunpack.c.h.b16 %v1407
        %v2188 = vunpack.c.l.b16 %v1408
        %v2189 = vunpack.c.h.b16 %v1408
        %v2190 = vunpack.c.l.b16 %v1409
        %v2191 = vunpack.c.h.b16 %v1409
        %v2192 = vunpack.c.l.b16 %v1410
        %v2193 = vunpack.c.h.b16 %v1410
        %v2194 = vunpack.c.l.b16 %v1411
        %v2195 = vunpack.c.h.b16 %v1411
        %v2196 = vunpack.c.l.b16 %v1412
        %v2197 = vunpack.c.h.b16 %v1412
        %v2198 = vunpack.c.l.b16 %v1413
        %v2199 = vunpack.c.h.b16 %v1413
        %v2200 = vunpack.c.l.b16 %v1414
        %v2201 = vunpack.c.h.b16 %v1414
        %v2202 = vunpack.c.l.b16 %v1415
        %v2203 = vunpack.c.h.b16 %v1415
        %v2204 = vunpack.c.l.b16 %v1416
        %v2205 = vunpack.c.h.b16 %v1416
        %v2206 = vunpack.c.l.b16 %v1417
        %v2207 = vunpack.c.h.b16 %v1417
        %v2208 = vpack.c.b16 %v1700, %v1696
        %v2209 = vpack.c.b16 %v1701, %v1697
        %v2210 = vpack.c.b16 %v1702, %v1698
        %v2211 = vpack.c.b16 %v1703, %v1699
        %v2212 = vpack.c.b16 %v1708, %v1704
        %v2213 = vpack.c.b16 %v1709, %v1705
        %v2214 = vpack.c.b16 %v1710, %v1706
        %v2215 = vpack.c.b16 %v1711, %v1707
        %v2216 = vpack.c.b16 %v1716, %v1712
        %v2217 = vpack.c.b16 %v1717, %v1713
        %v2218 = vpack.c.b16 %v1718, %v1714
        %v2219 = vpack.c.b16 %v1719, %v1715
        %v2220 = vpack.c.b16 %v1724, %v1720
        %v2221 = vpack.c.b16 %v1725, %v1721
        %v2222 = vpack.c.b16 %v1726, %v1722
        %v2223 = vpack.c.b16 %v1727, %v1723
        %v2224 = vpack.c.b16 %v1732, %v1728
        %v2225 = vpack.c.b16 %v1733, %v1729
        %v2226 = vpack.c.b16 %v1734, %v1730
        %v2227 = vpack.c.b16 %v1735, %v1731
        %v2228 = vpack.c.b16 %v1740, %v1736
        %v2229 = vpack.c.b16 %v1741, %v1737
        %v2230 = vpack.c.b16 %v1742, %v1738
        %v2231 = vpack.c.b16 %v1743, %v1739
        %v2232 = vpack.c.b16 %v1748, %v1744
        %v2233 = vpack.c.b16 %v1749, %v1745
        %v2234 = vpack.c.b16 %v1750, %v1746
        %v2235 = vpack.c.b16 %v1751, %v1747
        %v2236 = vpack.c.b16 %v1756, %v1752
        %v2237 = vpack.c.b16 %v1757, %v1753
        %v2238 = vpack.c.b16 %v1758, %v1754
        %v2239 = vpack.c.b16 %v1759, %v1755
        %v2240 = vpack.c.b16 %v1764, %v1760
        %v2241 = vpack.c.b16 %v1765, %v1761
        %v2242 = vpack.c.b16 %v1766, %v1762
        %v2243 = vpack.c.b16 %v1767, %v1763
        %v2244 = vpack.c.b16 %v1772, %v1768
        %v2245 = vpack.c.b16 %v1773, %v1769
        %v2246 = vpack.c.b16 %v1774, %v1770
        %v2247 = vpack.c.b16 %v1775, %v1771
        %v2248 = vpack.c.b16 %v1780, %v1776
        %v2249 = vpack.c.b16 %v1781, %v1777
        %v2250 = vpack.c.b16 %v1782, %v1778
        %v2251 = vpack.c.b16 %v1783, %v1779
        %v2252 = vpack.c.b16 %v1788, %v1784
        %v2253 = vpack.c.b16 %v1789, %v1785
        %v2254 = vpack.c.b16 %v1790, %v1786
        %v2255 = vpack.c.b16 %v1791, %v1787
        %v2256 = vpack.c.b16 %v1796, %v1792
        %v2257 = vpack.c.b16 %v1797, %v1793
        %v2258 = vpack.c.b16 %v1798, %v1794
        %v2259 = vpack.c.b16 %v1799, %v1795
        %v2260 = vpack.c.b16 %v1804, %v1800
        %v2261 = vpack.c.b16 %v1805, %v1801
        %v2262 = vpack.c.b16 %v1806, %v1802
        %v2263 = vpack.c.b16 %v1807, %v1803
        %v2264 = vpack.c.b16 %v1812, %v1808
        %v2265 = vpack.c.b16 %v1813, %v1809
        %v2266 = vpack.c.b16 %v1814, %v1810
        %v2267 = vpack.c.b16 %v1815, %v1811
        %v2268 = vpack.c.b16 %v1820, %v1816
        %v2269 = vpack.c.b16 %v1821, %v1817
        %v2270 = vpack.c.b16 %v1822, %v1818
        %v2271 = vpack.c.b16 %v1823, %v1819
        %v2272 = vpack.c.b16 %v1828, %v1824
        %v2273 = vpack.c.b16 %v1829, %v1825
        %v2274 = vpack.c.b16 %v1830, %v1826
        %v2275 = vpack.c.b16 %v1831, %v1827
        %v2276 = vpack.c.b16 %v1836, %v1832
        %v2277 = vpack.c.b16 %v1837, %v1833
        %v2278 = vpack.c.b16 %v1838, %v1834
        %v2279 = vpack.c.b16 %v1839, %v1835
        %v2280 = vpack.c.b16 %v1844, %v1840
        %v2281 = vpack.c.b16 %v1845, %v1841
        %v2282 = vpack.c.b16 %v1846, %v1842
        %v2283 = vpack.c.b16 %v1847, %v1843
        %v2284 = vpack.c.b16 %v1852, %v1848
        %v2285 = vpack.c.b16 %v1853, %v1849
        %v2286 = vpack.c.b16 %v1854, %v1850
        %v2287 = vpack.c.b16 %v1855, %v1851
        %v2288 = vpack.c.b16 %v1860, %v1856
        %v2289 = vpack.c.b16 %v1861, %v1857
        %v2290 = vpack.c.b16 %v1862, %v1858
        %v2291 = vpack.c.b16 %v1863, %v1859
        %v2292 = vpack.c.b16 %v1868, %v1864
        %v2293 = vpack.c.b16 %v1869, %v1865
        %v2294 = vpack.c.b16 %v1870, %v1866
        %v2295 = vpack.c.b16 %v1871, %v1867
        %v2296 = vpack.c.b16 %v1876, %v1872
        %v2297 = vpack.c.b16 %v1877, %v1873
        %v2298 = vpack.c.b16 %v1878, %v1874
        %v2299 = vpack.c.b16 %v1879, %v1875
        %v2300 = vpack.c.b16 %v1884, %v1880
        %v2301 = vpack.c.b16 %v1885, %v1881
        %v2302 = vpack.c.b16 %v1886, %v1882
        %v2303 = vpack.c.b16 %v1887, %v1883
        %v2304 = vpack.c.b16 %v1892, %v1888
        %v2305 = vpack.c.b16 %v1893, %v1889
        %v2306 = vpack.c.b16 %v1894, %v1890
        %v2307 = vpack.c.b16 %v1895, %v1891
        %v2308 = vpack.c.b16 %v1900, %v1896
        %v2309 = vpack.c.b16 %v1901, %v1897
        %v2310 = vpack.c.b16 %v1902, %v1898
        %v2311 = vpack.c.b16 %v1903, %v1899
        %v2312 = vpack.c.b16 %v1908, %v1904
        %v2313 = vpack.c.b16 %v1909, %v1905
        %v2314 = vpack.c.b16 %v1910, %v1906
        %v2315 = vpack.c.b16 %v1911, %v1907
        %v2316 = vpack.c.b16 %v1916, %v1912
        %v2317 = vpack.c.b16 %v1917, %v1913
        %v2318 = vpack.c.b16 %v1918, %v1914
        %v2319 = vpack.c.b16 %v1919, %v1915
        %v2320 = vpack.c.b16 %v1924, %v1920
        %v2321 = vpack.c.b16 %v1925, %v1921
        %v2322 = vpack.c.b16 %v1926, %v1922
        %v2323 = vpack.c.b16 %v1927, %v1923
        %v2324 = vpack.c.b16 %v1932, %v1928
        %v2325 = vpack.c.b16 %v1933, %v1929
        %v2326 = vpack.c.b16 %v1934, %v1930
        %v2327 = vpack.c.b16 %v1935, %v1931
        %v2328 = vpack.c.b16 %v1940, %v1936
        %v2329 = vpack.c.b16 %v1941, %v1937
        %v2330 = vpack.c.b16 %v1942, %v1938
        %v2331 = vpack.c.b16 %v1943, %v1939
        %v2332 = vpack.c.b16 %v1948, %v1944
        %v2333 = vpack.c.b16 %v1949, %v1945
        %v2334 = vpack.c.b16 %v1950, %v1946
        %v2335 = vpack.c.b16 %v1951, %v1947
        %v2336 = vpack.c.b16 %v1956, %v1952
        %v2337 = vpack.c.b16 %v1957, %v1953
        %v2338 = vpack.c.b16 %v1958, %v1954
        %v2339 = vpack.c.b16 %v1959, %v1955
        %v2340 = vpack.c.b16 %v1964, %v1960
        %v2341 = vpack.c.b16 %v1965, %v1961
        %v2342 = vpack.c.b16 %v1966, %v1962
        %v2343 = vpack.c.b16 %v1967, %v1963
        %v2344 = vpack.c.b16 %v1972, %v1968
        %v2345 = vpack.c.b16 %v1973, %v1969
        %v2346 = vpack.c.b16 %v1974, %v1970
        %v2347 = vpack.c.b16 %v1975, %v1971
        %v2348 = vpack.c.b16 %v1980, %v1976
        %v2349 = vpack.c.b16 %v1981, %v1977
        %v2350 = vpack.c.b16 %v1982, %v1978
        %v2351 = vpack.c.b16 %v1983, %v1979
        %v2352 = vpack.c.b16 %v1988, %v1984
        %v2353 = vpack.c.b16 %v1989, %v1985
        %v2354 = vpack.c.b16 %v1990, %v1986
        %v2355 = vpack.c.b16 %v1991, %v1987
        %v2356 = vpack.c.b16 %v1996, %v1992
        %v2357 = vpack.c.b16 %v1997, %v1993
        %v2358 = vpack.c.b16 %v1998, %v1994
        %v2359 = vpack.c.b16 %v1999, %v1995
        %v2360 = vpack.c.b16 %v2004, %v2000
        %v2361 = vpack.c.b16 %v2005, %v2001
        %v2362 = vpack.c.b16 %v2006, %v2002
        %v2363 = vpack.c.b16 %v2007, %v2003
        %v2364 = vpack.c.b16 %v2012, %v2008
        %v2365 = vpack.c.b16 %v2013, %v2009
        %v2366 = vpack.c.b16 %v2014, %v2010
        %v2367 = vpack.c.b16 %v2015, %v2011
        %v2368 = vpack.c.b16 %v2020, %v2016
        %v2369 = vpack.c.b16 %v2021, %v2017
        %v2370 = vpack.c.b16 %v2022, %v2018
        %v2371 = vpack.c.b16 %v2023, %v2019
        %v2372 = vpack.c.b16 %v2028, %v2024
        %v2373 = vpack.c.b16 %v2029, %v2025
        %v2374 = vpack.c.b16 %v2030, %v2026
        %v2375 = vpack.c.b16 %v2031, %v2027
        %v2376 = vpack.c.b16 %v2036, %v2032
        %v2377 = vpack.c.b16 %v2037, %v2033
        %v2378 = vpack.c.b16 %v2038, %v2034
        %v2379 = vpack.c.b16 %v2039, %v2035
        %v2380 = vpack.c.b16 %v2044, %v2040
        %v2381 = vpack.c.b16 %v2045, %v2041
        %v2382 = vpack.c.b16 %v2046, %v2042
        %v2383 = vpack.c.b16 %v2047, %v2043
        %v2384 = vpack.c.b16 %v2052, %v2048
        %v2385 = vpack.c.b16 %v2053, %v2049
        %v2386 = vpack.c.b16 %v2054, %v2050
        %v2387 = vpack.c.b16 %v2055, %v2051
        %v2388 = vpack.c.b16 %v2060, %v2056
        %v2389 = vpack.c.b16 %v2061, %v2057
        %v2390 = vpack.c.b16 %v2062, %v2058
        %v2391 = vpack.c.b16 %v2063, %v2059
        %v2392 = vpack.c.b16 %v2068, %v2064
        %v2393 = vpack.c.b16 %v2069, %v2065
        %v2394 = vpack.c.b16 %v2070, %v2066
        %v2395 = vpack.c.b16 %v2071, %v2067
        %v2396 = vpack.c.b16 %v2076, %v2072
        %v2397 = vpack.c.b16 %v2077, %v2073
        %v2398 = vpack.c.b16 %v2078, %v2074
        %v2399 = vpack.c.b16 %v2079, %v2075
        %v2400 = vpack.c.b16 %v2084, %v2080
        %v2401 = vpack.c.b16 %v2085, %v2081
        %v2402 = vpack.c.b16 %v2086, %v2082
        %v2403 = vpack.c.b16 %v2087, %v2083
        %v2404 = vpack.c.b16 %v2092, %v2088
        %v2405 = vpack.c.b16 %v2093, %v2089
        %v2406 = vpack.c.b16 %v2094, %v2090
        %v2407 = vpack.c.b16 %v2095, %v2091
        %v2408 = vpack.c.b16 %v2100, %v2096
        %v2409 = vpack.c.b16 %v2101, %v2097
        %v2410 = vpack.c.b16 %v2102, %v2098
        %v2411 = vpack.c.b16 %v2103, %v2099
        %v2412 = vpack.c.b16 %v2108, %v2104
        %v2413 = vpack.c.b16 %v2109, %v2105
        %v2414 = vpack.c.b16 %v2110, %v2106
        %v2415 = vpack.c.b16 %v2111, %v2107
        %v2416 = vpack.c.b16 %v2116, %v2112
        %v2417 = vpack.c.b16 %v2117, %v2113
        %v2418 = vpack.c.b16 %v2118, %v2114
        %v2419 = vpack.c.b16 %v2119, %v2115
        %v2420 = vpack.c.b16 %v2124, %v2120
        %v2421 = vpack.c.b16 %v2125, %v2121
        %v2422 = vpack.c.b16 %v2126, %v2122
        %v2423 = vpack.c.b16 %v2127, %v2123
        %v2424 = vpack.c.b16 %v2132, %v2128
        %v2425 = vpack.c.b16 %v2133, %v2129
        %v2426 = vpack.c.b16 %v2134, %v2130
        %v2427 = vpack.c.b16 %v2135, %v2131
        %v2428 = vpack.c.b16 %v2140, %v2136
        %v2429 = vpack.c.b16 %v2141, %v2137
        %v2430 = vpack.c.b16 %v2142, %v2138
        %v2431 = vpack.c.b16 %v2143, %v2139
        %v2432 = vpack.c.b16 %v2148, %v2144
        %v2433 = vpack.c.b16 %v2149, %v2145
        %v2434 = vpack.c.b16 %v2150, %v2146
        %v2435 = vpack.c.b16 %v2151, %v2147
        %v2436 = vpack.c.b16 %v2156, %v2152
        %v2437 = vpack.c.b16 %v2157, %v2153
        %v2438 = vpack.c.b16 %v2158, %v2154
        %v2439 = vpack.c.b16 %v2159, %v2155
        %v2440 = vpack.c.b16 %v2164, %v2160
        %v2441 = vpack.c.b16 %v2165, %v2161
        %v2442 = vpack.c.b16 %v2166, %v2162
        %v2443 = vpack.c.b16 %v2167, %v2163
        %v2444 = vpack.c.b16 %v2172, %v2168
        %v2445 = vpack.c.b16 %v2173, %v2169
        %v2446 = vpack.c.b16 %v2174, %v2170
        %v2447 = vpack.c.b16 %v2175, %v2171
        %v2448 = vpack.c.b16 %v2180, %v2176
        %v2449 = vpack.c.b16 %v2181, %v2177
        %v2450 = vpack.c.b16 %v2182, %v2178
        %v2451 = vpack.c.b16 %v2183, %v2179
        %v2452 = vpack.c.b16 %v2188, %v2184
        %v2453 = vpack.c.b16 %v2189, %v2185
        %v2454 = vpack.c.b16 %v2190, %v2186
        %v2455 = vpack.c.b16 %v2191, %v2187
        %v2456 = vpack.c.b16 %v2196, %v2192
        %v2457 = vpack.c.b16 %v2197, %v2193
        %v2458 = vpack.c.b16 %v2198, %v2194
        %v2459 = vpack.c.b16 %v2199, %v2195
        %v2460 = vpack.c.b16 %v2204, %v2200
        %v2461 = vpack.c.b16 %v2205, %v2201
        %v2462 = vpack.c.b16 %v2206, %v2202
        %v2463 = vpack.c.b16 %v2207, %v2203
        %2720 = vmatprep.subr.bf16.mxu0 %v2209
        %2721 = vmatpush1.bf16.msra.mxu0 %v2208
        %2722 = vmatprep.subr.bf16.mxu0 %v2213
        %2723 = vmatpush1.bf16.msra.mxu0 %v2212
        %2724 = vmatprep.subr.bf16.mxu0 %v2217
        %2725 = vmatpush1.bf16.msra.mxu0 %v2216
        %2726 = vmatprep.subr.bf16.mxu0 %v2221
        %2727 = vmatpush1.bf16.msra.mxu0 %v2220
        %2728 = vmatprep.subr.bf16.mxu0 %v2225
        %2729 = vmatpush1.bf16.msra.mxu0 %v2224
        %2730 = vmatprep.subr.bf16.mxu0 %v2229
        %2731 = vmatpush1.bf16.msra.mxu0 %v2228
        %2732 = vmatprep.subr.bf16.mxu0 %v2233
        %2733 = vmatpush1.bf16.msra.mxu0 %v2232
        %2734 = vmatprep.subr.bf16.mxu0 %v2237
        %2735 = vmatpush1.bf16.msra.mxu0 %v2236
        %2736 = vmatprep.subr.bf16.mxu0 %v2241
        %2737 = vmatpush1.bf16.msra.mxu0 %v2240
        %2738 = vmatprep.subr.bf16.mxu0 %v2245
        %2739 = vmatpush1.bf16.msra.mxu0 %v2244
        %2740 = vmatprep.subr.bf16.mxu0 %v2249
        %2741 = vmatpush1.bf16.msra.mxu0 %v2248
        %2742 = vmatprep.subr.bf16.mxu0 %v2253
        %2743 = vmatpush1.bf16.msra.mxu0 %v2252
        %2744 = vmatprep.subr.bf16.mxu0 %v2257
        %2745 = vmatpush1.bf16.msra.mxu0 %v2256
        %2746 = vmatprep.subr.bf16.mxu0 %v2261
        %2747 = vmatpush1.bf16.msra.mxu0 %v2260
        %2748 = vmatprep.subr.bf16.mxu0 %v2265
        %2749 = vmatpush1.bf16.msra.mxu0 %v2264
        %2750 = vmatprep.subr.bf16.mxu0 %v2269
        %2751 = vmatpush1.bf16.msra.mxu0 %v2268
        %2752 = vmatprep.mubr.bf16.mxu0 %v1099
        %2753 = vmatmul.mubr.bf16.gmra.mrb[0].mxu0 %v1098
        %v2754 = vpop.f32.mrb[0].mxu0
        %v2755 = vadd.f32 %v1423, %v2754
        %v2756 = vpop.f32.mrb[0].mxu0
        %v2757 = vadd.f32 %v1427, %v2756
        %v2758 = vpop.f32.mrb[0].mxu0
        %v2759 = vadd.f32 %v1423, %v2758
        %v2760 = vpop.f32.mrb[0].mxu0
        %v2761 = vadd.f32 %v1427, %v2760
        %2762 = vmatprep.mubr.bf16.mxu0 %v1107
        %2763 = vmatmul.mubr.bf16.gmra.mrb[0].mxu0 %v1106
        %v2764 = vpop.f32.mrb[0].mxu0
        %v2765 = vadd.f32 %v1423, %v2764
        %v2766 = vpop.f32.mrb[0].mxu0
        %v2767 = vadd.f32 %v1427, %v2766
        %v2768 = vpop.f32.mrb[0].mxu0
        %v2769 = vadd.f32 %v1423, %v2768
        %v2770 = vpop.f32.mrb[0].mxu0
        %v2771 = vadd.f32 %v1427, %v2770
        %2772 = vmatprep.mubr.bf16.mxu0 %v1115
        %2773 = vmatmul.mubr.bf16.gmra.mrb[0].mxu0 %v1114
        %v2774 = vpop.f32.mrb[0].mxu0
        %v2775 = vadd.f32 %v1423, %v2774
        %v2776 = vpop.f32.mrb[0].mxu0
        %v2777 = vadd.f32 %v1427, %v2776
        %v2778 = vpop.f32.mrb[0].mxu0
        %v2779 = vadd.f32 %v1423, %v2778
        %v2780 = vpop.f32.mrb[0].mxu0
        %v2781 = vadd.f32 %v1427, %v2780
        %2782 = vmatprep.mubr.bf16.mxu0 %v1123
        %2783 = vmatmul.mubr.bf16.gmra.mrb[0].mxu0 %v1122
        %v2784 = vpop.f32.mrb[0].mxu0
        %v2785 = vadd.f32 %v1423, %v2784
        %v2786 = vpop.f32.mrb[0].mxu0
        %v2787 = vadd.f32 %v1427, %v2786
        %v2788 = vpop.f32.mrb[0].mxu0
        %v2789 = vadd.f32 %v1423, %v2788
        %v2790 = vpop.f32.mrb[0].mxu0
        %v2791 = vadd.f32 %v1427, %v2790
        %2792 = vmatprep.mubr.bf16.mxu0 %v1131
        %2793 = vmatmul.mubr.bf16.gmra.mrb[0].mxu0 %v1130
        %v2794 = vpop.f32.mrb[0].mxu0
        %v2795 = vadd.f32 %v1423, %v2794
        %v2796 = vpop.f32.mrb[0].mxu0
        %v2797 = vadd.f32 %v1427, %v2796
        %v2798 = vpop.f32.mrb[0].mxu0
        %v2799 = vadd.f32 %v1423, %v2798
        %v2800 = vpop.f32.mrb[0].mxu0
        %v2801 = vadd.f32 %v1427, %v2800
        %2802 = vmatprep.mubr.bf16.mxu0 %v1139
        %2803 = vmatmul.mubr.bf16.gmra.mrb[0].mxu0 %v1138
        %v2804 = vpop.f32.mrb[0].mxu0
        %v2805 = vadd.f32 %v1423, %v2804
        %v2806 = vpop.f32.mrb[0].mxu0
        %v2807 = vadd.f32 %v1427, %v2806
        %v2808 = vpop.f32.mrb[0].mxu0
        %v2809 = vadd.f32 %v1423, %v2808
        %v2810 = vpop.f32.mrb[0].mxu0
        %v2811 = vadd.f32 %v1427, %v2810
        %2812 = vmatprep.mubr.bf16.mxu0 %v1147
        %2813 = vmatmul.mubr.bf16.gmra.mrb[0].mxu0 %v1146
        %v2814 = vpop.f32.mrb[0].mxu0
        %v2815 = vadd.f32 %v1423, %v2814
        %v2816 = vpop.f32.mrb[0].mxu0
        %v2817 = vadd.f32 %v1427, %v2816
        %v2818 = vpop.f32.mrb[0].mxu0
        %v2819 = vadd.f32 %v1423, %v2818
        %v2820 = vpop.f32.mrb[0].mxu0
        %v2821 = vadd.f32 %v1427, %v2820
        %2822 = vmatprep.mubr.bf16.mxu0 %v1155
        %2823 = vmatmul.mubr.bf16.gmra.mrb[0].mxu0 %v1154
        %v2824 = vpop.f32.mrb[0].mxu0
        %v2825 = vadd.f32 %v1423, %v2824
        %v2826 = vpop.f32.mrb[0].mxu0
        %v2827 = vadd.f32 %v1427, %v2826
        %v2828 = vpop.f32.mrb[0].mxu0
        %v2829 = vadd.f32 %v1423, %v2828
        %v2830 = vpop.f32.mrb[0].mxu0
        %v2831 = vadd.f32 %v1427, %v2830
        %2832 = vdwg.mxu0
        %2833 = vmatprep.subr.bf16.mxu0 %v2273
        %2834 = vmatpush1.bf16.msra.mxu0 %v2272
        %2835 = vmatprep.subr.bf16.mxu0 %v2277
        %2836 = vmatpush1.bf16.msra.mxu0 %v2276
        %2837 = vmatprep.subr.bf16.mxu0 %v2281
        %2838 = vmatpush1.bf16.msra.mxu0 %v2280
        %2839 = vmatprep.subr.bf16.mxu0 %v2285
        %2840 = vmatpush1.bf16.msra.mxu0 %v2284
        %2841 = vmatprep.subr.bf16.mxu0 %v2289
        %2842 = vmatpush1.bf16.msra.mxu0 %v2288
        %2843 = vmatprep.subr.bf16.mxu0 %v2293
        %2844 = vmatpush1.bf16.msra.mxu0 %v2292
        %2845 = vmatprep.subr.bf16.mxu0 %v2297
        %2846 = vmatpush1.bf16.msra.mxu0 %v2296
        %2847 = vmatprep.subr.bf16.mxu0 %v2301
        %2848 = vmatpush1.bf16.msra.mxu0 %v2300
        %2849 = vmatprep.subr.bf16.mxu0 %v2305
        %2850 = vmatpush1.bf16.msra.mxu0 %v2304
        %2851 = vmatprep.subr.bf16.mxu0 %v2309
        %2852 = vmatpush1.bf16.msra.mxu0 %v2308
        %2853 = vmatprep.subr.bf16.mxu0 %v2313
        %2854 = vmatpush1.bf16.msra.mxu0 %v2312
        %2855 = vmatprep.subr.bf16.mxu0 %v2317
        %2856 = vmatpush1.bf16.msra.mxu0 %v2316
        %2857 = vmatprep.subr.bf16.mxu0 %v2321
        %2858 = vmatpush1.bf16.msra.mxu0 %v2320
        %2859 = vmatprep.subr.bf16.mxu0 %v2325
        %2860 = vmatpush1.bf16.msra.mxu0 %v2324
        %2861 = vmatprep.subr.bf16.mxu0 %v2329
        %2862 = vmatpush1.bf16.msra.mxu0 %v2328
        %2863 = vmatprep.subr.bf16.mxu0 %v2333
        %2864 = vmatpush1.bf16.msra.mxu0 %v2332
        %2865 = vmatprep.mubr.bf16.mxu0 %v1101
        %2866 = vmatmul.mubr.bf16.gmra.mrb[0].mxu0 %v1100
        %v2867 = vpop.f32.mrb[0].mxu0
        %v2868 = vadd.f32 %v2755, %v2867
        %v2869 = vpop.f32.mrb[0].mxu0
        %v2870 = vadd.f32 %v2757, %v2869
        %v2871 = vpop.f32.mrb[0].mxu0
        %v2872 = vadd.f32 %v2759, %v2871
        %v2873 = vpop.f32.mrb[0].mxu0
        %v2874 = vadd.f32 %v2761, %v2873
        %2875 = vmatprep.mubr.bf16.mxu0 %v1109
        %2876 = vmatmul.mubr.bf16.gmra.mrb[0].mxu0 %v1108
        %v2877 = vpop.f32.mrb[0].mxu0
        %v2878 = vadd.f32 %v2765, %v2877
        %v2879 = vpop.f32.mrb[0].mxu0
        %v2880 = vadd.f32 %v2767, %v2879
        %v2881 = vpop.f32.mrb[0].mxu0
        %v2882 = vadd.f32 %v2769, %v2881
        %v2883 = vpop.f32.mrb[0].mxu0
        %v2884 = vadd.f32 %v2771, %v2883
        %2885 = vmatprep.mubr.bf16.mxu0 %v1117
        %2886 = vmatmul.mubr.bf16.gmra.mrb[0].mxu0 %v1116
        %v2887 = vpop.f32.mrb[0].mxu0
        %v2888 = vadd.f32 %v2775, %v2887
        %v2889 = vpop.f32.mrb[0].mxu0
        %v2890 = vadd.f32 %v2777, %v2889
        %v2891 = vpop.f32.mrb[0].mxu0
        %v2892 = vadd.f32 %v2779, %v2891
        %v2893 = vpop.f32.mrb[0].mxu0
        %v2894 = vadd.f32 %v2781, %v2893
        %2895 = vmatprep.mubr.bf16.mxu0 %v1125
        %2896 = vmatmul.mubr.bf16.gmra.mrb[0].mxu0 %v1124
        %v2897 = vpop.f32.mrb[0].mxu0
        %v2898 = vadd.f32 %v2785, %v2897
        %v2899 = vpop.f32.mrb[0].mxu0
        %v2900 = vadd.f32 %v2787, %v2899
        %v2901 = vpop.f32.mrb[0].mxu0
        %v2902 = vadd.f32 %v2789, %v2901
        %v2903 = vpop.f32.mrb[0].mxu0
        %v2904 = vadd.f32 %v2791, %v2903
        %2905 = vmatprep.mubr.bf16.mxu0 %v1133
        %2906 = vmatmul.mubr.bf16.gmra.mrb[0].mxu0 %v1132
        %v2907 = vpop.f32.mrb[0].mxu0
        %v2908 = vadd.f32 %v2795, %v2907
        %v2909 = vpop.f32.mrb[0].mxu0
        %v2910 = vadd.f32 %v2797, %v2909
        %v2911 = vpop.f32.mrb[0].mxu0
        %v2912 = vadd.f32 %v2799, %v2911
        %v2913 = vpop.f32.mrb[0].mxu0
        %v2914 = vadd.f32 %v2801, %v2913
        %2915 = vmatprep.mubr.bf16.mxu0 %v1141
        %2916 = vmatmul.mubr.bf16.gmra.mrb[0].mxu0 %v1140
        %v2917 = vpop.f32.mrb[0].mxu0
        %v2918 = vadd.f32 %v2805, %v2917
        %v2919 = vpop.f32.mrb[0].mxu0
        %v2920 = vadd.f32 %v2807, %v2919
        %v2921 = vpop.f32.mrb[0].mxu0
        %v2922 = vadd.f32 %v2809, %v2921
        %v2923 = vpop.f32.mrb[0].mxu0
        %v2924 = vadd.f32 %v2811, %v2923
        %2925 = vmatprep.mubr.bf16.mxu0 %v1149
        %2926 = vmatmul.mubr.bf16.gmra.mrb[0].mxu0 %v1148
        %v2927 = vpop.f32.mrb[0].mxu0
        %v2928 = vadd.f32 %v2815, %v2927
        %v2929 = vpop.f32.mrb[0].mxu0
        %v2930 = vadd.f32 %v2817, %v2929
        %v2931 = vpop.f32.mrb[0].mxu0
        %v2932 = vadd.f32 %v2819, %v2931
        %v2933 = vpop.f32.mrb[0].mxu0
        %v2934 = vadd.f32 %v2821, %v2933
        %2935 = vmatprep.mubr.bf16.mxu0 %v1157
        %2936 = vmatmul.mubr.bf16.gmra.mrb[0].mxu0 %v1156
        %v2937 = vpop.f32.mrb[0].mxu0
        %v2938 = vadd.f32 %v2825, %v2937
        %v2939 = vpop.f32.mrb[0].mxu0
        %v2940 = vadd.f32 %v2827, %v2939
        %v2941 = vpop.f32.mrb[0].mxu0
        %v2942 = vadd.f32 %v2829, %v2941
        %v2943 = vpop.f32.mrb[0].mxu0
        %v2944 = vadd.f32 %v2831, %v2943
        %2945 = vdwg.mxu0
        %2946 = vmatprep.subr.bf16.mxu0 %v2337
        %2947 = vmatpush1.bf16.msra.mxu0 %v2336
        %2948 = vmatprep.subr.bf16.mxu0 %v2341
        %2949 = vmatpush1.bf16.msra.mxu0 %v2340
        %2950 = vmatprep.subr.bf16.mxu0 %v2345
        %2951 = vmatpush1.bf16.msra.mxu0 %v2344
        %2952 = vmatprep.subr.bf16.mxu0 %v2349
        %2953 = vmatpush1.bf16.msra.mxu0 %v2348
        %2954 = vmatprep.subr.bf16.mxu0 %v2353
        %2955 = vmatpush1.bf16.msra.mxu0 %v2352
        %2956 = vmatprep.subr.bf16.mxu0 %v2357
        %2957 = vmatpush1.bf16.msra.mxu0 %v2356
        %2958 = vmatprep.subr.bf16.mxu0 %v2361
        %2959 = vmatpush1.bf16.msra.mxu0 %v2360
        %2960 = vmatprep.subr.bf16.mxu0 %v2365
        %2961 = vmatpush1.bf16.msra.mxu0 %v2364
        %2962 = vmatprep.subr.bf16.mxu0 %v2369
        %2963 = vmatpush1.bf16.msra.mxu0 %v2368
        %2964 = vmatprep.subr.bf16.mxu0 %v2373
        %2965 = vmatpush1.bf16.msra.mxu0 %v2372
        %2966 = vmatprep.subr.bf16.mxu0 %v2377
        %2967 = vmatpush1.bf16.msra.mxu0 %v2376
        %2968 = vmatprep.subr.bf16.mxu0 %v2381
        %2969 = vmatpush1.bf16.msra.mxu0 %v2380
        %2970 = vmatprep.subr.bf16.mxu0 %v2385
        %2971 = vmatpush1.bf16.msra.mxu0 %v2384
        %2972 = vmatprep.subr.bf16.mxu0 %v2389
        %2973 = vmatpush1.bf16.msra.mxu0 %v2388
        %2974 = vmatprep.subr.bf16.mxu0 %v2393
        %2975 = vmatpush1.bf16.msra.mxu0 %v2392
        %2976 = vmatprep.subr.bf16.mxu0 %v2397
        %2977 = vmatpush1.bf16.msra.mxu0 %v2396
        %2978 = vmatprep.mubr.bf16.mxu0 %v1103
        %2979 = vmatmul.mubr.bf16.gmra.mrb[0].mxu0 %v1102
        %v2980 = vpop.f32.mrb[0].mxu0
        %v2981 = vadd.f32 %v2868, %v2980
        %v2982 = vpop.f32.mrb[0].mxu0
        %v2983 = vadd.f32 %v2870, %v2982
        %v2984 = vpop.f32.mrb[0].mxu0
        %v2985 = vadd.f32 %v2872, %v2984
        %v2986 = vpop.f32.mrb[0].mxu0
        %v2987 = vadd.f32 %v2874, %v2986
        %2988 = vmatprep.mubr.bf16.mxu0 %v1111
        %2989 = vmatmul.mubr.bf16.gmra.mrb[0].mxu0 %v1110
        %v2990 = vpop.f32.mrb[0].mxu0
        %v2991 = vadd.f32 %v2878, %v2990
        %v2992 = vpop.f32.mrb[0].mxu0
        %v2993 = vadd.f32 %v2880, %v2992
        %v2994 = vpop.f32.mrb[0].mxu0
        %v2995 = vadd.f32 %v2882, %v2994
        %v2996 = vpop.f32.mrb[0].mxu0
        %v2997 = vadd.f32 %v2884, %v2996
        %2998 = vmatprep.mubr.bf16.mxu0 %v1119
        %2999 = vmatmul.mubr.bf16.gmra.mrb[0].mxu0 %v1118
        %v3000 = vpop.f32.mrb[0].mxu0
        %v3001 = vadd.f32 %v2888, %v3000
        %v3002 = vpop.f32.mrb[0].mxu0
        %v3003 = vadd.f32 %v2890, %v3002
        %v3004 = vpop.f32.mrb[0].mxu0
        %v3005 = vadd.f32 %v2892, %v3004
        %v3006 = vpop.f32.mrb[0].mxu0
        %v3007 = vadd.f32 %v2894, %v3006
        %3008 = vmatprep.mubr.bf16.mxu0 %v1127
        %3009 = vmatmul.mubr.bf16.gmra.mrb[0].mxu0 %v1126
        %v3010 = vpop.f32.mrb[0].mxu0
        %v3011 = vadd.f32 %v2898, %v3010
        %v3012 = vpop.f32.mrb[0].mxu0
        %v3013 = vadd.f32 %v2900, %v3012
        %v3014 = vpop.f32.mrb[0].mxu0
        %v3015 = vadd.f32 %v2902, %v3014
        %v3016 = vpop.f32.mrb[0].mxu0
        %v3017 = vadd.f32 %v2904, %v3016
        %3018 = vmatprep.mubr.bf16.mxu0 %v1135
        %3019 = vmatmul.mubr.bf16.gmra.mrb[0].mxu0 %v1134
        %v3020 = vpop.f32.mrb[0].mxu0
        %v3021 = vadd.f32 %v2908, %v3020
        %v3022 = vpop.f32.mrb[0].mxu0
        %v3023 = vadd.f32 %v2910, %v3022
        %v3024 = vpop.f32.mrb[0].mxu0
        %v3025 = vadd.f32 %v2912, %v3024
        %v3026 = vpop.f32.mrb[0].mxu0
        %v3027 = vadd.f32 %v2914, %v3026
        %3028 = vmatprep.mubr.bf16.mxu0 %v1143
        %3029 = vmatmul.mubr.bf16.gmra.mrb[0].mxu0 %v1142
        %v3030 = vpop.f32.mrb[0].mxu0
        %v3031 = vadd.f32 %v2918, %v3030
        %v3032 = vpop.f32.mrb[0].mxu0
        %v3033 = vadd.f32 %v2920, %v3032
        %v3034 = vpop.f32.mrb[0].mxu0
        %v3035 = vadd.f32 %v2922, %v3034
        %v3036 = vpop.f32.mrb[0].mxu0
        %v3037 = vadd.f32 %v2924, %v3036
        %3038 = vmatprep.mubr.bf16.mxu0 %v1151
        %3039 = vmatmul.mubr.bf16.gmra.mrb[0].mxu0 %v1150
        %v3040 = vpop.f32.mrb[0].mxu0
        %v3041 = vadd.f32 %v2928, %v3040
        %v3042 = vpop.f32.mrb[0].mxu0
        %v3043 = vadd.f32 %v2930, %v3042
        %v3044 = vpop.f32.mrb[0].mxu0
        %v3045 = vadd.f32 %v2932, %v3044
        %v3046 = vpop.f32.mrb[0].mxu0
        %v3047 = vadd.f32 %v2934, %v3046
        %3048 = vmatprep.mubr.bf16.mxu0 %v1159
        %3049 = vmatmul.mubr.bf16.gmra.mrb[0].mxu0 %v1158
        %v3050 = vpop.f32.mrb[0].mxu0
        %v3051 = vadd.f32 %v2938, %v3050
        %v3052 = vpop.f32.mrb[0].mxu0
        %v3053 = vadd.f32 %v2940, %v3052
        %v3054 = vpop.f32.mrb[0].mxu0
        %v3055 = vadd.f32 %v2942, %v3054
        %v3056 = vpop.f32.mrb[0].mxu0
        %v3057 = vadd.f32 %v2944, %v3056
        %3058 = vdwg.mxu0
        %3059 = vmatprep.subr.bf16.mxu0 %v2401
        %3060 = vmatpush1.bf16.msra.mxu0 %v2400
        %3061 = vmatprep.subr.bf16.mxu0 %v2405
        %3062 = vmatpush1.bf16.msra.mxu0 %v2404
        %3063 = vmatprep.subr.bf16.mxu0 %v2409
        %3064 = vmatpush1.bf16.msra.mxu0 %v2408
        %3065 = vmatprep.subr.bf16.mxu0 %v2413
        %3066 = vmatpush1.bf16.msra.mxu0 %v2412
        %3067 = vmatprep.subr.bf16.mxu0 %v2417
        %3068 = vmatpush1.bf16.msra.mxu0 %v2416
        %3069 = vmatprep.subr.bf16.mxu0 %v2421
        %3070 = vmatpush1.bf16.msra.mxu0 %v2420
        %3071 = vmatprep.subr.bf16.mxu0 %v2425
        %3072 = vmatpush1.bf16.msra.mxu0 %v2424
        %3073 = vmatprep.subr.bf16.mxu0 %v2429
        %3074 = vmatpush1.bf16.msra.mxu0 %v2428
        %3075 = vmatprep.subr.bf16.mxu0 %v2433
        %3076 = vmatpush1.bf16.msra.mxu0 %v2432
        %3077 = vmatprep.subr.bf16.mxu0 %v2437
        %3078 = vmatpush1.bf16.msra.mxu0 %v2436
        %3079 = vmatprep.subr.bf16.mxu0 %v2441
        %3080 = vmatpush1.bf16.msra.mxu0 %v2440
        %3081 = vmatprep.subr.bf16.mxu0 %v2445
        %3082 = vmatpush1.bf16.msra.mxu0 %v2444
        %3083 = vmatprep.subr.bf16.mxu0 %v2449
        %3084 = vmatpush1.bf16.msra.mxu0 %v2448
        %3085 = vmatprep.subr.bf16.mxu0 %v2453
        %3086 = vmatpush1.bf16.msra.mxu0 %v2452
        %3087 = vmatprep.subr.bf16.mxu0 %v2457
        %3088 = vmatpush1.bf16.msra.mxu0 %v2456
        %3089 = vmatprep.subr.bf16.mxu0 %v2461
        %3090 = vmatpush1.bf16.msra.mxu0 %v2460
        %3091 = vmatprep.mubr.bf16.mxu0 %v1105
        %3092 = vmatmul.mubr.bf16.gmra.mrb[0].mxu0 %v1104
        %v3093 = vpop.f32.mrb[0].mxu0
        %v3094 = vadd.f32 %v2981, %v3093
        %v3095 = vpop.f32.mrb[0].mxu0
        %v3096 = vadd.f32 %v2983, %v3095
        %v3097 = vpop.f32.mrb[0].mxu0
        %v3098 = vadd.f32 %v2985, %v3097
        %v3099 = vpop.f32.mrb[0].mxu0
        %v3100 = vadd.f32 %v2987, %v3099
        %3101 = vmatprep.mubr.bf16.mxu0 %v1113
        %3102 = vmatmul.mubr.bf16.gmra.mrb[0].mxu0 %v1112
        %v3103 = vpop.f32.mrb[0].mxu0
        %v3104 = vadd.f32 %v2991, %v3103
        %v3105 = vpop.f32.mrb[0].mxu0
        %v3106 = vadd.f32 %v2993, %v3105
        %v3107 = vpop.f32.mrb[0].mxu0
        %v3108 = vadd.f32 %v2995, %v3107
        %v3109 = vpop.f32.mrb[0].mxu0
        %v3110 = vadd.f32 %v2997, %v3109
        %3111 = vmatprep.mubr.bf16.mxu0 %v1121
        %3112 = vmatmul.mubr.bf16.gmra.mrb[0].mxu0 %v1120
        %v3113 = vpop.f32.mrb[0].mxu0
        %v3114 = vadd.f32 %v3001, %v3113
        %v3115 = vpop.f32.mrb[0].mxu0
        %v3116 = vadd.f32 %v3003, %v3115
        %v3117 = vpop.f32.mrb[0].mxu0
        %v3118 = vadd.f32 %v3005, %v3117
        %v3119 = vpop.f32.mrb[0].mxu0
        %v3120 = vadd.f32 %v3007, %v3119
        %3121 = vmatprep.mubr.bf16.mxu0 %v1129
        %3122 = vmatmul.mubr.bf16.gmra.mrb[0].mxu0 %v1128
        %v3123 = vpop.f32.mrb[0].mxu0
        %v3124 = vadd.f32 %v3011, %v3123
        %v3125 = vpop.f32.mrb[0].mxu0
        %v3126 = vadd.f32 %v3013, %v3125
        %v3127 = vpop.f32.mrb[0].mxu0
        %v3128 = vadd.f32 %v3015, %v3127
        %v3129 = vpop.f32.mrb[0].mxu0
        %v3130 = vadd.f32 %v3017, %v3129
        %3131 = vmatprep.mubr.bf16.mxu0 %v1137
        %3132 = vmatmul.mubr.bf16.gmra.mrb[0].mxu0 %v1136
        %v3133 = vpop.f32.mrb[0].mxu0
        %v3134 = vadd.f32 %v3021, %v3133
        %v3135 = vpop.f32.mrb[0].mxu0
        %v3136 = vadd.f32 %v3023, %v3135
        %v3137 = vpop.f32.mrb[0].mxu0
        %v3138 = vadd.f32 %v3025, %v3137
        %v3139 = vpop.f32.mrb[0].mxu0
        %v3140 = vadd.f32 %v3027, %v3139
        %3141 = vmatprep.mubr.bf16.mxu0 %v1145
        %3142 = vmatmul.mubr.bf16.gmra.mrb[0].mxu0 %v1144
        %v3143 = vpop.f32.mrb[0].mxu0
        %v3144 = vadd.f32 %v3031, %v3143
        %v3145 = vpop.f32.mrb[0].mxu0
        %v3146 = vadd.f32 %v3033, %v3145
        %v3147 = vpop.f32.mrb[0].mxu0
        %v3148 = vadd.f32 %v3035, %v3147
        %v3149 = vpop.f32.mrb[0].mxu0
        %v3150 = vadd.f32 %v3037, %v3149
        %3151 = vmatprep.mubr.bf16.mxu0 %v1153
        %3152 = vmatmul.mubr.bf16.gmra.mrb[0].mxu0 %v1152
        %v3153 = vpop.f32.mrb[0].mxu0
        %v3154 = vadd.f32 %v3041, %v3153
        %v3155 = vpop.f32.mrb[0].mxu0
        %v3156 = vadd.f32 %v3043, %v3155
        %v3157 = vpop.f32.mrb[0].mxu0
        %v3158 = vadd.f32 %v3045, %v3157
        %v3159 = vpop.f32.mrb[0].mxu0
        %v3160 = vadd.f32 %v3047, %v3159
        %3161 = vmatprep.mubr.bf16.mxu0 %v1161
        %3162 = vmatmul.mubr.bf16.gmra.mrb[0].mxu0 %v1160
        %v3163 = vpop.f32.mrb[0].mxu0
        %v3164 = vadd.f32 %v3051, %v3163
        %v3165 = vpop.f32.mrb[0].mxu0
        %v3166 = vadd.f32 %v3053, %v3165
        %v3167 = vpop.f32.mrb[0].mxu0
        %v3168 = vadd.f32 %v3055, %v3167
        %v3169 = vpop.f32.mrb[0].mxu0
        %v3170 = vadd.f32 %v3057, %v3169
        %3171 = vdwg.mxu0
        %3172 = vmatprep.subr.bf16.mxu0 %v2211
        %3173 = vmatpush1.bf16.msra.mxu0 %v2210
        %3174 = vmatprep.subr.bf16.mxu0 %v2215
        %3175 = vmatpush1.bf16.msra.mxu0 %v2214
        %3176 = vmatprep.subr.bf16.mxu0 %v2219
        %3177 = vmatpush1.bf16.msra.mxu0 %v2218
        %3178 = vmatprep.subr.bf16.mxu0 %v2223
        %3179 = vmatpush1.bf16.msra.mxu0 %v2222
        %3180 = vmatprep.subr.bf16.mxu0 %v2227
        %3181 = vmatpush1.bf16.msra.mxu0 %v2226
        %3182 = vmatprep.subr.bf16.mxu0 %v2231
        %3183 = vmatpush1.bf16.msra.mxu0 %v2230
        %3184 = vmatprep.subr.bf16.mxu0 %v2235
        %3185 = vmatpush1.bf16.msra.mxu0 %v2234
        %3186 = vmatprep.subr.bf16.mxu0 %v2239
        %3187 = vmatpush1.bf16.msra.mxu0 %v2238
        %3188 = vmatprep.subr.bf16.mxu0 %v2243
        %3189 = vmatpush1.bf16.msra.mxu0 %v2242
        %3190 = vmatprep.subr.bf16.mxu0 %v2247
        %3191 = vmatpush1.bf16.msra.mxu0 %v2246
        %3192 = vmatprep.subr.bf16.mxu0 %v2251
        %3193 = vmatpush1.bf16.msra.mxu0 %v2250
        %3194 = vmatprep.subr.bf16.mxu0 %v2255
        %3195 = vmatpush1.bf16.msra.mxu0 %v2254
        %3196 = vmatprep.subr.bf16.mxu0 %v2259
        %3197 = vmatpush1.bf16.msra.mxu0 %v2258
        %3198 = vmatprep.subr.bf16.mxu0 %v2263
        %3199 = vmatpush1.bf16.msra.mxu0 %v2262
        %3200 = vmatprep.subr.bf16.mxu0 %v2267
        %3201 = vmatpush1.bf16.msra.mxu0 %v2266
        %3202 = vmatprep.subr.bf16.mxu0 %v2271
        %3203 = vmatpush1.bf16.msra.mxu0 %v2270
        %3204 = vmatprep.mubr.bf16.mxu0 %v1099
        %3205 = vmatmul.mubr.bf16.gmra.mrb[0].mxu0 %v1098
        %v3206 = vpop.f32.mrb[0].mxu0
        %v3207 = vadd.f32 %v1431, %v3206
        %v3208 = vpop.f32.mrb[0].mxu0
        %v3209 = vadd.f32 %v1435, %v3208
        %v3210 = vpop.f32.mrb[0].mxu0
        %v3211 = vadd.f32 %v1431, %v3210
        %v3212 = vpop.f32.mrb[0].mxu0
        %v3213 = vadd.f32 %v1435, %v3212
        %3214 = vmatprep.mubr.bf16.mxu0 %v1107
        %3215 = vmatmul.mubr.bf16.gmra.mrb[0].mxu0 %v1106
        %v3216 = vpop.f32.mrb[0].mxu0
        %v3217 = vadd.f32 %v1431, %v3216
        %v3218 = vpop.f32.mrb[0].mxu0
        %v3219 = vadd.f32 %v1435, %v3218
        %v3220 = vpop.f32.mrb[0].mxu0
        %v3221 = vadd.f32 %v1431, %v3220
        %v3222 = vpop.f32.mrb[0].mxu0
        %v3223 = vadd.f32 %v1435, %v3222
        %3224 = vmatprep.mubr.bf16.mxu0 %v1115
        %3225 = vmatmul.mubr.bf16.gmra.mrb[0].mxu0 %v1114
        %v3226 = vpop.f32.mrb[0].mxu0
        %v3227 = vadd.f32 %v1431, %v3226
        %v3228 = vpop.f32.mrb[0].mxu0
        %v3229 = vadd.f32 %v1435, %v3228
        %v3230 = vpop.f32.mrb[0].mxu0
        %v3231 = vadd.f32 %v1431, %v3230
        %v3232 = vpop.f32.mrb[0].mxu0
        %v3233 = vadd.f32 %v1435, %v3232
        %3234 = vmatprep.mubr.bf16.mxu0 %v1123
        %3235 = vmatmul.mubr.bf16.gmra.mrb[0].mxu0 %v1122
        %v3236 = vpop.f32.mrb[0].mxu0
        %v3237 = vadd.f32 %v1431, %v3236
        %v3238 = vpop.f32.mrb[0].mxu0
        %v3239 = vadd.f32 %v1435, %v3238
        %v3240 = vpop.f32.mrb[0].mxu0
        %v3241 = vadd.f32 %v1431, %v3240
        %v3242 = vpop.f32.mrb[0].mxu0
        %v3243 = vadd.f32 %v1435, %v3242
        %3244 = vmatprep.mubr.bf16.mxu0 %v1131
        %3245 = vmatmul.mubr.bf16.gmra.mrb[0].mxu0 %v1130
        %v3246 = vpop.f32.mrb[0].mxu0
        %v3247 = vadd.f32 %v1431, %v3246
        %v3248 = vpop.f32.mrb[0].mxu0
        %v3249 = vadd.f32 %v1435, %v3248
        %v3250 = vpop.f32.mrb[0].mxu0
        %v3251 = vadd.f32 %v1431, %v3250
        %v3252 = vpop.f32.mrb[0].mxu0
        %v3253 = vadd.f32 %v1435, %v3252
        %3254 = vmatprep.mubr.bf16.mxu0 %v1139
        %3255 = vmatmul.mubr.bf16.gmra.mrb[0].mxu0 %v1138
        %v3256 = vpop.f32.mrb[0].mxu0
        %v3257 = vadd.f32 %v1431, %v3256
        %v3258 = vpop.f32.mrb[0].mxu0
        %v3259 = vadd.f32 %v1435, %v3258
        %v3260 = vpop.f32.mrb[0].mxu0
        %v3261 = vadd.f32 %v1431, %v3260
        %v3262 = vpop.f32.mrb[0].mxu0
        %v3263 = vadd.f32 %v1435, %v3262
        %3264 = vmatprep.mubr.bf16.mxu0 %v1147
        %3265 = vmatmul.mubr.bf16.gmra.mrb[0].mxu0 %v1146
        %v3266 = vpop.f32.mrb[0].mxu0
        %v3267 = vadd.f32 %v1431, %v3266
        %v3268 = vpop.f32.mrb[0].mxu0
        %v3269 = vadd.f32 %v1435, %v3268
        %v3270 = vpop.f32.mrb[0].mxu0
        %v3271 = vadd.f32 %v1431, %v3270
        %v3272 = vpop.f32.mrb[0].mxu0
        %v3273 = vadd.f32 %v1435, %v3272
        %3274 = vmatprep.mubr.bf16.mxu0 %v1155
        %3275 = vmatmul.mubr.bf16.gmra.mrb[0].mxu0 %v1154
        %v3276 = vpop.f32.mrb[0].mxu0
        %v3277 = vadd.f32 %v1431, %v3276
        %v3278 = vpop.f32.mrb[0].mxu0
        %v3279 = vadd.f32 %v1435, %v3278
        %v3280 = vpop.f32.mrb[0].mxu0
        %v3281 = vadd.f32 %v1431, %v3280
        %v3282 = vpop.f32.mrb[0].mxu0
        %v3283 = vadd.f32 %v1435, %v3282
        %3284 = vdwg.mxu0
        %3285 = vmatprep.subr.bf16.mxu0 %v2275
        %3286 = vmatpush1.bf16.msra.mxu0 %v2274
        %3287 = vmatprep.subr.bf16.mxu0 %v2279
        %3288 = vmatpush1.bf16.msra.mxu0 %v2278
        %3289 = vmatprep.subr.bf16.mxu0 %v2283
        %3290 = vmatpush1.bf16.msra.mxu0 %v2282
        %3291 = vmatprep.subr.bf16.mxu0 %v2287
        %3292 = vmatpush1.bf16.msra.mxu0 %v2286
        %3293 = vmatprep.subr.bf16.mxu0 %v2291
        %3294 = vmatpush1.bf16.msra.mxu0 %v2290
        %3295 = vmatprep.subr.bf16.mxu0 %v2295
        %3296 = vmatpush1.bf16.msra.mxu0 %v2294
        %3297 = vmatprep.subr.bf16.mxu0 %v2299
        %3298 = vmatpush1.bf16.msra.mxu0 %v2298
        %3299 = vmatprep.subr.bf16.mxu0 %v2303
        %3300 = vmatpush1.bf16.msra.mxu0 %v2302
        %3301 = vmatprep.subr.bf16.mxu0 %v2307
        %3302 = vmatpush1.bf16.msra.mxu0 %v2306
        %3303 = vmatprep.subr.bf16.mxu0 %v2311
        %3304 = vmatpush1.bf16.msra.mxu0 %v2310
        %3305 = vmatprep.subr.bf16.mxu0 %v2315
        %3306 = vmatpush1.bf16.msra.mxu0 %v2314
        %3307 = vmatprep.subr.bf16.mxu0 %v2319
        %3308 = vmatpush1.bf16.msra.mxu0 %v2318
        %3309 = vmatprep.subr.bf16.mxu0 %v2323
        %3310 = vmatpush1.bf16.msra.mxu0 %v2322
        %3311 = vmatprep.subr.bf16.mxu0 %v2327
        %3312 = vmatpush1.bf16.msra.mxu0 %v2326
        %3313 = vmatprep.subr.bf16.mxu0 %v2331
        %3314 = vmatpush1.bf16.msra.mxu0 %v2330
        %3315 = vmatprep.subr.bf16.mxu0 %v2335
        %3316 = vmatpush1.bf16.msra.mxu0 %v2334
        %3317 = vmatprep.mubr.bf16.mxu0 %v1101
        %3318 = vmatmul.mubr.bf16.gmra.mrb[0].mxu0 %v1100
        %v3319 = vpop.f32.mrb[0].mxu0
        %v3320 = vadd.f32 %v3207, %v3319
        %v3321 = vpop.f32.mrb[0].mxu0
        %v3322 = vadd.f32 %v3209, %v3321
        %v3323 = vpop.f32.mrb[0].mxu0
        %v3324 = vadd.f32 %v3211, %v3323
        %v3325 = vpop.f32.mrb[0].mxu0
        %v3326 = vadd.f32 %v3213, %v3325
        %3327 = vmatprep.mubr.bf16.mxu0 %v1109
        %3328 = vmatmul.mubr.bf16.gmra.mrb[0].mxu0 %v1108
        %v3329 = vpop.f32.mrb[0].mxu0
        %v3330 = vadd.f32 %v3217, %v3329
        %v3331 = vpop.f32.mrb[0].mxu0
        %v3332 = vadd.f32 %v3219, %v3331
        %v3333 = vpop.f32.mrb[0].mxu0
        %v3334 = vadd.f32 %v3221, %v3333
        %v3335 = vpop.f32.mrb[0].mxu0
        %v3336 = vadd.f32 %v3223, %v3335
        %3337 = vmatprep.mubr.bf16.mxu0 %v1117
        %3338 = vmatmul.mubr.bf16.gmra.mrb[0].mxu0 %v1116
        %v3339 = vpop.f32.mrb[0].mxu0
        %v3340 = vadd.f32 %v3227, %v3339
        %v3341 = vpop.f32.mrb[0].mxu0
        %v3342 = vadd.f32 %v3229, %v3341
        %v3343 = vpop.f32.mrb[0].mxu0
        %v3344 = vadd.f32 %v3231, %v3343
        %v3345 = vpop.f32.mrb[0].mxu0
        %v3346 = vadd.f32 %v3233, %v3345
        %3347 = vmatprep.mubr.bf16.mxu0 %v1125
        %3348 = vmatmul.mubr.bf16.gmra.mrb[0].mxu0 %v1124
        %v3349 = vpop.f32.mrb[0].mxu0
        %v3350 = vadd.f32 %v3237, %v3349
        %v3351 = vpop.f32.mrb[0].mxu0
        %v3352 = vadd.f32 %v3239, %v3351
        %v3353 = vpop.f32.mrb[0].mxu0
        %v3354 = vadd.f32 %v3241, %v3353
        %v3355 = vpop.f32.mrb[0].mxu0
        %v3356 = vadd.f32 %v3243, %v3355
        %3357 = vmatprep.mubr.bf16.mxu0 %v1133
        %3358 = vmatmul.mubr.bf16.gmra.mrb[0].mxu0 %v1132
        %v3359 = vpop.f32.mrb[0].mxu0
        %v3360 = vadd.f32 %v3247, %v3359
        %v3361 = vpop.f32.mrb[0].mxu0
        %v3362 = vadd.f32 %v3249, %v3361
        %v3363 = vpop.f32.mrb[0].mxu0
        %v3364 = vadd.f32 %v3251, %v3363
        %v3365 = vpop.f32.mrb[0].mxu0
        %v3366 = vadd.f32 %v3253, %v3365
        %3367 = vmatprep.mubr.bf16.mxu0 %v1141
        %3368 = vmatmul.mubr.bf16.gmra.mrb[0].mxu0 %v1140
        %v3369 = vpop.f32.mrb[0].mxu0
        %v3370 = vadd.f32 %v3257, %v3369
        %v3371 = vpop.f32.mrb[0].mxu0
        %v3372 = vadd.f32 %v3259, %v3371
        %v3373 = vpop.f32.mrb[0].mxu0
        %v3374 = vadd.f32 %v3261, %v3373
        %v3375 = vpop.f32.mrb[0].mxu0
        %v3376 = vadd.f32 %v3263, %v3375
        %3377 = vmatprep.mubr.bf16.mxu0 %v1149
        %3378 = vmatmul.mubr.bf16.gmra.mrb[0].mxu0 %v1148
        %v3379 = vpop.f32.mrb[0].mxu0
        %v3380 = vadd.f32 %v3267, %v3379
        %v3381 = vpop.f32.mrb[0].mxu0
        %v3382 = vadd.f32 %v3269, %v3381
        %v3383 = vpop.f32.mrb[0].mxu0
        %v3384 = vadd.f32 %v3271, %v3383
        %v3385 = vpop.f32.mrb[0].mxu0
        %v3386 = vadd.f32 %v3273, %v3385
        %3387 = vmatprep.mubr.bf16.mxu0 %v1157
        %3388 = vmatmul.mubr.bf16.gmra.mrb[0].mxu0 %v1156
        %v3389 = vpop.f32.mrb[0].mxu0
        %v3390 = vadd.f32 %v3277, %v3389
        %v3391 = vpop.f32.mrb[0].mxu0
        %v3392 = vadd.f32 %v3279, %v3391
        %v3393 = vpop.f32.mrb[0].mxu0
        %v3394 = vadd.f32 %v3281, %v3393
        %v3395 = vpop.f32.mrb[0].mxu0
        %v3396 = vadd.f32 %v3283, %v3395
        %3397 = vdwg.mxu0
        %3398 = vmatprep.subr.bf16.mxu0 %v2339
        %3399 = vmatpush1.bf16.msra.mxu0 %v2338
        %3400 = vmatprep.subr.bf16.mxu0 %v2343
        %3401 = vmatpush1.bf16.msra.mxu0 %v2342
        %3402 = vmatprep.subr.bf16.mxu0 %v2347
        %3403 = vmatpush1.bf16.msra.mxu0 %v2346
        %3404 = vmatprep.subr.bf16.mxu0 %v2351
        %3405 = vmatpush1.bf16.msra.mxu0 %v2350
        %3406 = vmatprep.subr.bf16.mxu0 %v2355
        %3407 = vmatpush1.bf16.msra.mxu0 %v2354
        %3408 = vmatprep.subr.bf16.mxu0 %v2359
        %3409 = vmatpush1.bf16.msra.mxu0 %v2358
        %3410 = vmatprep.subr.bf16.mxu0 %v2363
        %3411 = vmatpush1.bf16.msra.mxu0 %v2362
        %3412 = vmatprep.subr.bf16.mxu0 %v2367
        %3413 = vmatpush1.bf16.msra.mxu0 %v2366
        %3414 = vmatprep.subr.bf16.mxu0 %v2371
        %3415 = vmatpush1.bf16.msra.mxu0 %v2370
        %3416 = vmatprep.subr.bf16.mxu0 %v2375
        %3417 = vmatpush1.bf16.msra.mxu0 %v2374
        %3418 = vmatprep.subr.bf16.mxu0 %v2379
        %3419 = vmatpush1.bf16.msra.mxu0 %v2378
        %3420 = vmatprep.subr.bf16.mxu0 %v2383
        %3421 = vmatpush1.bf16.msra.mxu0 %v2382
        %3422 = vmatprep.subr.bf16.mxu0 %v2387
        %3423 = vmatpush1.bf16.msra.mxu0 %v2386
        %3424 = vmatprep.subr.bf16.mxu0 %v2391
        %3425 = vmatpush1.bf16.msra.mxu0 %v2390
        %3426 = vmatprep.subr.bf16.mxu0 %v2395
        %3427 = vmatpush1.bf16.msra.mxu0 %v2394
        %3428 = vmatprep.subr.bf16.mxu0 %v2399
        %3429 = vmatpush1.bf16.msra.mxu0 %v2398
        %3430 = vmatprep.mubr.bf16.mxu0 %v1103
        %3431 = vmatmul.mubr.bf16.gmra.mrb[0].mxu0 %v1102
        %v3432 = vpop.f32.mrb[0].mxu0
        %v3433 = vadd.f32 %v3320, %v3432
        %v3434 = vpop.f32.mrb[0].mxu0
        %v3435 = vadd.f32 %v3322, %v3434
        %v3436 = vpop.f32.mrb[0].mxu0
        %v3437 = vadd.f32 %v3324, %v3436
        %v3438 = vpop.f32.mrb[0].mxu0
        %v3439 = vadd.f32 %v3326, %v3438
        %3440 = vmatprep.mubr.bf16.mxu0 %v1111
        %3441 = vmatmul.mubr.bf16.gmra.mrb[0].mxu0 %v1110
        %v3442 = vpop.f32.mrb[0].mxu0
        %v3443 = vadd.f32 %v3330, %v3442
        %v3444 = vpop.f32.mrb[0].mxu0
        %v3445 = vadd.f32 %v3332, %v3444
        %v3446 = vpop.f32.mrb[0].mxu0
        %v3447 = vadd.f32 %v3334, %v3446
        %v3448 = vpop.f32.mrb[0].mxu0
        %v3449 = vadd.f32 %v3336, %v3448
        %3450 = vmatprep.mubr.bf16.mxu0 %v1119
        %3451 = vmatmul.mubr.bf16.gmra.mrb[0].mxu0 %v1118
        %v3452 = vpop.f32.mrb[0].mxu0
        %v3453 = vadd.f32 %v3340, %v3452
        %v3454 = vpop.f32.mrb[0].mxu0
        %v3455 = vadd.f32 %v3342, %v3454
        %v3456 = vpop.f32.mrb[0].mxu0
        %v3457 = vadd.f32 %v3344, %v3456
        %v3458 = vpop.f32.mrb[0].mxu0
        %v3459 = vadd.f32 %v3346, %v3458
        %3460 = vmatprep.mubr.bf16.mxu0 %v1127
        %3461 = vmatmul.mubr.bf16.gmra.mrb[0].mxu0 %v1126
        %v3462 = vpop.f32.mrb[0].mxu0
        %v3463 = vadd.f32 %v3350, %v3462
        %v3464 = vpop.f32.mrb[0].mxu0
        %v3465 = vadd.f32 %v3352, %v3464
        %v3466 = vpop.f32.mrb[0].mxu0
        %v3467 = vadd.f32 %v3354, %v3466
        %v3468 = vpop.f32.mrb[0].mxu0
        %v3469 = vadd.f32 %v3356, %v3468
        %3470 = vmatprep.mubr.bf16.mxu0 %v1135
        %3471 = vmatmul.mubr.bf16.gmra.mrb[0].mxu0 %v1134
        %v3472 = vpop.f32.mrb[0].mxu0
        %v3473 = vadd.f32 %v3360, %v3472
        %v3474 = vpop.f32.mrb[0].mxu0
        %v3475 = vadd.f32 %v3362, %v3474
        %v3476 = vpop.f32.mrb[0].mxu0
        %v3477 = vadd.f32 %v3364, %v3476
        %v3478 = vpop.f32.mrb[0].mxu0
        %v3479 = vadd.f32 %v3366, %v3478
        %3480 = vmatprep.mubr.bf16.mxu0 %v1143
        %3481 = vmatmul.mubr.bf16.gmra.mrb[0].mxu0 %v1142
        %v3482 = vpop.f32.mrb[0].mxu0
        %v3483 = vadd.f32 %v3370, %v3482
        %v3484 = vpop.f32.mrb[0].mxu0
        %v3485 = vadd.f32 %v3372, %v3484
        %v3486 = vpop.f32.mrb[0].mxu0
        %v3487 = vadd.f32 %v3374, %v3486
        %v3488 = vpop.f32.mrb[0].mxu0
        %v3489 = vadd.f32 %v3376, %v3488
        %3490 = vmatprep.mubr.bf16.mxu0 %v1151
        %3491 = vmatmul.mubr.bf16.gmra.mrb[0].mxu0 %v1150
        %v3492 = vpop.f32.mrb[0].mxu0
        %v3493 = vadd.f32 %v3380, %v3492
        %v3494 = vpop.f32.mrb[0].mxu0
        %v3495 = vadd.f32 %v3382, %v3494
        %v3496 = vpop.f32.mrb[0].mxu0
        %v3497 = vadd.f32 %v3384, %v3496
        %v3498 = vpop.f32.mrb[0].mxu0
        %v3499 = vadd.f32 %v3386, %v3498
        %3500 = vmatprep.mubr.bf16.mxu0 %v1159
        %3501 = vmatmul.mubr.bf16.gmra.mrb[0].mxu0 %v1158
        %v3502 = vpop.f32.mrb[0].mxu0
        %v3503 = vadd.f32 %v3390, %v3502
        %v3504 = vpop.f32.mrb[0].mxu0
        %v3505 = vadd.f32 %v3392, %v3504
        %v3506 = vpop.f32.mrb[0].mxu0
        %v3507 = vadd.f32 %v3394, %v3506
        %v3508 = vpop.f32.mrb[0].mxu0
        %v3509 = vadd.f32 %v3396, %v3508
        %3510 = vdwg.mxu0
        %3511 = vmatprep.subr.bf16.mxu0 %v2403
        %3512 = vmatpush1.bf16.msra.mxu0 %v2402
        %3513 = vmatprep.subr.bf16.mxu0 %v2407
        %3514 = vmatpush1.bf16.msra.mxu0 %v2406
        %3515 = vmatprep.subr.bf16.mxu0 %v2411
        %3516 = vmatpush1.bf16.msra.mxu0 %v2410
        %3517 = vmatprep.subr.bf16.mxu0 %v2415
        %3518 = vmatpush1.bf16.msra.mxu0 %v2414
        %3519 = vmatprep.subr.bf16.mxu0 %v2419
        %3520 = vmatpush1.bf16.msra.mxu0 %v2418
        %3521 = vmatprep.subr.bf16.mxu0 %v2423
        %3522 = vmatpush1.bf16.msra.mxu0 %v2422
        %3523 = vmatprep.subr.bf16.mxu0 %v2427
        %3524 = vmatpush1.bf16.msra.mxu0 %v2426
        %3525 = vmatprep.subr.bf16.mxu0 %v2431
        %3526 = vmatpush1.bf16.msra.mxu0 %v2430
        %3527 = vmatprep.subr.bf16.mxu0 %v2435
        %3528 = vmatpush1.bf16.msra.mxu0 %v2434
        %3529 = vmatprep.subr.bf16.mxu0 %v2439
        %3530 = vmatpush1.bf16.msra.mxu0 %v2438
        %3531 = vmatprep.subr.bf16.mxu0 %v2443
        %3532 = vmatpush1.bf16.msra.mxu0 %v2442
        %3533 = vmatprep.subr.bf16.mxu0 %v2447
        %3534 = vmatpush1.bf16.msra.mxu0 %v2446
        %3535 = vmatprep.subr.bf16.mxu0 %v2451
        %3536 = vmatpush1.bf16.msra.mxu0 %v2450
        %3537 = vmatprep.subr.bf16.mxu0 %v2455
        %3538 = vmatpush1.bf16.msra.mxu0 %v2454
        %3539 = vmatprep.subr.bf16.mxu0 %v2459
        %3540 = vmatpush1.bf16.msra.mxu0 %v2458
        %3541 = vmatprep.subr.bf16.mxu0 %v2463
        %3542 = vmatpush1.bf16.msra.mxu0 %v2462
        %3543 = vmatprep.mubr.bf16.mxu0 %v1105
        %3544 = vmatmul.mubr.bf16.gmra.mrb[0].mxu0 %v1104
        %v3545 = vpop.f32.mrb[0].mxu0
        %v3546 = vadd.f32 %v3433, %v3545
        %v3547 = vpop.f32.mrb[0].mxu0
        %v3548 = vadd.f32 %v3435, %v3547
        %v3549 = vpop.f32.mrb[0].mxu0
        %v3550 = vadd.f32 %v3437, %v3549
        %v3551 = vpop.f32.mrb[0].mxu0
        %v3552 = vadd.f32 %v3439, %v3551
        %3553 = vmatprep.mubr.bf16.mxu0 %v1113
        %3554 = vmatmul.mubr.bf16.gmra.mrb[0].mxu0 %v1112
        %v3555 = vpop.f32.mrb[0].mxu0
        %v3556 = vadd.f32 %v3443, %v3555
        %v3557 = vpop.f32.mrb[0].mxu0
        %v3558 = vadd.f32 %v3445, %v3557
        %v3559 = vpop.f32.mrb[0].mxu0
        %v3560 = vadd.f32 %v3447, %v3559
        %v3561 = vpop.f32.mrb[0].mxu0
        %v3562 = vadd.f32 %v3449, %v3561
        %3563 = vmatprep.mubr.bf16.mxu0 %v1121
        %3564 = vmatmul.mubr.bf16.gmra.mrb[0].mxu0 %v1120
        %v3565 = vpop.f32.mrb[0].mxu0
        %v3566 = vadd.f32 %v3453, %v3565
        %v3567 = vpop.f32.mrb[0].mxu0
        %v3568 = vadd.f32 %v3455, %v3567
        %v3569 = vpop.f32.mrb[0].mxu0
        %v3570 = vadd.f32 %v3457, %v3569
        %v3571 = vpop.f32.mrb[0].mxu0
        %v3572 = vadd.f32 %v3459, %v3571
        %3573 = vmatprep.mubr.bf16.mxu0 %v1129
        %3574 = vmatmul.mubr.bf16.gmra.mrb[0].mxu0 %v1128
        %v3575 = vpop.f32.mrb[0].mxu0
        %v3576 = vadd.f32 %v3463, %v3575
        %v3577 = vpop.f32.mrb[0].mxu0
        %v3578 = vadd.f32 %v3465, %v3577
        %v3579 = vpop.f32.mrb[0].mxu0
        %v3580 = vadd.f32 %v3467, %v3579
        %v3581 = vpop.f32.mrb[0].mxu0
        %v3582 = vadd.f32 %v3469, %v3581
        %3583 = vmatprep.mubr.bf16.mxu0 %v1137
        %3584 = vmatmul.mubr.bf16.gmra.mrb[0].mxu0 %v1136
        %v3585 = vpop.f32.mrb[0].mxu0
        %v3586 = vadd.f32 %v3473, %v3585
        %v3587 = vpop.f32.mrb[0].mxu0
        %v3588 = vadd.f32 %v3475, %v3587
        %v3589 = vpop.f32.mrb[0].mxu0
        %v3590 = vadd.f32 %v3477, %v3589
        %v3591 = vpop.f32.mrb[0].mxu0
        %v3592 = vadd.f32 %v3479, %v3591
        %3593 = vmatprep.mubr.bf16.mxu0 %v1145
        %3594 = vmatmul.mubr.bf16.gmra.mrb[0].mxu0 %v1144
        %v3595 = vpop.f32.mrb[0].mxu0
        %v3596 = vadd.f32 %v3483, %v3595
        %v3597 = vpop.f32.mrb[0].mxu0
        %v3598 = vadd.f32 %v3485, %v3597
        %v3599 = vpop.f32.mrb[0].mxu0
        %v3600 = vadd.f32 %v3487, %v3599
        %v3601 = vpop.f32.mrb[0].mxu0
        %v3602 = vadd.f32 %v3489, %v3601
        %3603 = vmatprep.mubr.bf16.mxu0 %v1153
        %3604 = vmatmul.mubr.bf16.gmra.mrb[0].mxu0 %v1152
        %v3605 = vpop.f32.mrb[0].mxu0
        %v3606 = vadd.f32 %v3493, %v3605
        %v3607 = vpop.f32.mrb[0].mxu0
        %v3608 = vadd.f32 %v3495, %v3607
        %v3609 = vpop.f32.mrb[0].mxu0
        %v3610 = vadd.f32 %v3497, %v3609
        %v3611 = vpop.f32.mrb[0].mxu0
        %v3612 = vadd.f32 %v3499, %v3611
        %3613 = vmatprep.mubr.bf16.mxu0 %v1161
        %3614 = vmatmul.mubr.bf16.gmra.mrb[0].mxu0 %v1160
        %v3615 = vpop.f32.mrb[0].mxu0
        %v3616 = vadd.f32 %v3503, %v3615
        %v3617 = vpop.f32.mrb[0].mxu0
        %v3618 = vadd.f32 %v3505, %v3617
        %v3619 = vpop.f32.mrb[0].mxu0
        %v3620 = vadd.f32 %v3507, %v3619
        %v3621 = vpop.f32.mrb[0].mxu0
        %v3622 = vadd.f32 %v3509, %v3621
        %3623 = vdwg.mxu0
        %v3624 = vmax.f32 %v3094, 0.0
        %v3625 = vmax.f32 %v3096, 0.0
        %v3626 = vmax.f32 %v3546, 0.0
        %v3627 = vmax.f32 %v3548, 0.0
        %v3628 = vmax.f32 %v3098, 0.0
        %v3629 = vmax.f32 %v3100, 0.0
        %v3630 = vmax.f32 %v3550, 0.0
        %v3631 = vmax.f32 %v3552, 0.0
        %v3632 = vmax.f32 %v3104, 0.0
        %v3633 = vmax.f32 %v3106, 0.0
        %v3634 = vmax.f32 %v3556, 0.0
        %v3635 = vmax.f32 %v3558, 0.0
        %v3636 = vmax.f32 %v3108, 0.0
        %v3637 = vmax.f32 %v3110, 0.0
        %v3638 = vmax.f32 %v3560, 0.0
        %v3639 = vmax.f32 %v3562, 0.0
        %v3640 = vmax.f32 %v3114, 0.0
        %v3641 = vmax.f32 %v3116, 0.0
        %v3642 = vmax.f32 %v3566, 0.0
        %v3643 = vmax.f32 %v3568, 0.0
        %v3644 = vmax.f32 %v3118, 0.0
        %v3645 = vmax.f32 %v3120, 0.0
        %v3646 = vmax.f32 %v3570, 0.0
        %v3647 = vmax.f32 %v3572, 0.0
        %v3648 = vmax.f32 %v3124, 0.0
        %v3649 = vmax.f32 %v3126, 0.0
        %v3650 = vmax.f32 %v3576, 0.0
        %v3651 = vmax.f32 %v3578, 0.0
        %v3652 = vmax.f32 %v3128, 0.0
        %v3653 = vmax.f32 %v3130, 0.0
        %v3654 = vmax.f32 %v3580, 0.0
        %v3655 = vmax.f32 %v3582, 0.0
        %v3656 = vmax.f32 %v3134, 0.0
        %v3657 = vmax.f32 %v3136, 0.0
        %v3658 = vmax.f32 %v3586, 0.0
        %v3659 = vmax.f32 %v3588, 0.0
        %v3660 = vmax.f32 %v3138, 0.0
        %v3661 = vmax.f32 %v3140, 0.0
        %v3662 = vmax.f32 %v3590, 0.0
        %v3663 = vmax.f32 %v3592, 0.0
        %v3664 = vmax.f32 %v3144, 0.0
        %v3665 = vmax.f32 %v3146, 0.0
        %v3666 = vmax.f32 %v3596, 0.0
        %v3667 = vmax.f32 %v3598, 0.0
        %v3668 = vmax.f32 %v3148, 0.0
        %v3669 = vmax.f32 %v3150, 0.0
        %v3670 = vmax.f32 %v3600, 0.0
        %v3671 = vmax.f32 %v3602, 0.0
        %v3672 = vmax.f32 %v3154, 0.0
        %v3673 = vmax.f32 %v3156, 0.0
        %v3674 = vmax.f32 %v3606, 0.0
        %v3675 = vmax.f32 %v3608, 0.0
        %v3676 = vmax.f32 %v3158, 0.0
        %v3677 = vmax.f32 %v3160, 0.0
        %v3678 = vmax.f32 %v3610, 0.0
        %v3679 = vmax.f32 %v3612, 0.0
        %v3680 = vmax.f32 %v3164, 0.0
        %v3681 = vmax.f32 %v3166, 0.0
        %v3682 = vmax.f32 %v3616, 0.0
        %v3683 = vmax.f32 %v3618, 0.0
        %v3684 = vmax.f32 %v3168, 0.0
        %v3685 = vmax.f32 %v3170, 0.0
        %v3686 = vmax.f32 %v3620, 0.0
        %v3687 = vmax.f32 %v3622, 0.0
        %v3688 = vld [vmem:[%s5] sm:$0xf]
        %v3690 = vlaneseq
        %v3691 = vshrl.u32 %v3690, 7
        %v3692 = vsub.s32 0, %v3691
        %v3693 = vrot.slane %v3688, %v3692
        %v3694 = vlaneseq
        %v3695 = vshrl.u32 %v3694, 7
        %v3696 = vsub.s32 1, %v3695
        %v3697 = vrot.slane %v3688, %v3696
        %v3698 = vlaneseq
        %v3699 = vshrl.u32 %v3698, 7
        %v3700 = vsub.s32 2, %v3699
        %v3701 = vrot.slane %v3688, %v3700
        %v3702 = vlaneseq
        %v3703 = vshrl.u32 %v3702, 7
        %v3704 = vsub.s32 3, %v3703
        %v3705 = vrot.slane %v3688, %v3704
        %v3710 = vmul.f32 %v3624, %v3693
        %v3711 = vmul.f32 %v3625, %v3697
        %v3712 = vmul.f32 %v3626, %v3701
        %v3713 = vmul.f32 %v3627, %v3705
        %v3714 = vmul.f32 %v3628, %v3693
        %v3715 = vmul.f32 %v3629, %v3697
        %v3716 = vmul.f32 %v3630, %v3701
        %v3717 = vmul.f32 %v3631, %v3705
        %v3718 = vmul.f32 %v3632, %v3693
        %v3719 = vmul.f32 %v3633, %v3697
        %v3720 = vmul.f32 %v3634, %v3701
        %v3721 = vmul.f32 %v3635, %v3705
        %v3722 = vmul.f32 %v3636, %v3693
        %v3723 = vmul.f32 %v3637, %v3697
        %v3724 = vmul.f32 %v3638, %v3701
        %v3725 = vmul.f32 %v3639, %v3705
        %v3726 = vmul.f32 %v3640, %v3693
        %v3727 = vmul.f32 %v3641, %v3697
        %v3728 = vmul.f32 %v3642, %v3701
        %v3729 = vmul.f32 %v3643, %v3705
        %v3730 = vmul.f32 %v3644, %v3693
        %v3731 = vmul.f32 %v3645, %v3697
        %v3732 = vmul.f32 %v3646, %v3701
        %v3733 = vmul.f32 %v3647, %v3705
        %v3734 = vmul.f32 %v3648, %v3693
        %v3735 = vmul.f32 %v3649, %v3697
        %v3736 = vmul.f32 %v3650, %v3701
        %v3737 = vmul.f32 %v3651, %v3705
        %v3738 = vmul.f32 %v3652, %v3693
        %v3739 = vmul.f32 %v3653, %v3697
        %v3740 = vmul.f32 %v3654, %v3701
        %v3741 = vmul.f32 %v3655, %v3705
        %v3742 = vmul.f32 %v3656, %v3693
        %v3743 = vmul.f32 %v3657, %v3697
        %v3744 = vmul.f32 %v3658, %v3701
        %v3745 = vmul.f32 %v3659, %v3705
        %v3746 = vmul.f32 %v3660, %v3693
        %v3747 = vmul.f32 %v3661, %v3697
        %v3748 = vmul.f32 %v3662, %v3701
        %v3749 = vmul.f32 %v3663, %v3705
        %v3750 = vmul.f32 %v3664, %v3693
        %v3751 = vmul.f32 %v3665, %v3697
        %v3752 = vmul.f32 %v3666, %v3701
        %v3753 = vmul.f32 %v3667, %v3705
        %v3754 = vmul.f32 %v3668, %v3693
        %v3755 = vmul.f32 %v3669, %v3697
        %v3756 = vmul.f32 %v3670, %v3701
        %v3757 = vmul.f32 %v3671, %v3705
        %v3758 = vmul.f32 %v3672, %v3693
        %v3759 = vmul.f32 %v3673, %v3697
        %v3760 = vmul.f32 %v3674, %v3701
        %v3761 = vmul.f32 %v3675, %v3705
        %v3762 = vmul.f32 %v3676, %v3693
        %v3763 = vmul.f32 %v3677, %v3697
        %v3764 = vmul.f32 %v3678, %v3701
        %v3765 = vmul.f32 %v3679, %v3705
        %v3766 = vmul.f32 %v3680, %v3693
        %v3767 = vmul.f32 %v3681, %v3697
        %v3768 = vmul.f32 %v3682, %v3701
        %v3769 = vmul.f32 %v3683, %v3705
        %v3770 = vmul.f32 %v3684, %v3693
        %v3771 = vmul.f32 %v3685, %v3697
        %v3772 = vmul.f32 %v3686, %v3701
        %v3773 = vmul.f32 %v3687, %v3705
        %v3774 = vadd.f32 %v3710, %v3711
        %v3775 = vadd.f32 %v3774, %v3712
        %v3776 = vadd.f32 %v3775, %v3713
        %3777 = vadd.xlane.f32.xlu0 %v3776
        %v3778 = vpop.xlane.xlu0 %3777
        %v3779 = vadd.f32 %v3714, %v3715
        %v3780 = vadd.f32 %v3779, %v3716
        %v3781 = vadd.f32 %v3780, %v3717
        %3782 = vadd.xlane.f32.xlu0 %v3781
        %v3783 = vpop.xlane.xlu0 %3782
        %v3784 = vadd.f32 %v3718, %v3719
        %v3785 = vadd.f32 %v3784, %v3720
        %v3786 = vadd.f32 %v3785, %v3721
        %3787 = vadd.xlane.f32.xlu0 %v3786
        %v3788 = vpop.xlane.xlu0 %3787
        %v3789 = vadd.f32 %v3722, %v3723
        %v3790 = vadd.f32 %v3789, %v3724
        %v3791 = vadd.f32 %v3790, %v3725
        %3792 = vadd.xlane.f32.xlu0 %v3791
        %v3793 = vpop.xlane.xlu0 %3792
        %v3794 = vadd.f32 %v3726, %v3727
        %v3795 = vadd.f32 %v3794, %v3728
        %v3796 = vadd.f32 %v3795, %v3729
        %3797 = vadd.xlane.f32.xlu0 %v3796
        %v3798 = vpop.xlane.xlu0 %3797
        %v3799 = vadd.f32 %v3730, %v3731
        %v3800 = vadd.f32 %v3799, %v3732
        %v3801 = vadd.f32 %v3800, %v3733
        %3802 = vadd.xlane.f32.xlu0 %v3801
        %v3803 = vpop.xlane.xlu0 %3802
        %v3804 = vadd.f32 %v3734, %v3735
        %v3805 = vadd.f32 %v3804, %v3736
        %v3806 = vadd.f32 %v3805, %v3737
        %3807 = vadd.xlane.f32.xlu0 %v3806
        %v3808 = vpop.xlane.xlu0 %3807
        %v3809 = vadd.f32 %v3738, %v3739
        %v3810 = vadd.f32 %v3809, %v3740
        %v3811 = vadd.f32 %v3810, %v3741
        %3812 = vadd.xlane.f32.xlu0 %v3811
        %v3813 = vpop.xlane.xlu0 %3812
        %v3814 = vadd.f32 %v3742, %v3743
        %v3815 = vadd.f32 %v3814, %v3744
        %v3816 = vadd.f32 %v3815, %v3745
        %3817 = vadd.xlane.f32.xlu0 %v3816
        %v3818 = vpop.xlane.xlu0 %3817
        %v3819 = vadd.f32 %v3746, %v3747
        %v3820 = vadd.f32 %v3819, %v3748
        %v3821 = vadd.f32 %v3820, %v3749
        %3822 = vadd.xlane.f32.xlu0 %v3821
        %v3823 = vpop.xlane.xlu0 %3822
        %v3824 = vadd.f32 %v3750, %v3751
        %v3825 = vadd.f32 %v3824, %v3752
        %v3826 = vadd.f32 %v3825, %v3753
        %3827 = vadd.xlane.f32.xlu0 %v3826
        %v3828 = vpop.xlane.xlu0 %3827
        %v3829 = vadd.f32 %v3754, %v3755
        %v3830 = vadd.f32 %v3829, %v3756
        %v3831 = vadd.f32 %v3830, %v3757
        %3832 = vadd.xlane.f32.xlu0 %v3831
        %v3833 = vpop.xlane.xlu0 %3832
        %v3834 = vadd.f32 %v3758, %v3759
        %v3835 = vadd.f32 %v3834, %v3760
        %v3836 = vadd.f32 %v3835, %v3761
        %3837 = vadd.xlane.f32.xlu0 %v3836
        %v3838 = vpop.xlane.xlu0 %3837
        %v3839 = vadd.f32 %v3762, %v3763
        %v3840 = vadd.f32 %v3839, %v3764
        %v3841 = vadd.f32 %v3840, %v3765
        %3842 = vadd.xlane.f32.xlu0 %v3841
        %v3843 = vpop.xlane.xlu0 %3842
        %v3844 = vadd.f32 %v3766, %v3767
        %v3845 = vadd.f32 %v3844, %v3768
        %v3846 = vadd.f32 %v3845, %v3769
        %3847 = vadd.xlane.f32.xlu0 %v3846
        %v3848 = vpop.xlane.xlu0 %3847
        %v3849 = vadd.f32 %v3770, %v3771
        %v3850 = vadd.f32 %v3849, %v3772
        %v3851 = vadd.f32 %v3850, %v3773
        %3852 = vadd.xlane.f32.xlu0 %v3851
        %v3853 = vpop.xlane.xlu0 %3852
        %s3854 = sld [smem:[#allocation2]]
        %v3855 = vstv %s3854
        %v3856 = vadd.f32 %v3778, %v3855
        %v3857 = vadd.f32 %v3783, %v3855
        %v3858 = vadd.f32 %v3788, %v3855
        %v3859 = vadd.f32 %v3793, %v3855
        %v3860 = vadd.f32 %v3798, %v3855
        %v3861 = vadd.f32 %v3803, %v3855
        %v3862 = vadd.f32 %v3808, %v3855
        %v3863 = vadd.f32 %v3813, %v3855
        %v3864 = vadd.f32 %v3818, %v3855
        %v3865 = vadd.f32 %v3823, %v3855
        %v3866 = vadd.f32 %v3828, %v3855
        %v3867 = vadd.f32 %v3833, %v3855
        %v3868 = vadd.f32 %v3838, %v3855
        %v3869 = vadd.f32 %v3843, %v3855
        %v3870 = vadd.f32 %v3848, %v3855
        %v3871 = vadd.f32 %v3853, %v3855
        %vm3872 = vcmask 7168
        %3873 = vst.msk [vmem:[%s296] sm:$0xff] %vm3872, %v3856
        %3874 = vst.msk [vmem:[%s296 + $0x8] sm:$0xff] %vm3872, %v3857
        %3875 = vst.msk [vmem:[%s296 + $0x10] sm:$0xff] %vm3872, %v3858
        %3876 = vst.msk [vmem:[%s296 + $0x18] sm:$0xff] %vm3872, %v3859
        %3877 = vst.msk [vmem:[%s296 + $0x20] sm:$0xff] %vm3872, %v3860
        %3878 = vst.msk [vmem:[%s296 + $0x28] sm:$0xff] %vm3872, %v3861
        %3879 = vst.msk [vmem:[%s296 + $0x30] sm:$0xff] %vm3872, %v3862
        %3880 = vst.msk [vmem:[%s296 + $0x38] sm:$0xff] %vm3872, %v3863
        %3881 = vst.msk [vmem:[%s296 + $0x40] sm:$0xff] %vm3872, %v3864
        %3882 = vst.msk [vmem:[%s296 + $0x48] sm:$0xff] %vm3872, %v3865
        %3883 = vst.msk [vmem:[%s296 + $0x50] sm:$0xff] %vm3872, %v3866
        %3884 = vst.msk [vmem:[%s296 + $0x58] sm:$0xff] %vm3872, %v3867
        %3885 = vst.msk [vmem:[%s296 + $0x60] sm:$0xff] %vm3872, %v3868
        %3886 = vst.msk [vmem:[%s296 + $0x68] sm:$0xff] %vm3872, %v3869
        %3887 = vst.msk [vmem:[%s296 + $0x70] sm:$0xff] %vm3872, %v3870
        %3888 = vst.msk [vmem:[%s296 + $0x78] sm:$0xff] %vm3872, %v3871
        %s3889 = smul.u32 16, %s20
        %p3890 = scmp.lt.s32.totalorder %s3889, 31
        %s3891 = scalar_select %p3890, %s3889, 31
        %s3892 = smul.addr %s3891, 8
        %s3893 = scalar_lea.vmem %s7, %s3892
        // Predicated region
        $region53: #{tpu_custom_call.1} parent=47 // pred_check
          %p3894 = pneg %p190
        $region54: #{tpu_custom_call.1} parent=47 // pred_check_branch
          %3896 = sbr.rel (%p3894) target = $region56
        $region55: #{tpu_custom_call.1} parent=47 // pred_region
          %s3897 = smul.u32 16, %s20
        $region56: #{tpu_custom_call.1} parent=47 // pred_fallthru
          _
      $region48: #{tpu_custom_call.1} parent=5 // pred_fallthru
        _
      %p3898 = scmp.le.s32.totalorder 2, %s15
      // Predicated region
      $region57: #{tpu_custom_call.1} parent=5 // pred_check
        %p3899 = pneg %p3898
      $region58: #{tpu_custom_call.1} parent=5 // pred_check_branch
        %3901 = sbr.rel (%p3899) target = $region60
      $region59: #{tpu_custom_call.1} parent=5 // pred_region
        %s3902 = ssub.s32 %s15, 2
        // Predicated region
        $region61: #{tpu_custom_call.1} parent=59 // pred_check
          %p3903 = pneg %p196
        $region62: #{tpu_custom_call.1} parent=59 // pred_check_branch
          %3905 = sbr.rel (%p3903) target = $region64
        $region63: #{tpu_custom_call.1} parent=59 // pred_region
          %s3906 = smul.u32 16, %s21
          %p3907 = scmp.lt.s32.totalorder %s3906, 31
          %s3908 = scalar_select %p3907, %s3906, 31
          %s3909 = smul.addr %s3908, 8
          %s3910 = scalar_lea.vmem %s7, %s3909
        $region64: #{tpu_custom_call.1} parent=59 // pred_fallthru
          _
      $region60: #{tpu_custom_call.1} parent=5 // pred_fallthru
        _
    $region6: #{tpu_custom_call.1} parent=1 // loop_footer
      %s19 = sadd.s32 1, %s15
    $region7: #{tpu_custom_call.1} parent=1 // loop_footer_branch
      %14 = sbr.rel target = $region3
    $region8: #{tpu_custom_call.1} parent=1 // loop_exit
      _
    %3911 = vsyncpa [#allocation4], 1
    %s3912 = scalar_lea.sflag [#allocation4], 1
    %3913 = vsyncpa %s3912, 1

</llo_original>
